<compile_context>
chip_gen: v6e
topology: v6e:2x2x1
jax: 0.10.0
libtpu: 0.0.40
codegen_flags: <defaults>
</compile_context>

<pallas_src>
import functools
import math

import jax
import jax.numpy as jnp
from jax.experimental import pallas as pl
from jax.experimental.pallas import tpu as pltpu


# ---------------------------------------------------------------------------
# Fused adapter kernel: one grid step per batch element.
# ---------------------------------------------------------------------------
def _adapter_kernel(hidden_ref,
                    down_w_ref, down_b_ref,
                    q_w_ref, q_b_ref, k_w_ref, k_b_ref, v_w_ref, v_b_ref,
                    ao_w_ref, ao_b_ref, ao_ln_g_ref, ao_ln_b_ref,
                    i_w_ref, i_b_ref, o_w_ref, o_b_ref, o_ln_g_ref, o_ln_b_ref,
                    up_w_ref, up_b_ref,
                    out_ref,
                    *, num_layers, num_heads, head_dim):
    f32 = jnp.float32
    bf16 = jnp.bfloat16
    S = hidden_ref.shape[1]
    H = num_heads
    A = num_heads * head_dim
    scale = 1.0 / math.sqrt(head_dim)

    def layernorm(h, g, b):
        mean = jnp.mean(h, axis=-1, keepdims=True)
        var = jnp.mean(jnp.square(h - mean), axis=-1, keepdims=True)
        return (h - mean) * jax.lax.rsqrt(var + 1e-12) * g + b

    def mm(a, w):  # bf16 MXU operands, f32 accumulation
        return jnp.dot(a.astype(bf16), w, preferred_element_type=f32)

    hidden = hidden_ref[0]                                         # (S, P) f32

    # down_project
    x = mm(hidden, down_w_ref[...]) + down_b_ref[...]              # (S, A) f32

    # attention_mask is all-ones -> extended mask == 0.0 -> nothing to add.
    # num_layers == 2: static unroll is fine; switch to lax.fori_loop over the
    # stacked (L, ...) weights if L grows beyond ~4 (bounds live ranges).
    for l in range(num_layers):
        xb = jnp.broadcast_to(x.astype(bf16), (H, S, A))           # (H, S, A)

        # Head-batched Q/K/V projections -> (H, S, D) directly (no lane slices,
        # no transposes). 1/sqrt(D) folded into Q (weights + bias).
        q = (jnp.einsum('hsa,had->hsd', xb, q_w_ref[l],
                        preferred_element_type=f32) + q_b_ref[l]) * scale
        k = jnp.einsum('hsa,had->hsd', xb, k_w_ref[l],
                       preferred_element_type=f32) + k_b_ref[l]
        v = jnp.einsum('hsa,had->hsd', xb, v_w_ref[l],
                       preferred_element_type=f32) + v_b_ref[l]

        # Scores for all heads of this batch at once.
        s = jnp.einsum('hqd,hkd->hqk', q.astype(bf16), k.astype(bf16),
                       preferred_element_type=f32)                 # (H, S, S)
        s = s - jnp.max(s, axis=-1, keepdims=True)
        p = jnp.exp(s)
        p = p * pl.reciprocal(jnp.sum(p, axis=-1, keepdims=True), approx=True)

        ctx = jnp.einsum('hqk,hkd->hqd', p.astype(bf16), v.astype(bf16),
                         preferred_element_type=f32)               # (H, S, D)

        # Head merge folded into attention.output.dense: batched matmul against
        # the per-head slab of ao_w (H, D, A), then a cheap sum over H.
        attn_dense = jnp.sum(
            jnp.einsum('hqd,hda->hqa', ctx.astype(bf16), ao_w_ref[l],
                       preferred_element_type=f32),
            axis=0) + ao_b_ref[l]                                  # (S, A)
        attn_out = layernorm(attn_dense + x, ao_ln_g_ref[l], ao_ln_b_ref[l])

        # Feed-forward (intermediate -> output) + post-LN.
        inter = jax.nn.gelu(mm(attn_out, i_w_ref[l]) + i_b_ref[l],
                            approximate=True)                      # (S, I)
        ffn = mm(inter, o_w_ref[l]) + o_b_ref[l]                   # (S, A)
        x = layernorm(ffn + attn_out, o_ln_g_ref[l], o_ln_b_ref[l])

    # up_project + residual
    up = mm(x, up_w_ref[...]) + up_b_ref[...]                      # (S, P)
    out_ref[0] = (hidden + up).astype(out_ref.dtype)


# ---------------------------------------------------------------------------
# Config, parameter init (kernel-packed layouts), forward wrapper
# ---------------------------------------------------------------------------
class AdapterConfig:
    project_hidden_size = 32   # hidden size of the host model
    adapter_size = 16          # bottleneck hidden size
    num_hidden_layers = 2
    num_attention_heads = 2
    intermediate_size = 32


def _init_linear(key, fan_in, fan_out):
    w = jax.random.normal(key, (fan_in, fan_out), jnp.float32) * 0.02
    b = jnp.zeros((1, fan_out), jnp.float32)
    return w, b


def init_adapter_params(key, cfg):
    P, A, I = cfg.project_hidden_size, cfg.adapter_size, cfg.intermediate_size
    L, H = cfg.num_hidden_layers, cfg.num_attention_heads
    D = A // H
    bf16 = jnp.bfloat16
    keys = jax.random.split(key, 2 + L)

    params = {}
    w, b = _init_linear(keys[0], P, A)
    params["down_w"], params["down_b"] = w.astype(bf16), b         # (P,A) bf16 / (1,A) f32
    w, b = _init_linear(keys[1], A, P)
    params["up_w"], params["up_b"] = w.astype(bf16), b             # (A,P) bf16 / (1,P) f32

    def head_split_out(w):     # (A_in, A_out=H*D) -> (H, A_in, D)
        return w.reshape(w.shape[0], H, D).transpose(1, 0, 2)

    q_w, q_b, k_w, k_b, v_w, v_b = [], [], [], [], [], []
    ao_w, ao_b, ao_ln_g, ao_ln_b = [], [], [], []
    i_w, i_b, o_w, o_b, o_ln_g, o_ln_b = [], [], [], [], [], []
    for l in range(L):
        lk = jax.random.split(keys[2 + l], 6)
        w, b = _init_linear(lk[0], A, A)
        q_w.append(head_split_out(w)); q_b.append(b.reshape(H, 1, D))
        w, b = _init_linear(lk[1], A, A)
        k_w.append(head_split_out(w)); k_b.append(b.reshape(H, 1, D))
        w, b = _init_linear(lk[2], A, A)
        v_w.append(head_split_out(w)); v_b.append(b.reshape(H, 1, D))
        w, b = _init_linear(lk[3], A, A)
        ao_w.append(w.reshape(H, D, A)); ao_b.append(b)            # per-head input slab
        ao_ln_g.append(jnp.ones((1, A), jnp.float32))
        ao_ln_b.append(jnp.zeros((1, A), jnp.float32))
        w, b = _init_linear(lk[4], A, I); i_w.append(w); i_b.append(b)
        w, b = _init_linear(lk[5], I, A); o_w.append(w); o_b.append(b)
        o_ln_g.append(jnp.ones((1, A), jnp.float32))
        o_ln_b.append(jnp.zeros((1, A), jnp.float32))

    params["q_w"] = jnp.stack(q_w).astype(bf16)     # (L, H, A, D)
    params["q_b"] = jnp.stack(q_b)                  # (L, H, 1, D)
    params["k_w"] = jnp.stack(k_w).astype(bf16)
    params["k_b"] = jnp.stack(k_b)
    params["v_w"] = jnp.stack(v_w).astype(bf16)
    params["v_b"] = jnp.stack(v_b)
    params["ao_w"] = jnp.stack(ao_w).astype(bf16)   # (L, H, D, A)
    params["ao_b"] = jnp.stack(ao_b)                # (L, 1, A)
    params["ao_ln_g"] = jnp.stack(ao_ln_g)
    params["ao_ln_b"] = jnp.stack(ao_ln_b)
    params["i_w"] = jnp.stack(i_w).astype(bf16)     # (L, A, I)
    params["i_b"] = jnp.stack(i_b)                  # (L, 1, I)
    params["o_w"] = jnp.stack(o_w).astype(bf16)     # (L, I, A)
    params["o_b"] = jnp.stack(o_b)                  # (L, 1, A)
    params["o_ln_g"] = jnp.stack(o_ln_g)
    params["o_ln_b"] = jnp.stack(o_ln_b)
    return params


def adapter_forward(params, cfg, hidden_states):
    """hidden_states: (B, S, project_hidden_size) -> same shape. One pallas_call, grid=(B,)."""
    B, S, P = hidden_states.shape
    kern = functools.partial(
        _adapter_kernel,
        num_layers=cfg.num_hidden_layers,
        num_heads=cfg.num_attention_heads,
        head_dim=cfg.adapter_size // cfg.num_attention_heads,
    )
    weight_args = (
        params["down_w"], params["down_b"],
        params["q_w"], params["q_b"], params["k_w"], params["k_b"],
        params["v_w"], params["v_b"],
        params["ao_w"], params["ao_b"], params["ao_ln_g"], params["ao_ln_b"],
        params["i_w"], params["i_b"], params["o_w"], params["o_b"],
        params["o_ln_g"], params["o_ln_b"],
        params["up_w"], params["up_b"],
    )
    resident = pl.BlockSpec(memory_space=pltpu.MemorySpace.VMEM)   # whole array, VMEM-resident
    per_batch = pl.BlockSpec((1, S, P), lambda b: (b, 0, 0))

    # TODO(synk): add input_output_aliases={0: 0} when the caller donates hidden_states
    # (kept un-aliased here because the self-test reads hidden_states again afterwards).
    out = pl.pallas_call(
        kern,
        out_shape=jax.ShapeDtypeStruct((B, S, P), hidden_states.dtype),
        grid=(B,),
        in_specs=[per_batch] + [resident] * len(weight_args),
        out_specs=per_batch,
        compiler_params=pltpu.CompilerParams(
            dimension_semantics=("parallel",)),    # v7x: shard batches over the 2 TCs
    )(hidden_states, *weight_args)
    return out


# ---------------------------------------------------------------------------
# Pure-JAX reference (same bf16-operand / f32-accumulate matmul policy)
# ---------------------------------------------------------------------------
def adapter_reference(params, cfg, hidden_states):
    f32, bf16 = jnp.float32, jnp.bfloat16
    A, H = cfg.adapter_size, cfg.num_attention_heads
    D = A // H

    def ln(h, g, b):
        mean = jnp.mean(h, axis=-1, keepdims=True)
        var = jnp.mean(jnp.square(h - mean), axis=-1, keepdims=True)
        return (h - mean) / jnp.sqrt(var + 1e-12) * g + b

    def mm(a, w):
        return jnp.dot(a.astype(bf16), w, preferred_element_type=f32)

    x = mm(hidden_states, params["down_w"]) + params["down_b"]     # (B, S, A)
    for l in range(cfg.num_hidden_layers):
        xb = x.astype(bf16)
        q = jnp.einsum('bsa,had->bhsd', xb, params["q_w"][l],
                       preferred_element_type=f32) + params["q_b"][l]
        k = jnp.einsum('bsa,had->bhsd', xb, params["k_w"][l],
                       preferred_element_type=f32) + params["k_b"][l]
        v = jnp.einsum('bsa,had->bhsd', xb, params["v_w"][l],
                       preferred_element_type=f32) + params["v_b"][l]
        s = jnp.einsum('bhqd,bhkd->bhqk', q.astype(bf16), k.astype(bf16),
                       preferred_element_type=f32) / math.sqrt(D)
        p = jax.nn.softmax(s, axis=-1)
        ctx = jnp.einsum('bhqk,bhkd->bhqd', p.astype(bf16), v.astype(bf16),
                         preferred_element_type=f32)
        attn_dense = jnp.einsum('bhqd,hda->bqa', ctx.astype(bf16), params["ao_w"][l],
                                preferred_element_type=f32) + params["ao_b"][l]
        attn_out = ln(attn_dense + x, params["ao_ln_g"][l], params["ao_ln_b"][l])
        inter = jax.nn.gelu(mm(attn_out, params["i_w"][l]) + params["i_b"][l],
                            approximate=True)
        ffn = mm(inter, params["o_w"][l]) + params["o_b"][l]
        x = ln(ffn + attn_out, params["o_ln_g"][l], params["o_ln_b"][l])
    up = mm(x, params["up_w"]) + params["up_b"]
    return hidden_states + up


# ---------------------------------------------------------------------------
if __name__ == "__main__":
    cfg = AdapterConfig()
    key = jax.random.PRNGKey(0)
    k_param, k_input = jax.random.split(key)

    params = init_adapter_params(k_param, cfg)

    B, S = 2, 8
    hidden_states = jax.random.normal(
        k_input, (B, S, cfg.project_hidden_size), jnp.float32)

    fwd = jax.jit(functools.partial(adapter_forward, params, cfg))
    out = fwd(hidden_states)
    jax.block_until_ready(out)

    assert out.shape == hidden_states.shape
    assert out.dtype == hidden_states.dtype
    assert bool(jnp.all(jnp.isfinite(out)))

    ref = adapter_reference(params, cfg, hidden_states)
    max_err = float(jnp.max(jnp.abs(out - ref)))
    assert bool(jnp.allclose(out, ref, atol=1e-2, rtol=1e-2)), max_err

    print("KERNEL_OK")
</pallas_src>

<mosaic_0001>
module attributes {stable_mosaic.version = 11 : i64} {
  func.func @_adapter_kernel(%arg0: i32, %arg1: memref<1x8x32xf32, #tpu.memory_space<vmem>>, %arg2: memref<32x16xbf16, #tpu.memory_space<vmem>>, %arg3: memref<1x16xf32, #tpu.memory_space<vmem>>, %arg4: memref<2x2x16x8xbf16, #tpu.memory_space<vmem>>, %arg5: memref<2x2x1x8xf32, #tpu.memory_space<vmem>>, %arg6: memref<2x2x16x8xbf16, #tpu.memory_space<vmem>>, %arg7: memref<2x2x1x8xf32, #tpu.memory_space<vmem>>, %arg8: memref<2x2x16x8xbf16, #tpu.memory_space<vmem>>, %arg9: memref<2x2x1x8xf32, #tpu.memory_space<vmem>>, %arg10: memref<2x2x8x16xbf16, #tpu.memory_space<vmem>>, %arg11: memref<2x1x16xf32, #tpu.memory_space<vmem>>, %arg12: memref<2x1x16xf32, #tpu.memory_space<vmem>>, %arg13: memref<2x1x16xf32, #tpu.memory_space<vmem>>, %arg14: memref<2x16x32xbf16, #tpu.memory_space<vmem>>, %arg15: memref<2x1x32xf32, #tpu.memory_space<vmem>>, %arg16: memref<2x32x16xbf16, #tpu.memory_space<vmem>>, %arg17: memref<2x1x16xf32, #tpu.memory_space<vmem>>, %arg18: memref<2x1x16xf32, #tpu.memory_space<vmem>>, %arg19: memref<2x1x16xf32, #tpu.memory_space<vmem>>, %arg20: memref<16x32xbf16, #tpu.memory_space<vmem>>, %arg21: memref<1x32xf32, #tpu.memory_space<vmem>>, %arg22: memref<1x8x32xf32, #tpu.memory_space<vmem>>) attributes {dimension_semantics = [#tpu.dimension_semantics<parallel>], iteration_bounds = array<i64: 2>, scalar_prefetch = 0 : i64, scratch_operands = 0 : i64, tpu.core_type = #tpu.core_type<tc>, window_params = [{transform_indices = @transform_0, window_bounds = array<i64: 1, 8, 32>}, {pipeline_mode = #tpu.pipeline_mode<synchronous>, transform_indices = @transform_1, window_bounds = array<i64: 32, 16>}, {pipeline_mode = #tpu.pipeline_mode<synchronous>, transform_indices = @transform_2, window_bounds = array<i64: 1, 16>}, {pipeline_mode = #tpu.pipeline_mode<synchronous>, transform_indices = @transform_3, window_bounds = array<i64: 2, 2, 16, 8>}, {pipeline_mode = #tpu.pipeline_mode<synchronous>, transform_indices = @transform_4, window_bounds = array<i64: 2, 2, 1, 8>}, {pipeline_mode = #tpu.pipeline_mode<synchronous>, transform_indices = @transform_5, window_bounds = array<i64: 2, 2, 16, 8>}, {pipeline_mode = #tpu.pipeline_mode<synchronous>, transform_indices = @transform_6, window_bounds = array<i64: 2, 2, 1, 8>}, {pipeline_mode = #tpu.pipeline_mode<synchronous>, transform_indices = @transform_7, window_bounds = array<i64: 2, 2, 16, 8>}, {pipeline_mode = #tpu.pipeline_mode<synchronous>, transform_indices = @transform_8, window_bounds = array<i64: 2, 2, 1, 8>}, {pipeline_mode = #tpu.pipeline_mode<synchronous>, transform_indices = @transform_9, window_bounds = array<i64: 2, 2, 8, 16>}, {pipeline_mode = #tpu.pipeline_mode<synchronous>, transform_indices = @transform_10, window_bounds = array<i64: 2, 1, 16>}, {pipeline_mode = #tpu.pipeline_mode<synchronous>, transform_indices = @transform_11, window_bounds = array<i64: 2, 1, 16>}, {pipeline_mode = #tpu.pipeline_mode<synchronous>, transform_indices = @transform_12, window_bounds = array<i64: 2, 1, 16>}, {pipeline_mode = #tpu.pipeline_mode<synchronous>, transform_indices = @transform_13, window_bounds = array<i64: 2, 16, 32>}, {pipeline_mode = #tpu.pipeline_mode<synchronous>, transform_indices = @transform_14, window_bounds = array<i64: 2, 1, 32>}, {pipeline_mode = #tpu.pipeline_mode<synchronous>, transform_indices = @transform_15, window_bounds = array<i64: 2, 32, 16>}, {pipeline_mode = #tpu.pipeline_mode<synchronous>, transform_indices = @transform_16, window_bounds = array<i64: 2, 1, 16>}, {pipeline_mode = #tpu.pipeline_mode<synchronous>, transform_indices = @transform_17, window_bounds = array<i64: 2, 1, 16>}, {pipeline_mode = #tpu.pipeline_mode<synchronous>, transform_indices = @transform_18, window_bounds = array<i64: 2, 1, 16>}, {pipeline_mode = #tpu.pipeline_mode<synchronous>, transform_indices = @transform_19, window_bounds = array<i64: 16, 32>}, {pipeline_mode = #tpu.pipeline_mode<synchronous>, transform_indices = @transform_20, window_bounds = array<i64: 1, 32>}, {transform_indices = @transform_21, window_bounds = array<i64: 1, 8, 32>}]} {
    %c0 = arith.constant 0 : index
    %c0_0 = arith.constant 0 : index
    %c0_1 = arith.constant 0 : index
    %0 = vector.load %arg1[%c0, %c0_0, %c0_1] : memref<1x8x32xf32, #tpu.memory_space<vmem>>, vector<1x8x32xf32>
    %1 = vector.shape_cast %0 : vector<1x8x32xf32> to vector<8x32xf32>
    %c0_2 = arith.constant 0 : index
    %c0_3 = arith.constant 0 : index
    %2 = vector.load %arg2[%c0_2, %c0_3] : memref<32x16xbf16, #tpu.memory_space<vmem>>, vector<32x16xbf16>
    %3 = arith.truncf %1 : vector<8x32xf32> to vector<8x32xbf16>
    %cst = arith.constant dense<0.000000e+00> : vector<8x16xf32>
    %4 = tpu.matmul %3, %2, %cst {dimension_numbers = #tpu.dot_dimension_numbers<[1], [0], [0], [1], [0, 0, 1, 1], [], []>} : vector<8x32xbf16>, vector<32x16xbf16>, vector<8x16xf32> -> vector<8x16xf32>
    %c0_4 = arith.constant 0 : index
    %c0_5 = arith.constant 0 : index
    %5 = vector.load %arg3[%c0_4, %c0_5] : memref<1x16xf32, #tpu.memory_space<vmem>>, vector<1x16xf32>
    %6 = vector.broadcast %5 : vector<1x16xf32> to vector<8x16xf32>
    %7 = arith.addf %4, %6 : vector<8x16xf32>
    %8 = arith.truncf %7 : vector<8x16xf32> to vector<8x16xbf16>
    %9 = vector.shape_cast %8 : vector<8x16xbf16> to vector<1x8x16xbf16>
    %10 = vector.broadcast %9 : vector<1x8x16xbf16> to vector<2x8x16xbf16>
    %c0_6 = arith.constant 0 : index
    %c0_7 = arith.constant 0 : index
    %c0_8 = arith.constant 0 : index
    %c0_9 = arith.constant 0 : index
    %11 = vector.load %arg4[%c0_6, %c0_7, %c0_8, %c0_9] : memref<2x2x16x8xbf16, #tpu.memory_space<vmem>>, vector<1x2x16x8xbf16>
    %12 = vector.shape_cast %11 : vector<1x2x16x8xbf16> to vector<2x16x8xbf16>
    "tpu.trace_start"() <{level = 10 : i32, message = "hsa,had->hsd"}> : () -> ()
    %cst_10 = arith.constant dense<0.000000e+00> : vector<2x8x8xf32>
    %13 = tpu.matmul %10, %12, %cst_10 {dimension_numbers = #tpu.dot_dimension_numbers<[2], [1], [1], [2], [0, 0, 0, 1, 1, 2], [0], [0]>} : vector<2x8x16xbf16>, vector<2x16x8xbf16>, vector<2x8x8xf32> -> vector<2x8x8xf32>
    "tpu.trace_stop"() : () -> ()
    %c0_11 = arith.constant 0 : index
    %c0_12 = arith.constant 0 : index
    %c0_13 = arith.constant 0 : index
    %c0_14 = arith.constant 0 : index
    %14 = vector.load %arg5[%c0_11, %c0_12, %c0_13, %c0_14] : memref<2x2x1x8xf32, #tpu.memory_space<vmem>>, vector<1x2x1x8xf32>
    %15 = vector.shape_cast %14 : vector<1x2x1x8xf32> to vector<2x1x8xf32>
    %16 = vector.broadcast %15 : vector<2x1x8xf32> to vector<2x8x8xf32>
    %17 = arith.addf %13, %16 : vector<2x8x8xf32>
    %cst_15 = arith.constant 0.353553385 : f32
    %18 = vector.broadcast %cst_15 : f32 to vector<2x8x8xf32>
    %19 = arith.mulf %17, %18 : vector<2x8x8xf32>
    %c0_16 = arith.constant 0 : index
    %c0_17 = arith.constant 0 : index
    %c0_18 = arith.constant 0 : index
    %c0_19 = arith.constant 0 : index
    %20 = vector.load %arg6[%c0_16, %c0_17, %c0_18, %c0_19] : memref<2x2x16x8xbf16, #tpu.memory_space<vmem>>, vector<1x2x16x8xbf16>
    %21 = vector.shape_cast %20 : vector<1x2x16x8xbf16> to vector<2x16x8xbf16>
    "tpu.trace_start"() <{level = 10 : i32, message = "hsa,had->hsd"}> : () -> ()
    %cst_20 = arith.constant dense<0.000000e+00> : vector<2x8x8xf32>
    %22 = tpu.matmul %10, %21, %cst_20 {dimension_numbers = #tpu.dot_dimension_numbers<[2], [1], [1], [2], [0, 0, 0, 1, 1, 2], [0], [0]>} : vector<2x8x16xbf16>, vector<2x16x8xbf16>, vector<2x8x8xf32> -> vector<2x8x8xf32>
    "tpu.trace_stop"() : () -> ()
    %c0_21 = arith.constant 0 : index
    %c0_22 = arith.constant 0 : index
    %c0_23 = arith.constant 0 : index
    %c0_24 = arith.constant 0 : index
    %23 = vector.load %arg7[%c0_21, %c0_22, %c0_23, %c0_24] : memref<2x2x1x8xf32, #tpu.memory_space<vmem>>, vector<1x2x1x8xf32>
    %24 = vector.shape_cast %23 : vector<1x2x1x8xf32> to vector<2x1x8xf32>
    %25 = vector.broadcast %24 : vector<2x1x8xf32> to vector<2x8x8xf32>
    %26 = arith.addf %22, %25 : vector<2x8x8xf32>
    %c0_25 = arith.constant 0 : index
    %c0_26 = arith.constant 0 : index
    %c0_27 = arith.constant 0 : index
    %c0_28 = arith.constant 0 : index
    %27 = vector.load %arg8[%c0_25, %c0_26, %c0_27, %c0_28] : memref<2x2x16x8xbf16, #tpu.memory_space<vmem>>, vector<1x2x16x8xbf16>
    %28 = vector.shape_cast %27 : vector<1x2x16x8xbf16> to vector<2x16x8xbf16>
    "tpu.trace_start"() <{level = 10 : i32, message = "hsa,had->hsd"}> : () -> ()
    %cst_29 = arith.constant dense<0.000000e+00> : vector<2x8x8xf32>
    %29 = tpu.matmul %10, %28, %cst_29 {dimension_numbers = #tpu.dot_dimension_numbers<[2], [1], [1], [2], [0, 0, 0, 1, 1, 2], [0], [0]>} : vector<2x8x16xbf16>, vector<2x16x8xbf16>, vector<2x8x8xf32> -> vector<2x8x8xf32>
    "tpu.trace_stop"() : () -> ()
    %c0_30 = arith.constant 0 : index
    %c0_31 = arith.constant 0 : index
    %c0_32 = arith.constant 0 : index
    %c0_33 = arith.constant 0 : index
    %30 = vector.load %arg9[%c0_30, %c0_31, %c0_32, %c0_33] : memref<2x2x1x8xf32, #tpu.memory_space<vmem>>, vector<1x2x1x8xf32>
    %31 = vector.shape_cast %30 : vector<1x2x1x8xf32> to vector<2x1x8xf32>
    %32 = vector.broadcast %31 : vector<2x1x8xf32> to vector<2x8x8xf32>
    %33 = arith.addf %29, %32 : vector<2x8x8xf32>
    %34 = arith.truncf %19 : vector<2x8x8xf32> to vector<2x8x8xbf16>
    %35 = arith.truncf %26 : vector<2x8x8xf32> to vector<2x8x8xbf16>
    "tpu.trace_start"() <{level = 10 : i32, message = "hqd,hkd->hqk"}> : () -> ()
    %cst_34 = arith.constant dense<0.000000e+00> : vector<2x8x8xf32>
    %36 = tpu.matmul %34, %35, %cst_34 {dimension_numbers = #tpu.dot_dimension_numbers<[2], [2], [1], [1], [0, 0, 0, 1, 1, 1], [0], [0]>} : vector<2x8x8xbf16>, vector<2x8x8xbf16>, vector<2x8x8xf32> -> vector<2x8x8xf32>
    "tpu.trace_stop"() : () -> ()
    %cst_35 = arith.constant dense<0xFF800000> : vector<2x8xf32>
    %37 = vector.multi_reduction <maximumf>, %36, %cst_35 [2] : vector<2x8x8xf32> to vector<2x8xf32>
    %38 = vector.shape_cast %37 : vector<2x8xf32> to vector<2x8x1xf32>
    %39 = vector.broadcast %38 : vector<2x8x1xf32> to vector<2x8x8xf32>
    %40 = arith.subf %36, %39 : vector<2x8x8xf32>
    %41 = math.exp %40 : vector<2x8x8xf32>
    %cst_36 = arith.constant dense<0.000000e+00> : vector<2x8xf32>
    %42 = vector.multi_reduction <add>, %41, %cst_36 [2] : vector<2x8x8xf32> to vector<2x8xf32>
    %43 = vector.shape_cast %42 : vector<2x8xf32> to vector<2x8x1xf32>
    %44 = tpu.reciprocal %43 {approx = true} : vector<2x8x1xf32> -> vector<2x8x1xf32>
    %45 = vector.broadcast %44 : vector<2x8x1xf32> to vector<2x8x8xf32>
    %46 = arith.mulf %41, %45 : vector<2x8x8xf32>
    %47 = arith.truncf %46 : vector<2x8x8xf32> to vector<2x8x8xbf16>
    %48 = arith.truncf %33 : vector<2x8x8xf32> to vector<2x8x8xbf16>
    "tpu.trace_start"() <{level = 10 : i32, message = "hqk,hkd->hqd"}> : () -> ()
    %cst_37 = arith.constant dense<0.000000e+00> : vector<2x8x8xf32>
    %49 = tpu.matmul %47, %48, %cst_37 {dimension_numbers = #tpu.dot_dimension_numbers<[2], [1], [1], [2], [0, 0, 0, 1, 1, 2], [0], [0]>} : vector<2x8x8xbf16>, vector<2x8x8xbf16>, vector<2x8x8xf32> -> vector<2x8x8xf32>
    "tpu.trace_stop"() : () -> ()
    %50 = arith.truncf %49 : vector<2x8x8xf32> to vector<2x8x8xbf16>
    %c0_38 = arith.constant 0 : index
    %c0_39 = arith.constant 0 : index
    %c0_40 = arith.constant 0 : index
    %c0_41 = arith.constant 0 : index
    %51 = vector.load %arg10[%c0_38, %c0_39, %c0_40, %c0_41] : memref<2x2x8x16xbf16, #tpu.memory_space<vmem>>, vector<1x2x8x16xbf16>
    %52 = vector.shape_cast %51 : vector<1x2x8x16xbf16> to vector<2x8x16xbf16>
    "tpu.trace_start"() <{level = 10 : i32, message = "hqd,hda->hqa"}> : () -> ()
    %cst_42 = arith.constant dense<0.000000e+00> : vector<2x8x16xf32>
    %53 = tpu.matmul %50, %52, %cst_42 {dimension_numbers = #tpu.dot_dimension_numbers<[2], [1], [1], [2], [0, 0, 0, 1, 1, 2], [0], [0]>} : vector<2x8x8xbf16>, vector<2x8x16xbf16>, vector<2x8x16xf32> -> vector<2x8x16xf32>
    "tpu.trace_stop"() : () -> ()
    %cst_43 = arith.constant dense<0.000000e+00> : vector<8x16xf32>
    %54 = vector.multi_reduction <add>, %53, %cst_43 [0] : vector<2x8x16xf32> to vector<8x16xf32>
    %c0_44 = arith.constant 0 : index
    %c0_45 = arith.constant 0 : index
    %c0_46 = arith.constant 0 : index
    %55 = vector.load %arg11[%c0_44, %c0_45, %c0_46] : memref<2x1x16xf32, #tpu.memory_space<vmem>>, vector<1x1x16xf32>
    %56 = vector.shape_cast %55 : vector<1x1x16xf32> to vector<1x16xf32>
    %57 = vector.broadcast %56 : vector<1x16xf32> to vector<8x16xf32>
    %58 = arith.addf %54, %57 : vector<8x16xf32>
    %59 = arith.addf %58, %7 : vector<8x16xf32>
    %c0_47 = arith.constant 0 : index
    %c0_48 = arith.constant 0 : index
    %c0_49 = arith.constant 0 : index
    %60 = vector.load %arg12[%c0_47, %c0_48, %c0_49] : memref<2x1x16xf32, #tpu.memory_space<vmem>>, vector<1x1x16xf32>
    %61 = vector.shape_cast %60 : vector<1x1x16xf32> to vector<1x16xf32>
    %c0_50 = arith.constant 0 : index
    %c0_51 = arith.constant 0 : index
    %c0_52 = arith.constant 0 : index
    %62 = vector.load %arg13[%c0_50, %c0_51, %c0_52] : memref<2x1x16xf32, #tpu.memory_space<vmem>>, vector<1x1x16xf32>
    %63 = vector.shape_cast %62 : vector<1x1x16xf32> to vector<1x16xf32>
    %cst_53 = arith.constant dense<0.000000e+00> : vector<8xf32>
    %64 = vector.multi_reduction <add>, %59, %cst_53 [1] : vector<8x16xf32> to vector<8xf32>
    %65 = vector.shape_cast %64 : vector<8xf32> to vector<8x1xf32>
    %cst_54 = arith.constant 1.600000e+01 : f32
    %66 = vector.broadcast %cst_54 : f32 to vector<8x1xf32>
    %67 = arith.divf %65, %66 : vector<8x1xf32>
    %68 = vector.broadcast %67 : vector<8x1xf32> to vector<8x16xf32>
    %69 = arith.subf %59, %68 : vector<8x16xf32>
    %70 = arith.mulf %69, %69 : vector<8x16xf32>
    %cst_55 = arith.constant dense<0.000000e+00> : vector<8xf32>
    %71 = vector.multi_reduction <add>, %70, %cst_55 [1] : vector<8x16xf32> to vector<8xf32>
    %72 = vector.shape_cast %71 : vector<8xf32> to vector<8x1xf32>
    %cst_56 = arith.constant 1.600000e+01 : f32
    %73 = vector.broadcast %cst_56 : f32 to vector<8x1xf32>
    %74 = arith.divf %72, %73 : vector<8x1xf32>
    %75 = vector.broadcast %67 : vector<8x1xf32> to vector<8x16xf32>
    %76 = arith.subf %59, %75 : vector<8x16xf32>
    %cst_57 = arith.constant 9.99999996E-13 : f32
    %77 = vector.broadcast %cst_57 : f32 to vector<8x1xf32>
    %78 = arith.addf %74, %77 : vector<8x1xf32>
    %79 = math.rsqrt %78 : vector<8x1xf32>
    %80 = vector.broadcast %79 : vector<8x1xf32> to vector<8x16xf32>
    %81 = arith.mulf %76, %80 : vector<8x16xf32>
    %82 = vector.broadcast %61 : vector<1x16xf32> to vector<8x16xf32>
    %83 = arith.mulf %81, %82 : vector<8x16xf32>
    %84 = vector.broadcast %63 : vector<1x16xf32> to vector<8x16xf32>
    %85 = arith.addf %83, %84 : vector<8x16xf32>
    %c0_58 = arith.constant 0 : index
    %c0_59 = arith.constant 0 : index
    %c0_60 = arith.constant 0 : index
    %86 = vector.load %arg14[%c0_58, %c0_59, %c0_60] : memref<2x16x32xbf16, #tpu.memory_space<vmem>>, vector<1x16x32xbf16>
    %87 = vector.shape_cast %86 : vector<1x16x32xbf16> to vector<16x32xbf16>
    %88 = arith.truncf %85 : vector<8x16xf32> to vector<8x16xbf16>
    %cst_61 = arith.constant dense<0.000000e+00> : vector<8x32xf32>
    %89 = tpu.matmul %88, %87, %cst_61 {dimension_numbers = #tpu.dot_dimension_numbers<[1], [0], [0], [1], [0, 0, 1, 1], [], []>} : vector<8x16xbf16>, vector<16x32xbf16>, vector<8x32xf32> -> vector<8x32xf32>
    %c0_62 = arith.constant 0 : index
    %c0_63 = arith.constant 0 : index
    %c0_64 = arith.constant 0 : index
    %90 = vector.load %arg15[%c0_62, %c0_63, %c0_64] : memref<2x1x32xf32, #tpu.memory_space<vmem>>, vector<1x1x32xf32>
    %91 = vector.shape_cast %90 : vector<1x1x32xf32> to vector<1x32xf32>
    %92 = vector.broadcast %91 : vector<1x32xf32> to vector<8x32xf32>
    %93 = arith.addf %89, %92 : vector<8x32xf32>
    %94 = arith.mulf %93, %93 : vector<8x32xf32>
    %95 = arith.mulf %93, %94 : vector<8x32xf32>
    %cst_65 = arith.constant 4.471500e-02 : f32
    %96 = vector.broadcast %cst_65 : f32 to vector<8x32xf32>
    %97 = arith.mulf %96, %95 : vector<8x32xf32>
    %98 = arith.addf %93, %97 : vector<8x32xf32>
    %cst_66 = arith.constant 0.797884583 : f32
    %99 = vector.broadcast %cst_66 : f32 to vector<8x32xf32>
    %100 = arith.mulf %99, %98 : vector<8x32xf32>
    %101 = math.tanh %100 : vector<8x32xf32>
    %cst_67 = arith.constant 1.000000e+00 : f32
    %102 = vector.broadcast %cst_67 : f32 to vector<8x32xf32>
    %103 = arith.addf %102, %101 : vector<8x32xf32>
    %cst_68 = arith.constant 5.000000e-01 : f32
    %104 = vector.broadcast %cst_68 : f32 to vector<8x32xf32>
    %105 = arith.mulf %104, %103 : vector<8x32xf32>
    %106 = arith.mulf %93, %105 : vector<8x32xf32>
    %c0_69 = arith.constant 0 : index
    %c0_70 = arith.constant 0 : index
    %c0_71 = arith.constant 0 : index
    %107 = vector.load %arg16[%c0_69, %c0_70, %c0_71] : memref<2x32x16xbf16, #tpu.memory_space<vmem>>, vector<1x32x16xbf16>
    %108 = vector.shape_cast %107 : vector<1x32x16xbf16> to vector<32x16xbf16>
    %109 = arith.truncf %106 : vector<8x32xf32> to vector<8x32xbf16>
    %cst_72 = arith.constant dense<0.000000e+00> : vector<8x16xf32>
    %110 = tpu.matmul %109, %108, %cst_72 {dimension_numbers = #tpu.dot_dimension_numbers<[1], [0], [0], [1], [0, 0, 1, 1], [], []>} : vector<8x32xbf16>, vector<32x16xbf16>, vector<8x16xf32> -> vector<8x16xf32>
    %c0_73 = arith.constant 0 : index
    %c0_74 = arith.constant 0 : index
    %c0_75 = arith.constant 0 : index
    %111 = vector.load %arg17[%c0_73, %c0_74, %c0_75] : memref<2x1x16xf32, #tpu.memory_space<vmem>>, vector<1x1x16xf32>
    %112 = vector.shape_cast %111 : vector<1x1x16xf32> to vector<1x16xf32>
    %113 = vector.broadcast %112 : vector<1x16xf32> to vector<8x16xf32>
    %114 = arith.addf %110, %113 : vector<8x16xf32>
    %115 = arith.addf %114, %85 : vector<8x16xf32>
    %c0_76 = arith.constant 0 : index
    %c0_77 = arith.constant 0 : index
    %c0_78 = arith.constant 0 : index
    %116 = vector.load %arg18[%c0_76, %c0_77, %c0_78] : memref<2x1x16xf32, #tpu.memory_space<vmem>>, vector<1x1x16xf32>
    %117 = vector.shape_cast %116 : vector<1x1x16xf32> to vector<1x16xf32>
    %c0_79 = arith.constant 0 : index
    %c0_80 = arith.constant 0 : index
    %c0_81 = arith.constant 0 : index
    %118 = vector.load %arg19[%c0_79, %c0_80, %c0_81] : memref<2x1x16xf32, #tpu.memory_space<vmem>>, vector<1x1x16xf32>
    %119 = vector.shape_cast %118 : vector<1x1x16xf32> to vector<1x16xf32>
    %cst_82 = arith.constant dense<0.000000e+00> : vector<8xf32>
    %120 = vector.multi_reduction <add>, %115, %cst_82 [1] : vector<8x16xf32> to vector<8xf32>
    %121 = vector.shape_cast %120 : vector<8xf32> to vector<8x1xf32>
    %cst_83 = arith.constant 1.600000e+01 : f32
    %122 = vector.broadcast %cst_83 : f32 to vector<8x1xf32>
    %123 = arith.divf %121, %122 : vector<8x1xf32>
    %124 = vector.broadcast %123 : vector<8x1xf32> to vector<8x16xf32>
    %125 = arith.subf %115, %124 : vector<8x16xf32>
    %126 = arith.mulf %125, %125 : vector<8x16xf32>
    %cst_84 = arith.constant dense<0.000000e+00> : vector<8xf32>
    %127 = vector.multi_reduction <add>, %126, %cst_84 [1] : vector<8x16xf32> to vector<8xf32>
    %128 = vector.shape_cast %127 : vector<8xf32> to vector<8x1xf32>
    %cst_85 = arith.constant 1.600000e+01 : f32
    %129 = vector.broadcast %cst_85 : f32 to vector<8x1xf32>
    %130 = arith.divf %128, %129 : vector<8x1xf32>
    %131 = vector.broadcast %123 : vector<8x1xf32> to vector<8x16xf32>
    %132 = arith.subf %115, %131 : vector<8x16xf32>
    %cst_86 = arith.constant 9.99999996E-13 : f32
    %133 = vector.broadcast %cst_86 : f32 to vector<8x1xf32>
    %134 = arith.addf %130, %133 : vector<8x1xf32>
    %135 = math.rsqrt %134 : vector<8x1xf32>
    %136 = vector.broadcast %135 : vector<8x1xf32> to vector<8x16xf32>
    %137 = arith.mulf %132, %136 : vector<8x16xf32>
    %138 = vector.broadcast %117 : vector<1x16xf32> to vector<8x16xf32>
    %139 = arith.mulf %137, %138 : vector<8x16xf32>
    %140 = vector.broadcast %119 : vector<1x16xf32> to vector<8x16xf32>
    %141 = arith.addf %139, %140 : vector<8x16xf32>
    %142 = arith.truncf %141 : vector<8x16xf32> to vector<8x16xbf16>
    %143 = vector.shape_cast %142 : vector<8x16xbf16> to vector<1x8x16xbf16>
    %144 = vector.broadcast %143 : vector<1x8x16xbf16> to vector<2x8x16xbf16>
    %c1 = arith.constant 1 : index
    %c0_87 = arith.constant 0 : index
    %c0_88 = arith.constant 0 : index
    %c0_89 = arith.constant 0 : index
    %145 = vector.load %arg4[%c1, %c0_87, %c0_88, %c0_89] : memref<2x2x16x8xbf16, #tpu.memory_space<vmem>>, vector<1x2x16x8xbf16>
    %146 = vector.shape_cast %145 : vector<1x2x16x8xbf16> to vector<2x16x8xbf16>
    "tpu.trace_start"() <{level = 10 : i32, message = "hsa,had->hsd"}> : () -> ()
    %cst_90 = arith.constant dense<0.000000e+00> : vector<2x8x8xf32>
    %147 = tpu.matmul %144, %146, %cst_90 {dimension_numbers = #tpu.dot_dimension_numbers<[2], [1], [1], [2], [0, 0, 0, 1, 1, 2], [0], [0]>} : vector<2x8x16xbf16>, vector<2x16x8xbf16>, vector<2x8x8xf32> -> vector<2x8x8xf32>
    "tpu.trace_stop"() : () -> ()
    %c1_91 = arith.constant 1 : index
    %c0_92 = arith.constant 0 : index
    %c0_93 = arith.constant 0 : index
    %c0_94 = arith.constant 0 : index
    %148 = vector.load %arg5[%c1_91, %c0_92, %c0_93, %c0_94] : memref<2x2x1x8xf32, #tpu.memory_space<vmem>>, vector<1x2x1x8xf32>
    %149 = vector.shape_cast %148 : vector<1x2x1x8xf32> to vector<2x1x8xf32>
    %150 = vector.broadcast %149 : vector<2x1x8xf32> to vector<2x8x8xf32>
    %151 = arith.addf %147, %150 : vector<2x8x8xf32>
    %cst_95 = arith.constant 0.353553385 : f32
    %152 = vector.broadcast %cst_95 : f32 to vector<2x8x8xf32>
    %153 = arith.mulf %151, %152 : vector<2x8x8xf32>
    %c1_96 = arith.constant 1 : index
    %c0_97 = arith.constant 0 : index
    %c0_98 = arith.constant 0 : index
    %c0_99 = arith.constant 0 : index
    %154 = vector.load %arg6[%c1_96, %c0_97, %c0_98, %c0_99] : memref<2x2x16x8xbf16, #tpu.memory_space<vmem>>, vector<1x2x16x8xbf16>
    %155 = vector.shape_cast %154 : vector<1x2x16x8xbf16> to vector<2x16x8xbf16>
    "tpu.trace_start"() <{level = 10 : i32, message = "hsa,had->hsd"}> : () -> ()
    %cst_100 = arith.constant dense<0.000000e+00> : vector<2x8x8xf32>
    %156 = tpu.matmul %144, %155, %cst_100 {dimension_numbers = #tpu.dot_dimension_numbers<[2], [1], [1], [2], [0, 0, 0, 1, 1, 2], [0], [0]>} : vector<2x8x16xbf16>, vector<2x16x8xbf16>, vector<2x8x8xf32> -> vector<2x8x8xf32>
    "tpu.trace_stop"() : () -> ()
    %c1_101 = arith.constant 1 : index
    %c0_102 = arith.constant 0 : index
    %c0_103 = arith.constant 0 : index
    %c0_104 = arith.constant 0 : index
    %157 = vector.load %arg7[%c1_101, %c0_102, %c0_103, %c0_104] : memref<2x2x1x8xf32, #tpu.memory_space<vmem>>, vector<1x2x1x8xf32>
    %158 = vector.shape_cast %157 : vector<1x2x1x8xf32> to vector<2x1x8xf32>
    %159 = vector.broadcast %158 : vector<2x1x8xf32> to vector<2x8x8xf32>
    %160 = arith.addf %156, %159 : vector<2x8x8xf32>
    %c1_105 = arith.constant 1 : index
    %c0_106 = arith.constant 0 : index
    %c0_107 = arith.constant 0 : index
    %c0_108 = arith.constant 0 : index
    %161 = vector.load %arg8[%c1_105, %c0_106, %c0_107, %c0_108] : memref<2x2x16x8xbf16, #tpu.memory_space<vmem>>, vector<1x2x16x8xbf16>
    %162 = vector.shape_cast %161 : vector<1x2x16x8xbf16> to vector<2x16x8xbf16>
    "tpu.trace_start"() <{level = 10 : i32, message = "hsa,had->hsd"}> : () -> ()
    %cst_109 = arith.constant dense<0.000000e+00> : vector<2x8x8xf32>
    %163 = tpu.matmul %144, %162, %cst_109 {dimension_numbers = #tpu.dot_dimension_numbers<[2], [1], [1], [2], [0, 0, 0, 1, 1, 2], [0], [0]>} : vector<2x8x16xbf16>, vector<2x16x8xbf16>, vector<2x8x8xf32> -> vector<2x8x8xf32>
    "tpu.trace_stop"() : () -> ()
    %c1_110 = arith.constant 1 : index
    %c0_111 = arith.constant 0 : index
    %c0_112 = arith.constant 0 : index
    %c0_113 = arith.constant 0 : index
    %164 = vector.load %arg9[%c1_110, %c0_111, %c0_112, %c0_113] : memref<2x2x1x8xf32, #tpu.memory_space<vmem>>, vector<1x2x1x8xf32>
    %165 = vector.shape_cast %164 : vector<1x2x1x8xf32> to vector<2x1x8xf32>
    %166 = vector.broadcast %165 : vector<2x1x8xf32> to vector<2x8x8xf32>
    %167 = arith.addf %163, %166 : vector<2x8x8xf32>
    %168 = arith.truncf %153 : vector<2x8x8xf32> to vector<2x8x8xbf16>
    %169 = arith.truncf %160 : vector<2x8x8xf32> to vector<2x8x8xbf16>
    "tpu.trace_start"() <{level = 10 : i32, message = "hqd,hkd->hqk"}> : () -> ()
    %cst_114 = arith.constant dense<0.000000e+00> : vector<2x8x8xf32>
    %170 = tpu.matmul %168, %169, %cst_114 {dimension_numbers = #tpu.dot_dimension_numbers<[2], [2], [1], [1], [0, 0, 0, 1, 1, 1], [0], [0]>} : vector<2x8x8xbf16>, vector<2x8x8xbf16>, vector<2x8x8xf32> -> vector<2x8x8xf32>
    "tpu.trace_stop"() : () -> ()
    %cst_115 = arith.constant dense<0xFF800000> : vector<2x8xf32>
    %171 = vector.multi_reduction <maximumf>, %170, %cst_115 [2] : vector<2x8x8xf32> to vector<2x8xf32>
    %172 = vector.shape_cast %171 : vector<2x8xf32> to vector<2x8x1xf32>
    %173 = vector.broadcast %172 : vector<2x8x1xf32> to vector<2x8x8xf32>
    %174 = arith.subf %170, %173 : vector<2x8x8xf32>
    %175 = math.exp %174 : vector<2x8x8xf32>
    %cst_116 = arith.constant dense<0.000000e+00> : vector<2x8xf32>
    %176 = vector.multi_reduction <add>, %175, %cst_116 [2] : vector<2x8x8xf32> to vector<2x8xf32>
    %177 = vector.shape_cast %176 : vector<2x8xf32> to vector<2x8x1xf32>
    %178 = tpu.reciprocal %177 {approx = true} : vector<2x8x1xf32> -> vector<2x8x1xf32>
    %179 = vector.broadcast %178 : vector<2x8x1xf32> to vector<2x8x8xf32>
    %180 = arith.mulf %175, %179 : vector<2x8x8xf32>
    %181 = arith.truncf %180 : vector<2x8x8xf32> to vector<2x8x8xbf16>
    %182 = arith.truncf %167 : vector<2x8x8xf32> to vector<2x8x8xbf16>
    "tpu.trace_start"() <{level = 10 : i32, message = "hqk,hkd->hqd"}> : () -> ()
    %cst_117 = arith.constant dense<0.000000e+00> : vector<2x8x8xf32>
    %183 = tpu.matmul %181, %182, %cst_117 {dimension_numbers = #tpu.dot_dimension_numbers<[2], [1], [1], [2], [0, 0, 0, 1, 1, 2], [0], [0]>} : vector<2x8x8xbf16>, vector<2x8x8xbf16>, vector<2x8x8xf32> -> vector<2x8x8xf32>
    "tpu.trace_stop"() : () -> ()
    %184 = arith.truncf %183 : vector<2x8x8xf32> to vector<2x8x8xbf16>
    %c1_118 = arith.constant 1 : index
    %c0_119 = arith.constant 0 : index
    %c0_120 = arith.constant 0 : index
    %c0_121 = arith.constant 0 : index
    %185 = vector.load %arg10[%c1_118, %c0_119, %c0_120, %c0_121] : memref<2x2x8x16xbf16, #tpu.memory_space<vmem>>, vector<1x2x8x16xbf16>
    %186 = vector.shape_cast %185 : vector<1x2x8x16xbf16> to vector<2x8x16xbf16>
    "tpu.trace_start"() <{level = 10 : i32, message = "hqd,hda->hqa"}> : () -> ()
    %cst_122 = arith.constant dense<0.000000e+00> : vector<2x8x16xf32>
    %187 = tpu.matmul %184, %186, %cst_122 {dimension_numbers = #tpu.dot_dimension_numbers<[2], [1], [1], [2], [0, 0, 0, 1, 1, 2], [0], [0]>} : vector<2x8x8xbf16>, vector<2x8x16xbf16>, vector<2x8x16xf32> -> vector<2x8x16xf32>
    "tpu.trace_stop"() : () -> ()
    %cst_123 = arith.constant dense<0.000000e+00> : vector<8x16xf32>
    %188 = vector.multi_reduction <add>, %187, %cst_123 [0] : vector<2x8x16xf32> to vector<8x16xf32>
    %c1_124 = arith.constant 1 : index
    %c0_125 = arith.constant 0 : index
    %c0_126 = arith.constant 0 : index
    %189 = vector.load %arg11[%c1_124, %c0_125, %c0_126] : memref<2x1x16xf32, #tpu.memory_space<vmem>>, vector<1x1x16xf32>
    %190 = vector.shape_cast %189 : vector<1x1x16xf32> to vector<1x16xf32>
    %191 = vector.broadcast %190 : vector<1x16xf32> to vector<8x16xf32>
    %192 = arith.addf %188, %191 : vector<8x16xf32>
    %193 = arith.addf %192, %141 : vector<8x16xf32>
    %c1_127 = arith.constant 1 : index
    %c0_128 = arith.constant 0 : index
    %c0_129 = arith.constant 0 : index
    %194 = vector.load %arg12[%c1_127, %c0_128, %c0_129] : memref<2x1x16xf32, #tpu.memory_space<vmem>>, vector<1x1x16xf32>
    %195 = vector.shape_cast %194 : vector<1x1x16xf32> to vector<1x16xf32>
    %c1_130 = arith.constant 1 : index
    %c0_131 = arith.constant 0 : index
    %c0_132 = arith.constant 0 : index
    %196 = vector.load %arg13[%c1_130, %c0_131, %c0_132] : memref<2x1x16xf32, #tpu.memory_space<vmem>>, vector<1x1x16xf32>
    %197 = vector.shape_cast %196 : vector<1x1x16xf32> to vector<1x16xf32>
    %cst_133 = arith.constant dense<0.000000e+00> : vector<8xf32>
    %198 = vector.multi_reduction <add>, %193, %cst_133 [1] : vector<8x16xf32> to vector<8xf32>
    %199 = vector.shape_cast %198 : vector<8xf32> to vector<8x1xf32>
    %cst_134 = arith.constant 1.600000e+01 : f32
    %200 = vector.broadcast %cst_134 : f32 to vector<8x1xf32>
    %201 = arith.divf %199, %200 : vector<8x1xf32>
    %202 = vector.broadcast %201 : vector<8x1xf32> to vector<8x16xf32>
    %203 = arith.subf %193, %202 : vector<8x16xf32>
    %204 = arith.mulf %203, %203 : vector<8x16xf32>
    %cst_135 = arith.constant dense<0.000000e+00> : vector<8xf32>
    %205 = vector.multi_reduction <add>, %204, %cst_135 [1] : vector<8x16xf32> to vector<8xf32>
    %206 = vector.shape_cast %205 : vector<8xf32> to vector<8x1xf32>
    %cst_136 = arith.constant 1.600000e+01 : f32
    %207 = vector.broadcast %cst_136 : f32 to vector<8x1xf32>
    %208 = arith.divf %206, %207 : vector<8x1xf32>
    %209 = vector.broadcast %201 : vector<8x1xf32> to vector<8x16xf32>
    %210 = arith.subf %193, %209 : vector<8x16xf32>
    %cst_137 = arith.constant 9.99999996E-13 : f32
    %211 = vector.broadcast %cst_137 : f32 to vector<8x1xf32>
    %212 = arith.addf %208, %211 : vector<8x1xf32>
    %213 = math.rsqrt %212 : vector<8x1xf32>
    %214 = vector.broadcast %213 : vector<8x1xf32> to vector<8x16xf32>
    %215 = arith.mulf %210, %214 : vector<8x16xf32>
    %216 = vector.broadcast %195 : vector<1x16xf32> to vector<8x16xf32>
    %217 = arith.mulf %215, %216 : vector<8x16xf32>
    %218 = vector.broadcast %197 : vector<1x16xf32> to vector<8x16xf32>
    %219 = arith.addf %217, %218 : vector<8x16xf32>
    %c1_138 = arith.constant 1 : index
    %c0_139 = arith.constant 0 : index
    %c0_140 = arith.constant 0 : index
    %220 = vector.load %arg14[%c1_138, %c0_139, %c0_140] : memref<2x16x32xbf16, #tpu.memory_space<vmem>>, vector<1x16x32xbf16>
    %221 = vector.shape_cast %220 : vector<1x16x32xbf16> to vector<16x32xbf16>
    %222 = arith.truncf %219 : vector<8x16xf32> to vector<8x16xbf16>
    %cst_141 = arith.constant dense<0.000000e+00> : vector<8x32xf32>
    %223 = tpu.matmul %222, %221, %cst_141 {dimension_numbers = #tpu.dot_dimension_numbers<[1], [0], [0], [1], [0, 0, 1, 1], [], []>} : vector<8x16xbf16>, vector<16x32xbf16>, vector<8x32xf32> -> vector<8x32xf32>
    %c1_142 = arith.constant 1 : index
    %c0_143 = arith.constant 0 : index
    %c0_144 = arith.constant 0 : index
    %224 = vector.load %arg15[%c1_142, %c0_143, %c0_144] : memref<2x1x32xf32, #tpu.memory_space<vmem>>, vector<1x1x32xf32>
    %225 = vector.shape_cast %224 : vector<1x1x32xf32> to vector<1x32xf32>
    %226 = vector.broadcast %225 : vector<1x32xf32> to vector<8x32xf32>
    %227 = arith.addf %223, %226 : vector<8x32xf32>
    %228 = arith.mulf %227, %227 : vector<8x32xf32>
    %229 = arith.mulf %227, %228 : vector<8x32xf32>
    %cst_145 = arith.constant 4.471500e-02 : f32
    %230 = vector.broadcast %cst_145 : f32 to vector<8x32xf32>
    %231 = arith.mulf %230, %229 : vector<8x32xf32>
    %232 = arith.addf %227, %231 : vector<8x32xf32>
    %cst_146 = arith.constant 0.797884583 : f32
    %233 = vector.broadcast %cst_146 : f32 to vector<8x32xf32>
    %234 = arith.mulf %233, %232 : vector<8x32xf32>
    %235 = math.tanh %234 : vector<8x32xf32>
    %cst_147 = arith.constant 1.000000e+00 : f32
    %236 = vector.broadcast %cst_147 : f32 to vector<8x32xf32>
    %237 = arith.addf %236, %235 : vector<8x32xf32>
    %cst_148 = arith.constant 5.000000e-01 : f32
    %238 = vector.broadcast %cst_148 : f32 to vector<8x32xf32>
    %239 = arith.mulf %238, %237 : vector<8x32xf32>
    %240 = arith.mulf %227, %239 : vector<8x32xf32>
    %c1_149 = arith.constant 1 : index
    %c0_150 = arith.constant 0 : index
    %c0_151 = arith.constant 0 : index
    %241 = vector.load %arg16[%c1_149, %c0_150, %c0_151] : memref<2x32x16xbf16, #tpu.memory_space<vmem>>, vector<1x32x16xbf16>
    %242 = vector.shape_cast %241 : vector<1x32x16xbf16> to vector<32x16xbf16>
    %243 = arith.truncf %240 : vector<8x32xf32> to vector<8x32xbf16>
    %cst_152 = arith.constant dense<0.000000e+00> : vector<8x16xf32>
    %244 = tpu.matmul %243, %242, %cst_152 {dimension_numbers = #tpu.dot_dimension_numbers<[1], [0], [0], [1], [0, 0, 1, 1], [], []>} : vector<8x32xbf16>, vector<32x16xbf16>, vector<8x16xf32> -> vector<8x16xf32>
    %c1_153 = arith.constant 1 : index
    %c0_154 = arith.constant 0 : index
    %c0_155 = arith.constant 0 : index
    %245 = vector.load %arg17[%c1_153, %c0_154, %c0_155] : memref<2x1x16xf32, #tpu.memory_space<vmem>>, vector<1x1x16xf32>
    %246 = vector.shape_cast %245 : vector<1x1x16xf32> to vector<1x16xf32>
    %247 = vector.broadcast %246 : vector<1x16xf32> to vector<8x16xf32>
    %248 = arith.addf %244, %247 : vector<8x16xf32>
    %249 = arith.addf %248, %219 : vector<8x16xf32>
    %c1_156 = arith.constant 1 : index
    %c0_157 = arith.constant 0 : index
    %c0_158 = arith.constant 0 : index
    %250 = vector.load %arg18[%c1_156, %c0_157, %c0_158] : memref<2x1x16xf32, #tpu.memory_space<vmem>>, vector<1x1x16xf32>
    %251 = vector.shape_cast %250 : vector<1x1x16xf32> to vector<1x16xf32>
    %c1_159 = arith.constant 1 : index
    %c0_160 = arith.constant 0 : index
    %c0_161 = arith.constant 0 : index
    %252 = vector.load %arg19[%c1_159, %c0_160, %c0_161] : memref<2x1x16xf32, #tpu.memory_space<vmem>>, vector<1x1x16xf32>
    %253 = vector.shape_cast %252 : vector<1x1x16xf32> to vector<1x16xf32>
    %cst_162 = arith.constant dense<0.000000e+00> : vector<8xf32>
    %254 = vector.multi_reduction <add>, %249, %cst_162 [1] : vector<8x16xf32> to vector<8xf32>
    %255 = vector.shape_cast %254 : vector<8xf32> to vector<8x1xf32>
    %cst_163 = arith.constant 1.600000e+01 : f32
    %256 = vector.broadcast %cst_163 : f32 to vector<8x1xf32>
    %257 = arith.divf %255, %256 : vector<8x1xf32>
    %258 = vector.broadcast %257 : vector<8x1xf32> to vector<8x16xf32>
    %259 = arith.subf %249, %258 : vector<8x16xf32>
    %260 = arith.mulf %259, %259 : vector<8x16xf32>
    %cst_164 = arith.constant dense<0.000000e+00> : vector<8xf32>
    %261 = vector.multi_reduction <add>, %260, %cst_164 [1] : vector<8x16xf32> to vector<8xf32>
    %262 = vector.shape_cast %261 : vector<8xf32> to vector<8x1xf32>
    %cst_165 = arith.constant 1.600000e+01 : f32
    %263 = vector.broadcast %cst_165 : f32 to vector<8x1xf32>
    %264 = arith.divf %262, %263 : vector<8x1xf32>
    %265 = vector.broadcast %257 : vector<8x1xf32> to vector<8x16xf32>
    %266 = arith.subf %249, %265 : vector<8x16xf32>
    %cst_166 = arith.constant 9.99999996E-13 : f32
    %267 = vector.broadcast %cst_166 : f32 to vector<8x1xf32>
    %268 = arith.addf %264, %267 : vector<8x1xf32>
    %269 = math.rsqrt %268 : vector<8x1xf32>
    %270 = vector.broadcast %269 : vector<8x1xf32> to vector<8x16xf32>
    %271 = arith.mulf %266, %270 : vector<8x16xf32>
    %272 = vector.broadcast %251 : vector<1x16xf32> to vector<8x16xf32>
    %273 = arith.mulf %271, %272 : vector<8x16xf32>
    %274 = vector.broadcast %253 : vector<1x16xf32> to vector<8x16xf32>
    %275 = arith.addf %273, %274 : vector<8x16xf32>
    %c0_167 = arith.constant 0 : index
    %c0_168 = arith.constant 0 : index
    %276 = vector.load %arg20[%c0_167, %c0_168] : memref<16x32xbf16, #tpu.memory_space<vmem>>, vector<16x32xbf16>
    %277 = arith.truncf %275 : vector<8x16xf32> to vector<8x16xbf16>
    %cst_169 = arith.constant dense<0.000000e+00> : vector<8x32xf32>
    %278 = tpu.matmul %277, %276, %cst_169 {dimension_numbers = #tpu.dot_dimension_numbers<[1], [0], [0], [1], [0, 0, 1, 1], [], []>} : vector<8x16xbf16>, vector<16x32xbf16>, vector<8x32xf32> -> vector<8x32xf32>
    %c0_170 = arith.constant 0 : index
    %c0_171 = arith.constant 0 : index
    %279 = vector.load %arg21[%c0_170, %c0_171] : memref<1x32xf32, #tpu.memory_space<vmem>>, vector<1x32xf32>
    %280 = vector.broadcast %279 : vector<1x32xf32> to vector<8x32xf32>
    %281 = arith.addf %278, %280 : vector<8x32xf32>
    %282 = arith.addf %1, %281 : vector<8x32xf32>
    %c0_172 = arith.constant 0 : index
    %c0_173 = arith.constant 0 : index
    %c0_174 = arith.constant 0 : index
    %283 = vector.load %arg22[%c0_172, %c0_173, %c0_174] : memref<1x8x32xf32, #tpu.memory_space<vmem>>, vector<1x8x32xf32>
    %284 = vector.shape_cast %283 : vector<1x8x32xf32> to vector<8x32xf32>
    %285 = vector.shape_cast %282 : vector<8x32xf32> to vector<1x8x32xf32>
    tpu.vector_store %arg22[%c0_172, %c0_173, %c0_174], %285 {strides = array<i32>} : memref<1x8x32xf32, #tpu.memory_space<vmem>>, vector<1x8x32xf32>,
    return
  }
  func.func @transform_0(%arg0: i32) -> (i32, i32, i32) {
    %c0_i32 = arith.constant 0 : i32
    %c0_i32_0 = arith.constant 0 : i32
    %c0_i32_1 = arith.constant 0 : i32
    return %arg0, %c0_i32, %c0_i32_0 : i32, i32, i32
  }
  func.func @transform_1(%arg0: i32) -> (i32, i32) {
    %c0_i32 = arith.constant 0 : i32
    %c0_i32_0 = arith.constant 0 : i32
    %c0_i32_1 = arith.constant 0 : i32
    return %c0_i32, %c0_i32_0 : i32, i32
  }
  func.func @transform_2(%arg0: i32) -> (i32, i32) {
    %c0_i32 = arith.constant 0 : i32
    %c0_i32_0 = arith.constant 0 : i32
    %c0_i32_1 = arith.constant 0 : i32
    return %c0_i32, %c0_i32_0 : i32, i32
  }
  func.func @transform_3(%arg0: i32) -> (i32, i32, i32, i32) {
    %c0_i32 = arith.constant 0 : i32
    %c0_i32_0 = arith.constant 0 : i32
    %c0_i32_1 = arith.constant 0 : i32
    %c0_i32_2 = arith.constant 0 : i32
    %c0_i32_3 = arith.constant 0 : i32
    return %c0_i32, %c0_i32_0, %c0_i32_1, %c0_i32_2 : i32, i32, i32, i32
  }
  func.func @transform_4(%arg0: i32) -> (i32, i32, i32, i32) {
    %c0_i32 = arith.constant 0 : i32
    %c0_i32_0 = arith.constant 0 : i32
    %c0_i32_1 = arith.constant 0 : i32
    %c0_i32_2 = arith.constant 0 : i32
    %c0_i32_3 = arith.constant 0 : i32
    return %c0_i32, %c0_i32_0, %c0_i32_1, %c0_i32_2 : i32, i32, i32, i32
  }
  func.func @transform_5(%arg0: i32) -> (i32, i32, i32, i32) {
    %c0_i32 = arith.constant 0 : i32
    %c0_i32_0 = arith.constant 0 : i32
    %c0_i32_1 = arith.constant 0 : i32
    %c0_i32_2 = arith.constant 0 : i32
    %c0_i32_3 = arith.constant 0 : i32
    return %c0_i32, %c0_i32_0, %c0_i32_1, %c0_i32_2 : i32, i32, i32, i32
  }
  func.func @transform_6(%arg0: i32) -> (i32, i32, i32, i32) {
    %c0_i32 = arith.constant 0 : i32
    %c0_i32_0 = arith.constant 0 : i32
    %c0_i32_1 = arith.constant 0 : i32
    %c0_i32_2 = arith.constant 0 : i32
    %c0_i32_3 = arith.constant 0 : i32
    return %c0_i32, %c0_i32_0, %c0_i32_1, %c0_i32_2 : i32, i32, i32, i32
  }
  func.func @transform_7(%arg0: i32) -> (i32, i32, i32, i32) {
    %c0_i32 = arith.constant 0 : i32
    %c0_i32_0 = arith.constant 0 : i32
    %c0_i32_1 = arith.constant 0 : i32
    %c0_i32_2 = arith.constant 0 : i32
    %c0_i32_3 = arith.constant 0 : i32
    return %c0_i32, %c0_i32_0, %c0_i32_1, %c0_i32_2 : i32, i32, i32, i32
  }
  func.func @transform_8(%arg0: i32) -> (i32, i32, i32, i32) {
    %c0_i32 = arith.constant 0 : i32
    %c0_i32_0 = arith.constant 0 : i32
    %c0_i32_1 = arith.constant 0 : i32
    %c0_i32_2 = arith.constant 0 : i32
    %c0_i32_3 = arith.constant 0 : i32
    return %c0_i32, %c0_i32_0, %c0_i32_1, %c0_i32_2 : i32, i32, i32, i32
  }
  func.func @transform_9(%arg0: i32) -> (i32, i32, i32, i32) {
    %c0_i32 = arith.constant 0 : i32
    %c0_i32_0 = arith.constant 0 : i32
    %c0_i32_1 = arith.constant 0 : i32
    %c0_i32_2 = arith.constant 0 : i32
    %c0_i32_3 = arith.constant 0 : i32
    return %c0_i32, %c0_i32_0, %c0_i32_1, %c0_i32_2 : i32, i32, i32, i32
  }
  func.func @transform_10(%arg0: i32) -> (i32, i32, i32) {
    %c0_i32 = arith.constant 0 : i32
    %c0_i32_0 = arith.constant 0 : i32
    %c0_i32_1 = arith.constant 0 : i32
    %c0_i32_2 = arith.constant 0 : i32
    return %c0_i32, %c0_i32_0, %c0_i32_1 : i32, i32, i32
  }
  func.func @transform_11(%arg0: i32) -> (i32, i32, i32) {
    %c0_i32 = arith.constant 0 : i32
    %c0_i32_0 = arith.constant 0 : i32
    %c0_i32_1 = arith.constant 0 : i32
    %c0_i32_2 = arith.constant 0 : i32
    return %c0_i32, %c0_i32_0, %c0_i32_1 : i32, i32, i32
  }
  func.func @transform_12(%arg0: i32) -> (i32, i32, i32) {
    %c0_i32 = arith.constant 0 : i32
    %c0_i32_0 = arith.constant 0 : i32
    %c0_i32_1 = arith.constant 0 : i32
    %c0_i32_2 = arith.constant 0 : i32
    return %c0_i32, %c0_i32_0, %c0_i32_1 : i32, i32, i32
  }
  func.func @transform_13(%arg0: i32) -> (i32, i32, i32) {
    %c0_i32 = arith.constant 0 : i32
    %c0_i32_0 = arith.constant 0 : i32
    %c0_i32_1 = arith.constant 0 : i32
    %c0_i32_2 = arith.constant 0 : i32
    return %c0_i32, %c0_i32_0, %c0_i32_1 : i32, i32, i32
  }
  func.func @transform_14(%arg0: i32) -> (i32, i32, i32) {
    %c0_i32 = arith.constant 0 : i32
    %c0_i32_0 = arith.constant 0 : i32
    %c0_i32_1 = arith.constant 0 : i32
    %c0_i32_2 = arith.constant 0 : i32
    return %c0_i32, %c0_i32_0, %c0_i32_1 : i32, i32, i32
  }
  func.func @transform_15(%arg0: i32) -> (i32, i32, i32) {
    %c0_i32 = arith.constant 0 : i32
    %c0_i32_0 = arith.constant 0 : i32
    %c0_i32_1 = arith.constant 0 : i32
    %c0_i32_2 = arith.constant 0 : i32
    return %c0_i32, %c0_i32_0, %c0_i32_1 : i32, i32, i32
  }
  func.func @transform_16(%arg0: i32) -> (i32, i32, i32) {
    %c0_i32 = arith.constant 0 : i32
    %c0_i32_0 = arith.constant 0 : i32
    %c0_i32_1 = arith.constant 0 : i32
    %c0_i32_2 = arith.constant 0 : i32
    return %c0_i32, %c0_i32_0, %c0_i32_1 : i32, i32, i32
  }
  func.func @transform_17(%arg0: i32) -> (i32, i32, i32) {
    %c0_i32 = arith.constant 0 : i32
    %c0_i32_0 = arith.constant 0 : i32
    %c0_i32_1 = arith.constant 0 : i32
    %c0_i32_2 = arith.constant 0 : i32
    return %c0_i32, %c0_i32_0, %c0_i32_1 : i32, i32, i32
  }
  func.func @transform_18(%arg0: i32) -> (i32, i32, i32) {
    %c0_i32 = arith.constant 0 : i32
    %c0_i32_0 = arith.constant 0 : i32
    %c0_i32_1 = arith.constant 0 : i32
    %c0_i32_2 = arith.constant 0 : i32
    return %c0_i32, %c0_i32_0, %c0_i32_1 : i32, i32, i32
  }
  func.func @transform_19(%arg0: i32) -> (i32, i32) {
    %c0_i32 = arith.constant 0 : i32
    %c0_i32_0 = arith.constant 0 : i32
    %c0_i32_1 = arith.constant 0 : i32
    return %c0_i32, %c0_i32_0 : i32, i32
  }
  func.func @transform_20(%arg0: i32) -> (i32, i32) {
    %c0_i32 = arith.constant 0 : i32
    %c0_i32_0 = arith.constant 0 : i32
    %c0_i32_1 = arith.constant 0 : i32
    return %c0_i32, %c0_i32_0 : i32, i32
  }
  func.func @transform_21(%arg0: i32) -> (i32, i32, i32) {
    %c0_i32 = arith.constant 0 : i32
    %c0_i32_0 = arith.constant 0 : i32
    %c0_i32_1 = arith.constant 0 : i32
    return %arg0, %c0_i32, %c0_i32_0 : i32, i32, i32
  }
}

</mosaic_0001>

<llo_original>
// kernel: adapter_forward.1
$region0: #{adapter_forward.1}
  #allocation0 [shape = 'u32[]', space=smem, size = 0x4, offset = 0x4, fixed_abs, tag = 'smem constant byte address 0x4 - core index']
  #allocation1 [shape = 'u32[144,128]{1,0:T(1,128)}', space=vmem, size = 0x12000, scoped, tag = 'internal scratch']
  %s0 = inlined_call_operand.hbm [shape: f32[2,8,32], index: 0, kind: input, shape index: {}]
  %s1 = inlined_call_operand.hbm [shape: bf16[32,16], index: 1, kind: input, shape index: {}]
  %s2 = inlined_call_operand.vmem [shape: f32[1,16], index: 2, kind: input, shape index: {}]
  %s3 = inlined_call_operand.hbm [shape: bf16[2,2,16,8], index: 3, kind: input, shape index: {}]
  %s4 = inlined_call_operand.vmem [shape: f32[2,2,1,8], index: 4, kind: input, shape index: {}, may-alias: {4,6,8}]
  %s5 = inlined_call_operand.hbm [shape: bf16[2,2,16,8], index: 5, kind: input, shape index: {}]
  %s6 = inlined_call_operand.vmem [shape: f32[2,2,1,8], index: 6, kind: input, shape index: {}, may-alias: {4,6,8}]
  %s7 = inlined_call_operand.hbm [shape: bf16[2,2,16,8], index: 7, kind: input, shape index: {}]
  %s8 = inlined_call_operand.vmem [shape: f32[2,2,1,8], index: 8, kind: input, shape index: {}, may-alias: {4,6,8}]
  %s9 = inlined_call_operand.hbm [shape: bf16[2,2,8,16], index: 9, kind: input, shape index: {}]
  %s10 = inlined_call_operand.vmem [shape: f32[2,1,16], index: 10, kind: input, shape index: {}, may-alias: {10,12,16,18}]
  %s11 = inlined_call_operand.vmem [shape: f32[2,1,16], index: 11, kind: input, shape index: {}, may-alias: {11,17}]
  %s12 = inlined_call_operand.vmem [shape: f32[2,1,16], index: 12, kind: input, shape index: {}, may-alias: {10,12,16,18}]
  %s13 = inlined_call_operand.hbm [shape: bf16[2,16,32], index: 13, kind: input, shape index: {}]
  %s14 = inlined_call_operand.vmem [shape: f32[2,1,32], index: 14, kind: input, shape index: {}]
  %s15 = inlined_call_operand.vmem [shape: bf16[2,32,16], index: 15, kind: input, shape index: {}]
  %s16 = inlined_call_operand.vmem [shape: f32[2,1,16], index: 16, kind: input, shape index: {}, may-alias: {10,12,16,18}]
  %s17 = inlined_call_operand.vmem [shape: f32[2,1,16], index: 17, kind: input, shape index: {}, may-alias: {11,17}]
  %s18 = inlined_call_operand.vmem [shape: f32[2,1,16], index: 18, kind: input, shape index: {}, may-alias: {10,12,16,18}]
  %s19 = inlined_call_operand.hbm [shape: bf16[16,32], index: 19, kind: input, shape index: {}]
  %s20 = inlined_call_operand.vmem [shape: f32[1,32], index: 20, kind: input, shape index: {}]
  %s21 = inlined_call_operand.hbm [shape: f32[2,8,32], index: 21, kind: output, shape index: {}]
  %s22 = sld [smem:[#allocation0]]
  $region149: #{adapter_forward.1} parent=0
    _
  %s24 = ssub.s32 1, %s22
  %s25 = scalar_select 0, %s24, %s22
  $region1: #{adapter_forward.1} parent=0
    #allocation2 [shape = 'u8[8192]{0}', space=vmem, size = 0x2000, scoped, tag = 'input window, operand 0']
    #allocation3 [shape = 's32[2]{0}', space=sflag, size = 0x8, scoped, tag = 'scoped memory for adapter_forward.1']
    #allocation4 [shape = 's32[2]{0}', space=sflag, size = 0x8, scoped, tag = 'scoped memory for adapter_forward.1']
    #allocation5 [shape = 'u8[8192]{0}', space=vmem, size = 0x2000, scoped, tag = 'input window, operand 1, single buffered']
    #allocation6 [shape = 's32[1]{0}', space=sflag, size = 0x4, scoped, tag = 'scoped memory for adapter_forward.1']
    #allocation7 [shape = 'u8[16384]{0}', space=vmem, size = 0x4000, scoped, tag = 'input window, operand 3, single buffered']
    #allocation8 [shape = 'u8[16384]{0}', space=vmem, size = 0x4000, scoped, tag = 'input window, operand 5, single buffered']
    #allocation9 [shape = 's32[1]{0}', space=sflag, size = 0x4, scoped, tag = 'scoped memory for adapter_forward.1']
    #allocation10 [shape = 'u8[16384]{0}', space=vmem, size = 0x4000, scoped, tag = 'input window, operand 7, single buffered']
    #allocation11 [shape = 'u8[8192]{0}', space=vmem, size = 0x2000, scoped, tag = 'input window, operand 9, single buffered']
    #allocation12 [shape = 's32[1]{0}', space=sflag, size = 0x4, scoped, tag = 'scoped memory for adapter_forward.1']
    #allocation13 [shape = 'u8[8192]{0}', space=vmem, size = 0x2000, scoped, tag = 'input window, operand 13, single buffered']
    #allocation14 [shape = 'u8[4096]{0}', space=vmem, size = 0x1000, scoped, tag = 'input window, operand 19, single buffered']
    #allocation15 [shape = 's32[1]{0}', space=sflag, size = 0x4, scoped, tag = 'scoped memory for adapter_forward.1']
    #allocation16 [shape = 'u8[8192]{0}', space=vmem, size = 0x2000, scoped, tag = 'output window, operand 0']
    %26 = vsyncpa [#allocation3], 0
    %s27 = scalar_lea.sflag [#allocation3], 1
    %28 = vsyncpa %s27, 0
    %29 = vsyncpa [#allocation6], 0
    %30 = vsyncpa [#allocation9], 0
    %31 = vsyncpa [#allocation12], 0
    %32 = vsyncpa [#allocation15], 0
    %33 = vsyncpa [#allocation4], 0
    %s34 = scalar_lea.sflag [#allocation4], 1
    %35 = vsyncpa %s34, 0
    loop: start=0, step=1, limit=4
    $region2: #{adapter_forward.1} parent=1 // loop_pre_header
      _
    $region3: #{adapter_forward.1} parent=1 // loop_header
      %s37 = sphi 0, %s41
      %p38 = scmp.ge.s32.totalorder %s37, 4
      %s47 = sphi 0, %s49
      %s50 = sphi 0, %s47
      %s51 = sphi 0, %s50
      %s67 = sphi 0, %s51
      %s71 = sphi 0, %s71
      %s73 = sphi 0, %s71
      %s74 = sphi 0, %s73
      %s88 = sphi 0, %s74
      %s92 = sphi 0, %s92
      %s94 = sphi 0, %s92
      %s95 = sphi 0, %s94
      %s109 = sphi 0, %s95
      %s113 = sphi 0, %s113
      %s115 = sphi 0, %s113
      %s116 = sphi 0, %s115
      %s130 = sphi 0, %s116
      %s134 = sphi 0, %s134
      %s136 = sphi 0, %s134
      %s137 = sphi 0, %s136
      %s151 = sphi 0, %s137
      %s155 = sphi 0, %s155
      %s157 = sphi 0, %s155
      %s158 = sphi 0, %s157
      %s172 = sphi 0, %s158
      %s176 = sphi 0, %s176
      %s178 = sphi 0, %s176
      %s179 = sphi 0, %s178
      %s193 = sphi 0, %s179
      %s197 = sphi 0, %s197
      %s199 = sphi 0, %s197
      %s200 = sphi 0, %s199
      %s214 = sphi 0, %s200
      %s218 = sphi 0, %s218
      %s220 = sphi 0, %s218
      %s221 = sphi 0, %s220
      %s235 = sphi 0, %s221
      %s239 = sphi 0, %s239
      %s241 = sphi 0, %s239
      %s242 = sphi 0, %s241
      %s256 = sphi 0, %s242
      %s260 = sphi 0, %s260
      %s262 = sphi 0, %s260
      %s263 = sphi 0, %s262
      %s277 = sphi 0, %s263
      %s281 = sphi 0, %s281
      %s283 = sphi 0, %s281
      %s284 = sphi 0, %s283
      %s298 = sphi 0, %s284
      %s302 = sphi 0, %s302
      %s304 = sphi 0, %s302
      %s305 = sphi 0, %s304
      %s319 = sphi 0, %s305
      %s323 = sphi 0, %s323
      %s325 = sphi 0, %s323
      %s326 = sphi 0, %s325
      %s340 = sphi 0, %s326
      %s344 = sphi 0, %s344
      %s346 = sphi 0, %s344
      %s347 = sphi 0, %s346
      %s361 = sphi 0, %s347
      %s365 = sphi 0, %s365
      %s367 = sphi 0, %s365
      %s368 = sphi 0, %s367
      %s382 = sphi 0, %s368
      %s386 = sphi 0, %s386
      %s388 = sphi 0, %s386
      %s389 = sphi 0, %s388
      %s403 = sphi 0, %s389
      %s407 = sphi 0, %s407
      %s409 = sphi 0, %s407
      %s410 = sphi 0, %s409
      %s424 = sphi 0, %s410
      %s428 = sphi 0, %s428
      %s430 = sphi 0, %s428
      %s431 = sphi 0, %s430
      %s445 = sphi 0, %s431
      %s449 = sphi 0, %s449
      %s451 = sphi 0, %s449
      %s452 = sphi 0, %s451
      %s466 = sphi 0, %s452
      %s470 = sphi 0, %s470
      %s472 = sphi 0, %s470
      %s473 = sphi 0, %s472
      %s487 = sphi 0, %s473
      %s493 = sphi 0, %s495
      %s496 = sphi 0, %s493
      %s497 = sphi 0, %s496
      %s513 = sphi 0, %s497
    $region4: #{adapter_forward.1} parent=1 // loop_header_branch
      %40 = sbr.rel (%p38) target = $region8
    $region5: #{adapter_forward.1} parent=1 // loop_body
      %s42 = ssub.s32 %s37, 1
      %s43 = ssub.s32 %s37, 2
      %s44 = sadd.s32 %s37, 1
      %s45 = ssub.s32 %s37, %s44
      %p46 = scmp.eq.s32.totalorder %s45, 0
      %s48 = sadd.s32 %s47, 1
      %s49 = scalar_select %p46, %s47, %s48
      %p52 = pneg %p46
      %p53 = scmp.eq.s32.totalorder %s37, 1
      %p54 = por %p52, %p53
      %p55 = scmp.ne.s32.totalorder %s47, %s50
      %p56 = scmp.eq.s32.totalorder %s37, 0
      %p57 = por %p55, %p56
      %p58 = scmp.ne.s32.totalorder %s47, %s50
      %p59 = scmp.eq.s32.totalorder %s42, 1
      %p60 = por %p58, %p59
      %p61 = scmp.ne.s32.totalorder %s50, %s51
      %p62 = scmp.eq.s32.totalorder %s42, 0
      %p63 = por %p61, %p62
      %p64 = scmp.ne.s32.totalorder %s50, %s51
      %p65 = scmp.eq.s32.totalorder %s43, 1
      %p66 = por %p64, %p65
      %p68 = scmp.ne.s32.totalorder %s51, %s67
      %p69 = scmp.eq.s32.totalorder %s43, 0
      %p70 = por %p68, %p69
      %s72 = sadd.s32 %s71, 1
      %p75 = scmp.eq.s32.totalorder %s37, 1
      %p76 = scmp.ne.s32.totalorder %s71, %s73
      %p77 = scmp.eq.s32.totalorder %s37, 0
      %p78 = por %p76, %p77
      %p79 = scmp.ne.s32.totalorder %s71, %s73
      %p80 = scmp.eq.s32.totalorder %s42, 1
      %p81 = por %p79, %p80
      %p82 = scmp.ne.s32.totalorder %s73, %s74
      %p83 = scmp.eq.s32.totalorder %s42, 0
      %p84 = por %p82, %p83
      %p85 = scmp.ne.s32.totalorder %s73, %s74
      %p86 = scmp.eq.s32.totalorder %s43, 1
      %p87 = por %p85, %p86
      %p89 = scmp.ne.s32.totalorder %s74, %s88
      %p90 = scmp.eq.s32.totalorder %s43, 0
      %p91 = por %p89, %p90
      %s93 = sadd.s32 %s92, 1
      %p96 = scmp.eq.s32.totalorder %s37, 1
      %p97 = scmp.ne.s32.totalorder %s92, %s94
      %p98 = scmp.eq.s32.totalorder %s37, 0
      %p99 = por %p97, %p98
      %p100 = scmp.ne.s32.totalorder %s92, %s94
      %p101 = scmp.eq.s32.totalorder %s42, 1
      %p102 = por %p100, %p101
      %p103 = scmp.ne.s32.totalorder %s94, %s95
      %p104 = scmp.eq.s32.totalorder %s42, 0
      %p105 = por %p103, %p104
      %p106 = scmp.ne.s32.totalorder %s94, %s95
      %p107 = scmp.eq.s32.totalorder %s43, 1
      %p108 = por %p106, %p107
      %p110 = scmp.ne.s32.totalorder %s95, %s109
      %p111 = scmp.eq.s32.totalorder %s43, 0
      %p112 = por %p110, %p111
      %s114 = sadd.s32 %s113, 1
      %p117 = scmp.eq.s32.totalorder %s37, 1
      %p118 = scmp.ne.s32.totalorder %s113, %s115
      %p119 = scmp.eq.s32.totalorder %s37, 0
      %p120 = por %p118, %p119
      %p121 = scmp.ne.s32.totalorder %s113, %s115
      %p122 = scmp.eq.s32.totalorder %s42, 1
      %p123 = por %p121, %p122
      %p124 = scmp.ne.s32.totalorder %s115, %s116
      %p125 = scmp.eq.s32.totalorder %s42, 0
      %p126 = por %p124, %p125
      %p127 = scmp.ne.s32.totalorder %s115, %s116
      %p128 = scmp.eq.s32.totalorder %s43, 1
      %p129 = por %p127, %p128
      %p131 = scmp.ne.s32.totalorder %s116, %s130
      %p132 = scmp.eq.s32.totalorder %s43, 0
      %p133 = por %p131, %p132
      %s135 = sadd.s32 %s134, 1
      %p138 = scmp.eq.s32.totalorder %s37, 1
      %p139 = scmp.ne.s32.totalorder %s134, %s136
      %p140 = scmp.eq.s32.totalorder %s37, 0
      %p141 = por %p139, %p140
      %p142 = scmp.ne.s32.totalorder %s134, %s136
      %p143 = scmp.eq.s32.totalorder %s42, 1
      %p144 = por %p142, %p143
      %p145 = scmp.ne.s32.totalorder %s136, %s137
      %p146 = scmp.eq.s32.totalorder %s42, 0
      %p147 = por %p145, %p146
      %p148 = scmp.ne.s32.totalorder %s136, %s137
      %p149 = scmp.eq.s32.totalorder %s43, 1
      %p150 = por %p148, %p149
      %p152 = scmp.ne.s32.totalorder %s137, %s151
      %p153 = scmp.eq.s32.totalorder %s43, 0
      %p154 = por %p152, %p153
      %s156 = sadd.s32 %s155, 1
      %p159 = scmp.eq.s32.totalorder %s37, 1
      %p160 = scmp.ne.s32.totalorder %s155, %s157
      %p161 = scmp.eq.s32.totalorder %s37, 0
      %p162 = por %p160, %p161
      %p163 = scmp.ne.s32.totalorder %s155, %s157
      %p164 = scmp.eq.s32.totalorder %s42, 1
      %p165 = por %p163, %p164
      %p166 = scmp.ne.s32.totalorder %s157, %s158
      %p167 = scmp.eq.s32.totalorder %s42, 0
      %p168 = por %p166, %p167
      %p169 = scmp.ne.s32.totalorder %s157, %s158
      %p170 = scmp.eq.s32.totalorder %s43, 1
      %p171 = por %p169, %p170
      %p173 = scmp.ne.s32.totalorder %s158, %s172
      %p174 = scmp.eq.s32.totalorder %s43, 0
      %p175 = por %p173, %p174
      %s177 = sadd.s32 %s176, 1
      %p180 = scmp.eq.s32.totalorder %s37, 1
      %p181 = scmp.ne.s32.totalorder %s176, %s178
      %p182 = scmp.eq.s32.totalorder %s37, 0
      %p183 = por %p181, %p182
      %p184 = scmp.ne.s32.totalorder %s176, %s178
      %p185 = scmp.eq.s32.totalorder %s42, 1
      %p186 = por %p184, %p185
      %p187 = scmp.ne.s32.totalorder %s178, %s179
      %p188 = scmp.eq.s32.totalorder %s42, 0
      %p189 = por %p187, %p188
      %p190 = scmp.ne.s32.totalorder %s178, %s179
      %p191 = scmp.eq.s32.totalorder %s43, 1
      %p192 = por %p190, %p191
      %p194 = scmp.ne.s32.totalorder %s179, %s193
      %p195 = scmp.eq.s32.totalorder %s43, 0
      %p196 = por %p194, %p195
      %s198 = sadd.s32 %s197, 1
      %p201 = scmp.eq.s32.totalorder %s37, 1
      %p202 = scmp.ne.s32.totalorder %s197, %s199
      %p203 = scmp.eq.s32.totalorder %s37, 0
      %p204 = por %p202, %p203
      %p205 = scmp.ne.s32.totalorder %s197, %s199
      %p206 = scmp.eq.s32.totalorder %s42, 1
      %p207 = por %p205, %p206
      %p208 = scmp.ne.s32.totalorder %s199, %s200
      %p209 = scmp.eq.s32.totalorder %s42, 0
      %p210 = por %p208, %p209
      %p211 = scmp.ne.s32.totalorder %s199, %s200
      %p212 = scmp.eq.s32.totalorder %s43, 1
      %p213 = por %p211, %p212
      %p215 = scmp.ne.s32.totalorder %s200, %s214
      %p216 = scmp.eq.s32.totalorder %s43, 0
      %p217 = por %p215, %p216
      %s219 = sadd.s32 %s218, 1
      %p222 = scmp.eq.s32.totalorder %s37, 1
      %p223 = scmp.ne.s32.totalorder %s218, %s220
      %p224 = scmp.eq.s32.totalorder %s37, 0
      %p225 = por %p223, %p224
      %p226 = scmp.ne.s32.totalorder %s218, %s220
      %p227 = scmp.eq.s32.totalorder %s42, 1
      %p228 = por %p226, %p227
      %p229 = scmp.ne.s32.totalorder %s220, %s221
      %p230 = scmp.eq.s32.totalorder %s42, 0
      %p231 = por %p229, %p230
      %p232 = scmp.ne.s32.totalorder %s220, %s221
      %p233 = scmp.eq.s32.totalorder %s43, 1
      %p234 = por %p232, %p233
      %p236 = scmp.ne.s32.totalorder %s221, %s235
      %p237 = scmp.eq.s32.totalorder %s43, 0
      %p238 = por %p236, %p237
      %s240 = sadd.s32 %s239, 1
      %p243 = scmp.eq.s32.totalorder %s37, 1
      %p244 = scmp.ne.s32.totalorder %s239, %s241
      %p245 = scmp.eq.s32.totalorder %s37, 0
      %p246 = por %p244, %p245
      %p247 = scmp.ne.s32.totalorder %s239, %s241
      %p248 = scmp.eq.s32.totalorder %s42, 1
      %p249 = por %p247, %p248
      %p250 = scmp.ne.s32.totalorder %s241, %s242
      %p251 = scmp.eq.s32.totalorder %s42, 0
      %p252 = por %p250, %p251
      %p253 = scmp.ne.s32.totalorder %s241, %s242
      %p254 = scmp.eq.s32.totalorder %s43, 1
      %p255 = por %p253, %p254
      %p257 = scmp.ne.s32.totalorder %s242, %s256
      %p258 = scmp.eq.s32.totalorder %s43, 0
      %p259 = por %p257, %p258
      %s261 = sadd.s32 %s260, 1
      %p264 = scmp.eq.s32.totalorder %s37, 1
      %p265 = scmp.ne.s32.totalorder %s260, %s262
      %p266 = scmp.eq.s32.totalorder %s37, 0
      %p267 = por %p265, %p266
      %p268 = scmp.ne.s32.totalorder %s260, %s262
      %p269 = scmp.eq.s32.totalorder %s42, 1
      %p270 = por %p268, %p269
      %p271 = scmp.ne.s32.totalorder %s262, %s263
      %p272 = scmp.eq.s32.totalorder %s42, 0
      %p273 = por %p271, %p272
      %p274 = scmp.ne.s32.totalorder %s262, %s263
      %p275 = scmp.eq.s32.totalorder %s43, 1
      %p276 = por %p274, %p275
      %p278 = scmp.ne.s32.totalorder %s263, %s277
      %p279 = scmp.eq.s32.totalorder %s43, 0
      %p280 = por %p278, %p279
      %s282 = sadd.s32 %s281, 1
      %p285 = scmp.eq.s32.totalorder %s37, 1
      %p286 = scmp.ne.s32.totalorder %s281, %s283
      %p287 = scmp.eq.s32.totalorder %s37, 0
      %p288 = por %p286, %p287
      %p289 = scmp.ne.s32.totalorder %s281, %s283
      %p290 = scmp.eq.s32.totalorder %s42, 1
      %p291 = por %p289, %p290
      %p292 = scmp.ne.s32.totalorder %s283, %s284
      %p293 = scmp.eq.s32.totalorder %s42, 0
      %p294 = por %p292, %p293
      %p295 = scmp.ne.s32.totalorder %s283, %s284
      %p296 = scmp.eq.s32.totalorder %s43, 1
      %p297 = por %p295, %p296
      %p299 = scmp.ne.s32.totalorder %s284, %s298
      %p300 = scmp.eq.s32.totalorder %s43, 0
      %p301 = por %p299, %p300
      %s303 = sadd.s32 %s302, 1
      %p306 = scmp.eq.s32.totalorder %s37, 1
      %p307 = scmp.ne.s32.totalorder %s302, %s304
      %p308 = scmp.eq.s32.totalorder %s37, 0
      %p309 = por %p307, %p308
      %p310 = scmp.ne.s32.totalorder %s302, %s304
      %p311 = scmp.eq.s32.totalorder %s42, 1
      %p312 = por %p310, %p311
      %p313 = scmp.ne.s32.totalorder %s304, %s305
      %p314 = scmp.eq.s32.totalorder %s42, 0
      %p315 = por %p313, %p314
      %p316 = scmp.ne.s32.totalorder %s304, %s305
      %p317 = scmp.eq.s32.totalorder %s43, 1
      %p318 = por %p316, %p317
      %p320 = scmp.ne.s32.totalorder %s305, %s319
      %p321 = scmp.eq.s32.totalorder %s43, 0
      %p322 = por %p320, %p321
      %s324 = sadd.s32 %s323, 1
      %p327 = scmp.eq.s32.totalorder %s37, 1
      %p328 = scmp.ne.s32.totalorder %s323, %s325
      %p329 = scmp.eq.s32.totalorder %s37, 0
      %p330 = por %p328, %p329
      %p331 = scmp.ne.s32.totalorder %s323, %s325
      %p332 = scmp.eq.s32.totalorder %s42, 1
      %p333 = por %p331, %p332
      %p334 = scmp.ne.s32.totalorder %s325, %s326
      %p335 = scmp.eq.s32.totalorder %s42, 0
      %p336 = por %p334, %p335
      %p337 = scmp.ne.s32.totalorder %s325, %s326
      %p338 = scmp.eq.s32.totalorder %s43, 1
      %p339 = por %p337, %p338
      %p341 = scmp.ne.s32.totalorder %s326, %s340
      %p342 = scmp.eq.s32.totalorder %s43, 0
      %p343 = por %p341, %p342
      %s345 = sadd.s32 %s344, 1
      %p348 = scmp.eq.s32.totalorder %s37, 1
      %p349 = scmp.ne.s32.totalorder %s344, %s346
      %p350 = scmp.eq.s32.totalorder %s37, 0
      %p351 = por %p349, %p350
      %p352 = scmp.ne.s32.totalorder %s344, %s346
      %p353 = scmp.eq.s32.totalorder %s42, 1
      %p354 = por %p352, %p353
      %p355 = scmp.ne.s32.totalorder %s346, %s347
      %p356 = scmp.eq.s32.totalorder %s42, 0
      %p357 = por %p355, %p356
      %p358 = scmp.ne.s32.totalorder %s346, %s347
      %p359 = scmp.eq.s32.totalorder %s43, 1
      %p360 = por %p358, %p359
      %p362 = scmp.ne.s32.totalorder %s347, %s361
      %p363 = scmp.eq.s32.totalorder %s43, 0
      %p364 = por %p362, %p363
      %s366 = sadd.s32 %s365, 1
      %p369 = scmp.eq.s32.totalorder %s37, 1
      %p370 = scmp.ne.s32.totalorder %s365, %s367
      %p371 = scmp.eq.s32.totalorder %s37, 0
      %p372 = por %p370, %p371
      %p373 = scmp.ne.s32.totalorder %s365, %s367
      %p374 = scmp.eq.s32.totalorder %s42, 1
      %p375 = por %p373, %p374
      %p376 = scmp.ne.s32.totalorder %s367, %s368
      %p377 = scmp.eq.s32.totalorder %s42, 0
      %p378 = por %p376, %p377
      %p379 = scmp.ne.s32.totalorder %s367, %s368
      %p380 = scmp.eq.s32.totalorder %s43, 1
      %p381 = por %p379, %p380
      %p383 = scmp.ne.s32.totalorder %s368, %s382
      %p384 = scmp.eq.s32.totalorder %s43, 0
      %p385 = por %p383, %p384
      %s387 = sadd.s32 %s386, 1
      %p390 = scmp.eq.s32.totalorder %s37, 1
      %p391 = scmp.ne.s32.totalorder %s386, %s388
      %p392 = scmp.eq.s32.totalorder %s37, 0
      %p393 = por %p391, %p392
      %p394 = scmp.ne.s32.totalorder %s386, %s388
      %p395 = scmp.eq.s32.totalorder %s42, 1
      %p396 = por %p394, %p395
      %p397 = scmp.ne.s32.totalorder %s388, %s389
      %p398 = scmp.eq.s32.totalorder %s42, 0
      %p399 = por %p397, %p398
      %p400 = scmp.ne.s32.totalorder %s388, %s389
      %p401 = scmp.eq.s32.totalorder %s43, 1
      %p402 = por %p400, %p401
      %p404 = scmp.ne.s32.totalorder %s389, %s403
      %p405 = scmp.eq.s32.totalorder %s43, 0
      %p406 = por %p404, %p405
      %s408 = sadd.s32 %s407, 1
      %p411 = scmp.eq.s32.totalorder %s37, 1
      %p412 = scmp.ne.s32.totalorder %s407, %s409
      %p413 = scmp.eq.s32.totalorder %s37, 0
      %p414 = por %p412, %p413
      %p415 = scmp.ne.s32.totalorder %s407, %s409
      %p416 = scmp.eq.s32.totalorder %s42, 1
      %p417 = por %p415, %p416
      %p418 = scmp.ne.s32.totalorder %s409, %s410
      %p419 = scmp.eq.s32.totalorder %s42, 0
      %p420 = por %p418, %p419
      %p421 = scmp.ne.s32.totalorder %s409, %s410
      %p422 = scmp.eq.s32.totalorder %s43, 1
      %p423 = por %p421, %p422
      %p425 = scmp.ne.s32.totalorder %s410, %s424
      %p426 = scmp.eq.s32.totalorder %s43, 0
      %p427 = por %p425, %p426
      %s429 = sadd.s32 %s428, 1
      %p432 = scmp.eq.s32.totalorder %s37, 1
      %p433 = scmp.ne.s32.totalorder %s428, %s430
      %p434 = scmp.eq.s32.totalorder %s37, 0
      %p435 = por %p433, %p434
      %p436 = scmp.ne.s32.totalorder %s428, %s430
      %p437 = scmp.eq.s32.totalorder %s42, 1
      %p438 = por %p436, %p437
      %p439 = scmp.ne.s32.totalorder %s430, %s431
      %p440 = scmp.eq.s32.totalorder %s42, 0
      %p441 = por %p439, %p440
      %p442 = scmp.ne.s32.totalorder %s430, %s431
      %p443 = scmp.eq.s32.totalorder %s43, 1
      %p444 = por %p442, %p443
      %p446 = scmp.ne.s32.totalorder %s431, %s445
      %p447 = scmp.eq.s32.totalorder %s43, 0
      %p448 = por %p446, %p447
      %s450 = sadd.s32 %s449, 1
      %p453 = scmp.eq.s32.totalorder %s37, 1
      %p454 = scmp.ne.s32.totalorder %s449, %s451
      %p455 = scmp.eq.s32.totalorder %s37, 0
      %p456 = por %p454, %p455
      %p457 = scmp.ne.s32.totalorder %s449, %s451
      %p458 = scmp.eq.s32.totalorder %s42, 1
      %p459 = por %p457, %p458
      %p460 = scmp.ne.s32.totalorder %s451, %s452
      %p461 = scmp.eq.s32.totalorder %s42, 0
      %p462 = por %p460, %p461
      %p463 = scmp.ne.s32.totalorder %s451, %s452
      %p464 = scmp.eq.s32.totalorder %s43, 1
      %p465 = por %p463, %p464
      %p467 = scmp.ne.s32.totalorder %s452, %s466
      %p468 = scmp.eq.s32.totalorder %s43, 0
      %p469 = por %p467, %p468
      %s471 = sadd.s32 %s470, 1
      %p474 = scmp.eq.s32.totalorder %s37, 1
      %p475 = scmp.ne.s32.totalorder %s470, %s472
      %p476 = scmp.eq.s32.totalorder %s37, 0
      %p477 = por %p475, %p476
      %p478 = scmp.ne.s32.totalorder %s470, %s472
      %p479 = scmp.eq.s32.totalorder %s42, 1
      %p480 = por %p478, %p479
      %p481 = scmp.ne.s32.totalorder %s472, %s473
      %p482 = scmp.eq.s32.totalorder %s42, 0
      %p483 = por %p481, %p482
      %p484 = scmp.ne.s32.totalorder %s472, %s473
      %p485 = scmp.eq.s32.totalorder %s43, 1
      %p486 = por %p484, %p485
      %p488 = scmp.ne.s32.totalorder %s473, %s487
      %p489 = scmp.eq.s32.totalorder %s43, 0
      %p490 = por %p488, %p489
      %s491 = ssub.s32 %s37, %s44
      %p492 = scmp.eq.s32.totalorder %s491, 0
      %s494 = sadd.s32 %s493, 1
      %s495 = scalar_select %p492, %s493, %s494
      %p498 = pneg %p492
      %p499 = scmp.eq.s32.totalorder %s37, 1
      %p500 = por %p498, %p499
      %p501 = scmp.ne.s32.totalorder %s493, %s496
      %p502 = scmp.eq.s32.totalorder %s37, 0
      %p503 = por %p501, %p502
      %p504 = scmp.ne.s32.totalorder %s493, %s496
      %p505 = scmp.eq.s32.totalorder %s42, 1
      %p506 = por %p504, %p505
      %p507 = scmp.ne.s32.totalorder %s496, %s497
      %p508 = scmp.eq.s32.totalorder %s42, 0
      %p509 = por %p507, %p508
      %p510 = scmp.ne.s32.totalorder %s496, %s497
      %p511 = scmp.eq.s32.totalorder %s43, 1
      %p512 = por %p510, %p511
      %p514 = scmp.ne.s32.totalorder %s497, %s513
      %p515 = scmp.eq.s32.totalorder %s43, 0
      %p516 = por %p514, %p515
      %p517 = scmp.le.s32.totalorder 1, %s37
      %p518 = scmp.lt.s32.totalorder %s37, 3
      %p519 = pnand %p517, %p518
      %p520 = pneg %p519
      // Predicated region
      $region9: #{adapter_forward.1} parent=5 // pred_check
        _
      $region10: #{adapter_forward.1} parent=5 // pred_check_branch
        %522 = sbr.rel (%p519) target = $region12
      $region11: #{adapter_forward.1} parent=5 // pred_region
        %s523 = ssub.s32 %s37, 1
        // Predicated region
        $region13: #{adapter_forward.1} parent=11 // pred_check
          %p524 = pneg %p84
        $region14: #{adapter_forward.1} parent=11 // pred_check_branch
          %526 = sbr.rel (%p524) target = $region16
        $region15: #{adapter_forward.1} parent=11 // pred_region
          %s528 = ssub.s32 256, 256
          %529 = vsyncadd [#allocation6], %s528
          %s530 = sshll.u32 [#allocation5], 4
          %s531 = int_to_ptr.vmem [resolvable:$true] %s530
          %536 = dma.hbm_to_vmem [thread:$0]  %s1, 256, %s531, [#allocation6], 64, 64, 4
        $region16: #{adapter_forward.1} parent=11 // pred_fallthru
          _
        // Predicated region
        $region17: #{adapter_forward.1} parent=11 // pred_check
          %p537 = pneg %p105
        $region18: #{adapter_forward.1} parent=11 // pred_check_branch
          %539 = sbr.rel (%p537) target = $region20
        $region19: #{adapter_forward.1} parent=11 // pred_region
          _
        $region20: #{adapter_forward.1} parent=11 // pred_fallthru
          _
        // Predicated region
        $region21: #{adapter_forward.1} parent=11 // pred_check
          %p540 = pneg %p126
        $region22: #{adapter_forward.1} parent=11 // pred_check_branch
          %542 = sbr.rel (%p540) target = $region24
        $region23: #{adapter_forward.1} parent=11 // pred_region
          %s544 = ssub.s32 512, 512
          %545 = vsyncadd [#allocation6], %s544
          %s546 = sshll.u32 [#allocation7], 4
          %s547 = int_to_ptr.vmem [resolvable:$true] %s546
          %552 = dma.hbm_to_vmem [thread:$0]  %s3, 512, %s547, [#allocation6], 64, 64, 4
        $region24: #{adapter_forward.1} parent=11 // pred_fallthru
          _
        // Predicated region
        $region25: #{adapter_forward.1} parent=11 // pred_check
          %p553 = pneg %p147
        $region26: #{adapter_forward.1} parent=11 // pred_check_branch
          %555 = sbr.rel (%p553) target = $region28
        $region27: #{adapter_forward.1} parent=11 // pred_region
          _
        $region28: #{adapter_forward.1} parent=11 // pred_fallthru
          _
        // Predicated region
        $region29: #{adapter_forward.1} parent=11 // pred_check
          %p556 = pneg %p168
        $region30: #{adapter_forward.1} parent=11 // pred_check_branch
          %558 = sbr.rel (%p556) target = $region32
        $region31: #{adapter_forward.1} parent=11 // pred_region
          %s560 = ssub.s32 512, 512
          %561 = vsyncadd [#allocation9], %s560
          %s562 = sshll.u32 [#allocation8], 4
          %s563 = int_to_ptr.vmem [resolvable:$true] %s562
          %568 = dma.hbm_to_vmem [thread:$0]  %s5, 512, %s563, [#allocation9], 64, 64, 4
        $region32: #{adapter_forward.1} parent=11 // pred_fallthru
          _
        // Predicated region
        $region33: #{adapter_forward.1} parent=11 // pred_check
          %p569 = pneg %p189
        $region34: #{adapter_forward.1} parent=11 // pred_check_branch
          %571 = sbr.rel (%p569) target = $region36
        $region35: #{adapter_forward.1} parent=11 // pred_region
          _
        $region36: #{adapter_forward.1} parent=11 // pred_fallthru
          _
        // Predicated region
        $region37: #{adapter_forward.1} parent=11 // pred_check
          %p572 = pneg %p210
        $region38: #{adapter_forward.1} parent=11 // pred_check_branch
          %574 = sbr.rel (%p572) target = $region40
        $region39: #{adapter_forward.1} parent=11 // pred_region
          %s576 = ssub.s32 512, 512
          %577 = vsyncadd [#allocation9], %s576
          %s578 = sshll.u32 [#allocation10], 4
          %s579 = int_to_ptr.vmem [resolvable:$true] %s578
          %584 = dma.hbm_to_vmem [thread:$0]  %s7, 512, %s579, [#allocation9], 64, 64, 4
        $region40: #{adapter_forward.1} parent=11 // pred_fallthru
          _
        // Predicated region
        $region41: #{adapter_forward.1} parent=11 // pred_check
          %p585 = pneg %p231
        $region42: #{adapter_forward.1} parent=11 // pred_check_branch
          %587 = sbr.rel (%p585) target = $region44
        $region43: #{adapter_forward.1} parent=11 // pred_region
          _
        $region44: #{adapter_forward.1} parent=11 // pred_fallthru
          _
        // Predicated region
        $region45: #{adapter_forward.1} parent=11 // pred_check
          %p588 = pneg %p252
        $region46: #{adapter_forward.1} parent=11 // pred_check_branch
          %590 = sbr.rel (%p588) target = $region48
        $region47: #{adapter_forward.1} parent=11 // pred_region
          %s592 = ssub.s32 256, 256
          %593 = vsyncadd [#allocation12], %s592
          %s594 = sshll.u32 [#allocation11], 4
          %s595 = int_to_ptr.vmem [resolvable:$true] %s594
          %600 = dma.hbm_to_vmem [thread:$0]  %s9, 256, %s595, [#allocation12], 64, 64, 4
        $region48: #{adapter_forward.1} parent=11 // pred_fallthru
          _
        // Predicated region
        $region49: #{adapter_forward.1} parent=11 // pred_check
          %p601 = pneg %p273
        $region50: #{adapter_forward.1} parent=11 // pred_check_branch
          %603 = sbr.rel (%p601) target = $region52
        $region51: #{adapter_forward.1} parent=11 // pred_region
          _
        $region52: #{adapter_forward.1} parent=11 // pred_fallthru
          _
        // Predicated region
        $region53: #{adapter_forward.1} parent=11 // pred_check
          %p604 = pneg %p294
        $region54: #{adapter_forward.1} parent=11 // pred_check_branch
          %606 = sbr.rel (%p604) target = $region56
        $region55: #{adapter_forward.1} parent=11 // pred_region
          _
        $region56: #{adapter_forward.1} parent=11 // pred_fallthru
          _
        // Predicated region
        $region57: #{adapter_forward.1} parent=11 // pred_check
          %p607 = pneg %p315
        $region58: #{adapter_forward.1} parent=11 // pred_check_branch
          %609 = sbr.rel (%p607) target = $region60
        $region59: #{adapter_forward.1} parent=11 // pred_region
          _
        $region60: #{adapter_forward.1} parent=11 // pred_fallthru
          _
        // Predicated region
        $region61: #{adapter_forward.1} parent=11 // pred_check
          %p610 = pneg %p336
        $region62: #{adapter_forward.1} parent=11 // pred_check_branch
          %612 = sbr.rel (%p610) target = $region64
        $region63: #{adapter_forward.1} parent=11 // pred_region
          %s614 = ssub.s32 256, 256
          %615 = vsyncadd [#allocation12], %s614
          %s616 = sshll.u32 [#allocation13], 4
          %s617 = int_to_ptr.vmem [resolvable:$true] %s616
          %622 = dma.hbm_to_vmem [thread:$0]  %s13, 256, %s617, [#allocation12], 64, 64, 4
        $region64: #{adapter_forward.1} parent=11 // pred_fallthru
          _
        // Predicated region
        $region65: #{adapter_forward.1} parent=11 // pred_check
          %p623 = pneg %p357
        $region66: #{adapter_forward.1} parent=11 // pred_check_branch
          %625 = sbr.rel (%p623) target = $region68
        $region67: #{adapter_forward.1} parent=11 // pred_region
          _
        $region68: #{adapter_forward.1} parent=11 // pred_fallthru
          _
        // Predicated region
        $region69: #{adapter_forward.1} parent=11 // pred_check
          %p626 = pneg %p378
        $region70: #{adapter_forward.1} parent=11 // pred_check_branch
          %628 = sbr.rel (%p626) target = $region72
        $region71: #{adapter_forward.1} parent=11 // pred_region
          _
        $region72: #{adapter_forward.1} parent=11 // pred_fallthru
          _
        // Predicated region
        $region73: #{adapter_forward.1} parent=11 // pred_check
          %p629 = pneg %p399
        $region74: #{adapter_forward.1} parent=11 // pred_check_branch
          %631 = sbr.rel (%p629) target = $region76
        $region75: #{adapter_forward.1} parent=11 // pred_region
          _
        $region76: #{adapter_forward.1} parent=11 // pred_fallthru
          _
        // Predicated region
        $region77: #{adapter_forward.1} parent=11 // pred_check
          %p632 = pneg %p420
        $region78: #{adapter_forward.1} parent=11 // pred_check_branch
          %634 = sbr.rel (%p632) target = $region80
        $region79: #{adapter_forward.1} parent=11 // pred_region
          _
        $region80: #{adapter_forward.1} parent=11 // pred_fallthru
          _
        // Predicated region
        $region81: #{adapter_forward.1} parent=11 // pred_check
          %p635 = pneg %p441
        $region82: #{adapter_forward.1} parent=11 // pred_check_branch
          %637 = sbr.rel (%p635) target = $region84
        $region83: #{adapter_forward.1} parent=11 // pred_region
          _
        $region84: #{adapter_forward.1} parent=11 // pred_fallthru
          _
        // Predicated region
        $region85: #{adapter_forward.1} parent=11 // pred_check
          %p638 = pneg %p462
        $region86: #{adapter_forward.1} parent=11 // pred_check_branch
          %640 = sbr.rel (%p638) target = $region88
        $region87: #{adapter_forward.1} parent=11 // pred_region
          %s642 = ssub.s32 128, 128
          %643 = vsyncadd [#allocation15], %s642
          %s644 = sshll.u32 [#allocation14], 4
          %s645 = int_to_ptr.vmem [resolvable:$true] %s644
          %650 = dma.hbm_to_vmem [thread:$0]  %s19, 128, %s645, [#allocation15], 64, 64, 4
        $region88: #{adapter_forward.1} parent=11 // pred_fallthru
          _
        // Predicated region
        $region89: #{adapter_forward.1} parent=11 // pred_check
          %p651 = pneg %p483
        $region90: #{adapter_forward.1} parent=11 // pred_check_branch
          %653 = sbr.rel (%p651) target = $region92
        $region91: #{adapter_forward.1} parent=11 // pred_region
          _
        $region92: #{adapter_forward.1} parent=11 // pred_fallthru
          _
      $region12: #{adapter_forward.1} parent=5 // pred_fallthru
        _
      %p654 = scmp.lt.s32.totalorder %s37, 2
      // Predicated region
      $region93: #{adapter_forward.1} parent=5 // pred_check
        %p655 = pneg %p654
      $region94: #{adapter_forward.1} parent=5 // pred_check_branch
        %657 = sbr.rel (%p655) target = $region96
      $region95: #{adapter_forward.1} parent=5 // pred_region
        // Predicated region
        $region97: #{adapter_forward.1} parent=95 // pred_check
          %p658 = pneg %p57
        $region98: #{adapter_forward.1} parent=95 // pred_check_branch
          %660 = sbr.rel (%p658) target = $region100
        $region99: #{adapter_forward.1} parent=95 // pred_region
          %s661 = sand.u32 %s47, 1
          %s662 = scalar_lea.sflag [#allocation3], %s661
          %s663 = sand.u32 %s47, 1
          %s664 = smul.addr %s663, 8
          %s665 = scalar_lea.vmem [#allocation2], %s664
          %s667 = ssub.s32 128, 128
          %668 = vsyncadd %s662, %s667
          %s669 = smul.addr %s37, 128
          %s670 = scalar_lea.hbm %s0, %s669
          %s672 = sshll.u32 %s665, 4
          %s673 = int_to_ptr.vmem [resolvable:$true] %s672
          %675 = dma.hbm_to_vmem [thread:$0]  %s670, 128, %s673, %s662
        $region100: #{adapter_forward.1} parent=95 // pred_fallthru
          _
      $region96: #{adapter_forward.1} parent=5 // pred_fallthru
        _
      %p676 = scmp.le.s32.totalorder 1, %s37
      %p677 = scmp.lt.s32.totalorder %s37, 3
      %p678 = pnand %p676, %p677
      %p679 = pneg %p678
      // Predicated region
      $region101: #{adapter_forward.1} parent=5 // pred_check
        _
      $region102: #{adapter_forward.1} parent=5 // pred_check_branch
        %681 = sbr.rel (%p678) target = $region104
      $region103: #{adapter_forward.1} parent=5 // pred_region
        %s682 = ssub.s32 %s37, 1
        %s683 = sand.u32 %s50, 1
        %s684 = scalar_lea.sflag [#allocation3], %s683
        %s685 = sand.u32 %s50, 1
        %s686 = smul.addr %s685, 8
        %s687 = scalar_lea.vmem [#allocation2], %s686
        // Predicated region
        $region105: #{adapter_forward.1} parent=103 // pred_check
          %p688 = pneg %p63
        $region106: #{adapter_forward.1} parent=103 // pred_check_branch
          %690 = sbr.rel (%p688) target = $region108
        $region107: #{adapter_forward.1} parent=103 // pred_region
          %691 = dma.done %s684, 128
        $region108: #{adapter_forward.1} parent=103 // pred_fallthru
          _
        // Predicated region
        $region109: #{adapter_forward.1} parent=103 // pred_check
          %p692 = pneg %p84
        $region110: #{adapter_forward.1} parent=103 // pred_check_branch
          %694 = sbr.rel (%p692) target = $region112
        $region111: #{adapter_forward.1} parent=103 // pred_region
          %695 = dma.done [#allocation6], 256
        $region112: #{adapter_forward.1} parent=103 // pred_fallthru
          _
        // Predicated region
        $region113: #{adapter_forward.1} parent=103 // pred_check
          %p696 = pneg %p126
        $region114: #{adapter_forward.1} parent=103 // pred_check_branch
          %698 = sbr.rel (%p696) target = $region116
        $region115: #{adapter_forward.1} parent=103 // pred_region
          %699 = dma.done [#allocation6], 512
        $region116: #{adapter_forward.1} parent=103 // pred_fallthru
          _
        // Predicated region
        $region117: #{adapter_forward.1} parent=103 // pred_check
          %p700 = pneg %p168
        $region118: #{adapter_forward.1} parent=103 // pred_check_branch
          %702 = sbr.rel (%p700) target = $region120
        $region119: #{adapter_forward.1} parent=103 // pred_region
          %703 = dma.done [#allocation9], 512
        $region120: #{adapter_forward.1} parent=103 // pred_fallthru
          _
        // Predicated region
        $region121: #{adapter_forward.1} parent=103 // pred_check
          %p704 = pneg %p210
        $region122: #{adapter_forward.1} parent=103 // pred_check_branch
          %706 = sbr.rel (%p704) target = $region124
        $region123: #{adapter_forward.1} parent=103 // pred_region
          %707 = dma.done [#allocation9], 512
        $region124: #{adapter_forward.1} parent=103 // pred_fallthru
          _
        // Predicated region
        $region125: #{adapter_forward.1} parent=103 // pred_check
          %p708 = pneg %p252
        $region126: #{adapter_forward.1} parent=103 // pred_check_branch
          %710 = sbr.rel (%p708) target = $region128
        $region127: #{adapter_forward.1} parent=103 // pred_region
          %711 = dma.done [#allocation12], 256
        $region128: #{adapter_forward.1} parent=103 // pred_fallthru
          _
        // Predicated region
        $region129: #{adapter_forward.1} parent=103 // pred_check
          %p712 = pneg %p336
        $region130: #{adapter_forward.1} parent=103 // pred_check_branch
          %714 = sbr.rel (%p712) target = $region132
        $region131: #{adapter_forward.1} parent=103 // pred_region
          %715 = dma.done [#allocation12], 256
        $region132: #{adapter_forward.1} parent=103 // pred_fallthru
          _
        // Predicated region
        $region133: #{adapter_forward.1} parent=103 // pred_check
          %p716 = pneg %p462
        $region134: #{adapter_forward.1} parent=103 // pred_check_branch
          %718 = sbr.rel (%p716) target = $region136
        $region135: #{adapter_forward.1} parent=103 // pred_region
          %719 = dma.done [#allocation15], 128
        $region136: #{adapter_forward.1} parent=103 // pred_fallthru
          _
        %s720 = sand.u32 %s50, 1
        %s721 = scalar_lea.sflag [#allocation3], %s720
        %s722 = sand.u32 %s50, 1
        %s723 = smul.addr %s722, 8
        %s724 = scalar_lea.vmem [#allocation2], %s723
        %p725 = pneg %p63
        %p726 = pneg %p60
        %p727 = pneg %p84
        %p728 = pneg %p81
        %p729 = pneg %p105
        %p730 = pneg %p102
        %p731 = pneg %p126
        %p732 = pneg %p123
        %p733 = pneg %p147
        %p734 = pneg %p144
        %p735 = pneg %p168
        %p736 = pneg %p165
        %p737 = pneg %p189
        %p738 = pneg %p186
        %p739 = pneg %p210
        %p740 = pneg %p207
        %p741 = pneg %p231
        %p742 = pneg %p228
        %p743 = pneg %p252
        %p744 = pneg %p249
        %p745 = pneg %p273
        %p746 = pneg %p270
        %p747 = pneg %p294
        %p748 = pneg %p291
        %p749 = pneg %p315
        %p750 = pneg %p312
        %p751 = pneg %p336
        %p752 = pneg %p333
        %p753 = pneg %p357
        %p754 = pneg %p354
        %p755 = pneg %p378
        %p756 = pneg %p375
        %p757 = pneg %p399
        %p758 = pneg %p396
        %p759 = pneg %p420
        %p760 = pneg %p417
        %p761 = pneg %p441
        %p762 = pneg %p438
        %p763 = pneg %p462
        %p764 = pneg %p459
        %p765 = pneg %p483
        %p766 = pneg %p480
        %p767 = pneg %p509
        %p768 = pneg %p506
        %s769 = sand.u32 %s496, 1
        %s770 = scalar_lea.sflag [#allocation4], %s769
        %s771 = sand.u32 %s496, 1
        %s772 = smul.addr %s771, 8
        %s773 = scalar_lea.vmem [#allocation16], %s772
        %v775 = vld [vmem:[%s687] sm:$0xff]
        %v776 = vld [vmem:[#allocation5] sm:$0xf]
        %v777 = vld [vmem:[#allocation5 + $0x4] sm:$0xf]
        %v778 = vld [vmem:[#allocation5 + $0x8] sm:$0xf]
        %v779 = vld [vmem:[#allocation5 + $0xc] sm:$0xf]
        %v780 = vpack.c.bf16 %v775, %v775
        %v781 = vld [vmem:[%s2] sm:$0x1]
        %v783 = vlaneseq
        %v784 = vshrl.u32 %v783, 7
        %v785 = vsub.s32 0, %v784
        %v786 = vrot.slane %v781, %v785
        %v792 = vunpack.c.l.b16 %v776
        %v793 = vunpack.c.l.b16 %v777
        %v794 = vunpack.c.l.b16 %v778
        %v795 = vunpack.c.l.b16 %v779
        %v796 = vpack.c.b16 %v793, %v792
        %v797 = vpack.c.b16 %v795, %v794
        %vm800 = vcmask 261120
        %v802 = vsel %vm800, %v780, 0
        %804 = vmatprep.subr.bf16.mxu0 0
        %805 = vmatpush1.bf16.msra.mxu0 0
        %806 = vmatprep.subr.bf16.mxu0 0
        %807 = vmatpush1.bf16.msra.mxu0 0
        %808 = vmatprep.subr.bf16.mxu0 0
        %809 = vmatpush1.bf16.msra.mxu0 0
        %810 = vmatprep.subr.bf16.mxu0 0
        %811 = vmatpush1.bf16.msra.mxu0 0
        %812 = vmatprep.subr.bf16.mxu0 0
        %813 = vmatpush1.bf16.msra.mxu0 0
        %814 = vmatprep.subr.bf16.mxu0 0
        %815 = vmatpush1.bf16.msra.mxu0 0
        %816 = vmatprep.subr.bf16.mxu0 0
        %817 = vmatpush1.bf16.msra.mxu0 %v797
        %818 = vmatprep.subr.bf16.mxu0 0
        %819 = vmatpush1.bf16.msra.mxu0 %v796
        %820 = vmatprep.subr.bf16.mxu0 0
        %821 = vmatpush2.bf16.msra.mxu0 0
        %822 = vmatprep.subr.bf16.mxu0 0
        %823 = vmatpush2.bf16.msra.mxu0 0
        %824 = vmatprep.subr.bf16.mxu0 0
        %825 = vmatpush2.bf16.msra.mxu0 0
        %826 = vmatprep.subr.bf16.mxu0 0
        %827 = vmatpush2.bf16.msra.mxu0 0
        %828 = vmatprep.subr.bf16.mxu0 0
        %829 = vmatpush2.bf16.msra.mxu0 0
        %830 = vmatprep.subr.bf16.mxu0 0
        %831 = vmatpush2.bf16.msra.mxu0 0
        %832 = vmatprep.subr.bf16.mxu0 0
        %833 = vmatpush2.bf16.msra.mxu0 0
        %834 = vmatprep.subr.bf16.mxu0 0
        %835 = vmatpush2.bf16.msra.mxu0 0
        %836 = vmatprep.mubr.bf16.mxu0 0
        %837 = vmatmul.mubr.bf16.gmra.mxu0 %v802
        %v838 = vpop.f32.mrf.mxu0
        %v839 = vadd.f32 %v786, %v838
        %v840 = vpop.f32.mrf.mxu0
        %v841 = vpop.f32.mrf.mxu0
        %v842 = vpop.f32.mrf.mxu0
        %843 = vdwg.mxu0
        %v844 = vpack.c.bf16 %v839, %v839
        %v845 = vld [vmem:[#allocation7] sm:$0xf]
        %v846 = vld [vmem:[#allocation7 + $0x4] sm:$0xf]
        %v847 = vld [vmem:[#allocation7 + $0x8] sm:$0xf]
        %v848 = vld [vmem:[#allocation7 + $0xc] sm:$0xf]
        %v849 = vld [vmem:[%s4] sm:$0x1]
        %v850 = vld [vmem:[%s4 + $0x1] sm:$0x1]
        %v853 = vlaneseq
        %v854 = vshrl.u32 %v853, 7
        %v855 = vsub.s32 0, %v854
        %v856 = vrot.slane %v849, %v855
        %v857 = vlaneseq
        %v858 = vshrl.u32 %v857, 7
        %v859 = vsub.s32 0, %v858
        %v860 = vrot.slane %v850, %v859
        %v865 = vunpack.c.l.b16 %v845
        %v866 = vunpack.c.l.b16 %v846
        %v867 = vpack.c.b16 %v866, %v865
        %vm869 = vcmask 130048
        %v871 = vsel %vm869, %v844, 0
        %873 = vmatprep.subr.bf16.mxu0 0
        %874 = vmatpush1.bf16.msra.mxu0 0
        %875 = vmatprep.subr.bf16.mxu0 0
        %876 = vmatpush1.bf16.msra.mxu0 0
        %877 = vmatprep.subr.bf16.mxu0 0
        %878 = vmatpush1.bf16.msra.mxu0 0
        %879 = vmatprep.subr.bf16.mxu0 0
        %880 = vmatpush1.bf16.msra.mxu0 0
        %881 = vmatprep.subr.bf16.mxu0 0
        %882 = vmatpush1.bf16.msra.mxu0 0
        %883 = vmatprep.subr.bf16.mxu0 0
        %884 = vmatpush1.bf16.msra.mxu0 0
        %885 = vmatprep.subr.bf16.mxu0 0
        %886 = vmatpush1.bf16.msra.mxu0 0
        %887 = vmatprep.subr.bf16.mxu0 0
        %888 = vmatpush1.bf16.msra.mxu0 %v867
        %889 = vmatprep.subr.bf16.mxu0 0
        %890 = vmatpush2.bf16.msra.mxu0 0
        %891 = vmatprep.subr.bf16.mxu0 0
        %892 = vmatpush2.bf16.msra.mxu0 0
        %893 = vmatprep.subr.bf16.mxu0 0
        %894 = vmatpush2.bf16.msra.mxu0 0
        %895 = vmatprep.subr.bf16.mxu0 0
        %896 = vmatpush2.bf16.msra.mxu0 0
        %897 = vmatprep.subr.bf16.mxu0 0
        %898 = vmatpush2.bf16.msra.mxu0 0
        %899 = vmatprep.subr.bf16.mxu0 0
        %900 = vmatpush2.bf16.msra.mxu0 0
        %901 = vmatprep.subr.bf16.mxu0 0
        %902 = vmatpush2.bf16.msra.mxu0 0
        %903 = vmatprep.subr.bf16.mxu0 0
        %904 = vmatpush2.bf16.msra.mxu0 0
        %905 = vmatprep.mubr.bf16.mxu0 0
        %906 = vmatmul.mubr.bf16.gmra.mxu0 %v871
        %v907 = vpop.f32.mrf.mxu0
        %v908 = vadd.f32 %v856, %v907
        %v909 = vpop.f32.mrf.mxu0
        %v910 = vpop.f32.mrf.mxu0
        %v911 = vpop.f32.mrf.mxu0
        %912 = vdwg.mxu0
        %v915 = vunpack.c.l.b16 %v847
        %v916 = vunpack.c.l.b16 %v848
        %v917 = vpack.c.b16 %v916, %v915
        %919 = vmatprep.subr.bf16.mxu0 0
        %920 = vmatpush1.bf16.msra.mxu0 0
        %921 = vmatprep.subr.bf16.mxu0 0
        %922 = vmatpush1.bf16.msra.mxu0 0
        %923 = vmatprep.subr.bf16.mxu0 0
        %924 = vmatpush1.bf16.msra.mxu0 0
        %925 = vmatprep.subr.bf16.mxu0 0
        %926 = vmatpush1.bf16.msra.mxu0 0
        %927 = vmatprep.subr.bf16.mxu0 0
        %928 = vmatpush1.bf16.msra.mxu0 0
        %929 = vmatprep.subr.bf16.mxu0 0
        %930 = vmatpush1.bf16.msra.mxu0 0
        %931 = vmatprep.subr.bf16.mxu0 0
        %932 = vmatpush1.bf16.msra.mxu0 0
        %933 = vmatprep.subr.bf16.mxu0 0
        %934 = vmatpush1.bf16.msra.mxu0 %v917
        %935 = vmatprep.subr.bf16.mxu0 0
        %936 = vmatpush2.bf16.msra.mxu0 0
        %937 = vmatprep.subr.bf16.mxu0 0
        %938 = vmatpush2.bf16.msra.mxu0 0
        %939 = vmatprep.subr.bf16.mxu0 0
        %940 = vmatpush2.bf16.msra.mxu0 0
        %941 = vmatprep.subr.bf16.mxu0 0
        %942 = vmatpush2.bf16.msra.mxu0 0
        %943 = vmatprep.subr.bf16.mxu0 0
        %944 = vmatpush2.bf16.msra.mxu0 0
        %945 = vmatprep.subr.bf16.mxu0 0
        %946 = vmatpush2.bf16.msra.mxu0 0
        %947 = vmatprep.subr.bf16.mxu0 0
        %948 = vmatpush2.bf16.msra.mxu0 0
        %949 = vmatprep.subr.bf16.mxu0 0
        %950 = vmatpush2.bf16.msra.mxu0 0
        %951 = vmatprep.mubr.bf16.mxu0 0
        %952 = vmatmul.mubr.bf16.gmra.mxu0 %v871
        %v953 = vpop.f32.mrf.mxu0
        %v954 = vadd.f32 %v860, %v953
        %v955 = vpop.f32.mrf.mxu0
        %v956 = vpop.f32.mrf.mxu0
        %v957 = vpop.f32.mrf.mxu0
        %958 = vdwg.mxu0
        %v959 = vmul.f32 %v908, 0.35355338
        %v960 = vmul.f32 %v954, 0.35355338
        %v961 = vld [vmem:[#allocation8] sm:$0xf]
        %v962 = vld [vmem:[#allocation8 + $0x4] sm:$0xf]
        %v963 = vld [vmem:[#allocation8 + $0x8] sm:$0xf]
        %v964 = vld [vmem:[#allocation8 + $0xc] sm:$0xf]
        %v965 = vld [vmem:[%s6] sm:$0x1]
        %v966 = vld [vmem:[%s6 + $0x1] sm:$0x1]
        %v969 = vlaneseq
        %v970 = vshrl.u32 %v969, 7
        %v971 = vsub.s32 0, %v970
        %v972 = vrot.slane %v965, %v971
        %v973 = vlaneseq
        %v974 = vshrl.u32 %v973, 7
        %v975 = vsub.s32 0, %v974
        %v976 = vrot.slane %v966, %v975
        %v981 = vunpack.c.l.b16 %v961
        %v982 = vunpack.c.l.b16 %v962
        %v983 = vpack.c.b16 %v982, %v981
        %985 = vmatprep.subr.bf16.mxu0 0
        %986 = vmatpush1.bf16.msra.mxu0 0
        %987 = vmatprep.subr.bf16.mxu0 0
        %988 = vmatpush1.bf16.msra.mxu0 0
        %989 = vmatprep.subr.bf16.mxu0 0
        %990 = vmatpush1.bf16.msra.mxu0 0
        %991 = vmatprep.subr.bf16.mxu0 0
        %992 = vmatpush1.bf16.msra.mxu0 0
        %993 = vmatprep.subr.bf16.mxu0 0
        %994 = vmatpush1.bf16.msra.mxu0 0
        %995 = vmatprep.subr.bf16.mxu0 0
        %996 = vmatpush1.bf16.msra.mxu0 0
        %997 = vmatprep.subr.bf16.mxu0 0
        %998 = vmatpush1.bf16.msra.mxu0 0
        %999 = vmatprep.subr.bf16.mxu0 0
        %1000 = vmatpush1.bf16.msra.mxu0 %v983
        %1001 = vmatprep.subr.bf16.mxu0 0
        %1002 = vmatpush2.bf16.msra.mxu0 0
        %1003 = vmatprep.subr.bf16.mxu0 0
        %1004 = vmatpush2.bf16.msra.mxu0 0
        %1005 = vmatprep.subr.bf16.mxu0 0
        %1006 = vmatpush2.bf16.msra.mxu0 0
        %1007 = vmatprep.subr.bf16.mxu0 0
        %1008 = vmatpush2.bf16.msra.mxu0 0
        %1009 = vmatprep.subr.bf16.mxu0 0
        %1010 = vmatpush2.bf16.msra.mxu0 0
        %1011 = vmatprep.subr.bf16.mxu0 0
        %1012 = vmatpush2.bf16.msra.mxu0 0
        %1013 = vmatprep.subr.bf16.mxu0 0
        %1014 = vmatpush2.bf16.msra.mxu0 0
        %1015 = vmatprep.subr.bf16.mxu0 0
        %1016 = vmatpush2.bf16.msra.mxu0 0
        %1017 = vmatprep.mubr.bf16.mxu0 0
        %1018 = vmatmul.mubr.bf16.gmra.mxu0 %v871
        %v1019 = vpop.f32.mrf.mxu0
        %v1020 = vadd.f32 %v972, %v1019
        %v1021 = vpop.f32.mrf.mxu0
        %v1022 = vpop.f32.mrf.mxu0
        %v1023 = vpop.f32.mrf.mxu0
        %1024 = vdwg.mxu0
        %v1027 = vunpack.c.l.b16 %v963
        %v1028 = vunpack.c.l.b16 %v964
        %v1029 = vpack.c.b16 %v1028, %v1027
        %1031 = vmatprep.subr.bf16.mxu0 0
        %1032 = vmatpush1.bf16.msra.mxu0 0
        %1033 = vmatprep.subr.bf16.mxu0 0
        %1034 = vmatpush1.bf16.msra.mxu0 0
        %1035 = vmatprep.subr.bf16.mxu0 0
        %1036 = vmatpush1.bf16.msra.mxu0 0
        %1037 = vmatprep.subr.bf16.mxu0 0
        %1038 = vmatpush1.bf16.msra.mxu0 0
        %1039 = vmatprep.subr.bf16.mxu0 0
        %1040 = vmatpush1.bf16.msra.mxu0 0
        %1041 = vmatprep.subr.bf16.mxu0 0
        %1042 = vmatpush1.bf16.msra.mxu0 0
        %1043 = vmatprep.subr.bf16.mxu0 0
        %1044 = vmatpush1.bf16.msra.mxu0 0
        %1045 = vmatprep.subr.bf16.mxu0 0
        %1046 = vmatpush1.bf16.msra.mxu0 %v1029
        %1047 = vmatprep.subr.bf16.mxu0 0
        %1048 = vmatpush2.bf16.msra.mxu0 0
        %1049 = vmatprep.subr.bf16.mxu0 0
        %1050 = vmatpush2.bf16.msra.mxu0 0
        %1051 = vmatprep.subr.bf16.mxu0 0
        %1052 = vmatpush2.bf16.msra.mxu0 0
        %1053 = vmatprep.subr.bf16.mxu0 0
        %1054 = vmatpush2.bf16.msra.mxu0 0
        %1055 = vmatprep.subr.bf16.mxu0 0
        %1056 = vmatpush2.bf16.msra.mxu0 0
        %1057 = vmatprep.subr.bf16.mxu0 0
        %1058 = vmatpush2.bf16.msra.mxu0 0
        %1059 = vmatprep.subr.bf16.mxu0 0
        %1060 = vmatpush2.bf16.msra.mxu0 0
        %1061 = vmatprep.subr.bf16.mxu0 0
        %1062 = vmatpush2.bf16.msra.mxu0 0
        %1063 = vmatprep.mubr.bf16.mxu0 0
        %1064 = vmatmul.mubr.bf16.gmra.mxu0 %v871
        %v1065 = vpop.f32.mrf.mxu0
        %v1066 = vadd.f32 %v976, %v1065
        %v1067 = vpop.f32.mrf.mxu0
        %v1068 = vpop.f32.mrf.mxu0
        %v1069 = vpop.f32.mrf.mxu0
        %1070 = vdwg.mxu0
        %v1071 = vld [vmem:[#allocation10] sm:$0xf]
        %v1072 = vld [vmem:[#allocation10 + $0x4] sm:$0xf]
        %v1073 = vld [vmem:[#allocation10 + $0x8] sm:$0xf]
        %v1074 = vld [vmem:[#allocation10 + $0xc] sm:$0xf]
        %v1075 = vld [vmem:[%s8] sm:$0x1]
        %v1076 = vld [vmem:[%s8 + $0x1] sm:$0x1]
        %v1079 = vlaneseq
        %v1080 = vshrl.u32 %v1079, 7
        %v1081 = vsub.s32 0, %v1080
        %v1082 = vrot.slane %v1075, %v1081
        %v1083 = vlaneseq
        %v1084 = vshrl.u32 %v1083, 7
        %v1085 = vsub.s32 0, %v1084
        %v1086 = vrot.slane %v1076, %v1085
        %v1091 = vunpack.c.l.b16 %v1071
        %v1092 = vunpack.c.l.b16 %v1072
        %v1093 = vpack.c.b16 %v1092, %v1091
        %1095 = vmatprep.subr.bf16.mxu0 0
        %1096 = vmatpush1.bf16.msra.mxu0 0
        %1097 = vmatprep.subr.bf16.mxu0 0
        %1098 = vmatpush1.bf16.msra.mxu0 0
        %1099 = vmatprep.subr.bf16.mxu0 0
        %1100 = vmatpush1.bf16.msra.mxu0 0
        %1101 = vmatprep.subr.bf16.mxu0 0
        %1102 = vmatpush1.bf16.msra.mxu0 0
        %1103 = vmatprep.subr.bf16.mxu0 0
        %1104 = vmatpush1.bf16.msra.mxu0 0
        %1105 = vmatprep.subr.bf16.mxu0 0
        %1106 = vmatpush1.bf16.msra.mxu0 0
        %1107 = vmatprep.subr.bf16.mxu0 0
        %1108 = vmatpush1.bf16.msra.mxu0 0
        %1109 = vmatprep.subr.bf16.mxu0 0
        %1110 = vmatpush1.bf16.msra.mxu0 %v1093
        %1111 = vmatprep.subr.bf16.mxu0 0
        %1112 = vmatpush2.bf16.msra.mxu0 0
        %1113 = vmatprep.subr.bf16.mxu0 0
        %1114 = vmatpush2.bf16.msra.mxu0 0
        %1115 = vmatprep.subr.bf16.mxu0 0
        %1116 = vmatpush2.bf16.msra.mxu0 0
        %1117 = vmatprep.subr.bf16.mxu0 0
        %1118 = vmatpush2.bf16.msra.mxu0 0
        %1119 = vmatprep.subr.bf16.mxu0 0
        %1120 = vmatpush2.bf16.msra.mxu0 0
        %1121 = vmatprep.subr.bf16.mxu0 0
        %1122 = vmatpush2.bf16.msra.mxu0 0
        %1123 = vmatprep.subr.bf16.mxu0 0
        %1124 = vmatpush2.bf16.msra.mxu0 0
        %1125 = vmatprep.subr.bf16.mxu0 0
        %1126 = vmatpush2.bf16.msra.mxu0 0
        %1127 = vmatprep.mubr.bf16.mxu0 0
        %1128 = vmatmul.mubr.bf16.gmra.mxu0 %v871
        %v1129 = vpop.f32.mrf.mxu0
        %v1130 = vadd.f32 %v1082, %v1129
        %v1131 = vpop.f32.mrf.mxu0
        %v1132 = vpop.f32.mrf.mxu0
        %v1133 = vpop.f32.mrf.mxu0
        %1134 = vdwg.mxu0
        %v1137 = vunpack.c.l.b16 %v1073
        %v1138 = vunpack.c.l.b16 %v1074
        %v1139 = vpack.c.b16 %v1138, %v1137
        %1141 = vmatprep.subr.bf16.mxu0 0
        %1142 = vmatpush1.bf16.msra.mxu0 0
        %1143 = vmatprep.subr.bf16.mxu0 0
        %1144 = vmatpush1.bf16.msra.mxu0 0
        %1145 = vmatprep.subr.bf16.mxu0 0
        %1146 = vmatpush1.bf16.msra.mxu0 0
        %1147 = vmatprep.subr.bf16.mxu0 0
        %1148 = vmatpush1.bf16.msra.mxu0 0
        %1149 = vmatprep.subr.bf16.mxu0 0
        %1150 = vmatpush1.bf16.msra.mxu0 0
        %1151 = vmatprep.subr.bf16.mxu0 0
        %1152 = vmatpush1.bf16.msra.mxu0 0
        %1153 = vmatprep.subr.bf16.mxu0 0
        %1154 = vmatpush1.bf16.msra.mxu0 0
        %1155 = vmatprep.subr.bf16.mxu0 0
        %1156 = vmatpush1.bf16.msra.mxu0 %v1139
        %1157 = vmatprep.subr.bf16.mxu0 0
        %1158 = vmatpush2.bf16.msra.mxu0 0
        %1159 = vmatprep.subr.bf16.mxu0 0
        %1160 = vmatpush2.bf16.msra.mxu0 0
        %1161 = vmatprep.subr.bf16.mxu0 0
        %1162 = vmatpush2.bf16.msra.mxu0 0
        %1163 = vmatprep.subr.bf16.mxu0 0
        %1164 = vmatpush2.bf16.msra.mxu0 0
        %1165 = vmatprep.subr.bf16.mxu0 0
        %1166 = vmatpush2.bf16.msra.mxu0 0
        %1167 = vmatprep.subr.bf16.mxu0 0
        %1168 = vmatpush2.bf16.msra.mxu0 0
        %1169 = vmatprep.subr.bf16.mxu0 0
        %1170 = vmatpush2.bf16.msra.mxu0 0
        %1171 = vmatprep.subr.bf16.mxu0 0
        %1172 = vmatpush2.bf16.msra.mxu0 0
        %1173 = vmatprep.mubr.bf16.mxu0 0
        %1174 = vmatmul.mubr.bf16.gmra.mxu0 %v871
        %v1175 = vpop.f32.mrf.mxu0
        %v1176 = vadd.f32 %v1086, %v1175
        %v1177 = vpop.f32.mrf.mxu0
        %v1178 = vpop.f32.mrf.mxu0
        %v1179 = vpop.f32.mrf.mxu0
        %1180 = vdwg.mxu0
        %v1181 = vpack.c.bf16 %v959, %v959
        %v1182 = vpack.c.bf16 %v960, %v960
        %v1183 = vpack.c.bf16 %v1020, %v1020
        %v1184 = vpack.c.bf16 %v1066, %v1066
        %vm1185 = vcmask 64512
        %v1187 = vsel %vm1185, %v1181, 0
        %v1190 = vsel %vm1185, %v1183, 0
        %1192 = vmatprep.subr.bf16.mxu0 0
        %1193 = vmatpush1.bf16.xpose.msra.mxu0 0
        %1194 = vmatprep.subr.bf16.mxu0 0
        %1195 = vmatpush1.bf16.xpose.msra.mxu0 0
        %1196 = vmatprep.subr.bf16.mxu0 0
        %1197 = vmatpush1.bf16.xpose.msra.mxu0 0
        %1198 = vmatprep.subr.bf16.mxu0 0
        %1199 = vmatpush1.bf16.xpose.msra.mxu0 0
        %1200 = vmatprep.subr.bf16.mxu0 0
        %1201 = vmatpush1.bf16.xpose.msra.mxu0 0
        %1202 = vmatprep.subr.bf16.mxu0 0
        %1203 = vmatpush1.bf16.xpose.msra.mxu0 0
        %1204 = vmatprep.subr.bf16.mxu0 0
        %1205 = vmatpush1.bf16.xpose.msra.mxu0 0
        %1206 = vmatprep.subr.bf16.mxu0 0
        %1207 = vmatpush1.bf16.xpose.msra.mxu0 %v1190
        %1208 = vmatprep.subr.bf16.mxu0 0
        %1209 = vmatpush2.bf16.xpose.msra.mxu0 0
        %1210 = vmatprep.subr.bf16.mxu0 0
        %1211 = vmatpush2.bf16.xpose.msra.mxu0 0
        %1212 = vmatprep.subr.bf16.mxu0 0
        %1213 = vmatpush2.bf16.xpose.msra.mxu0 0
        %1214 = vmatprep.subr.bf16.mxu0 0
        %1215 = vmatpush2.bf16.xpose.msra.mxu0 0
        %1216 = vmatprep.subr.bf16.mxu0 0
        %1217 = vmatpush2.bf16.xpose.msra.mxu0 0
        %1218 = vmatprep.subr.bf16.mxu0 0
        %1219 = vmatpush2.bf16.xpose.msra.mxu0 0
        %1220 = vmatprep.subr.bf16.mxu0 0
        %1221 = vmatpush2.bf16.xpose.msra.mxu0 0
        %1222 = vmatprep.subr.bf16.mxu0 0
        %1223 = vmatpush2.bf16.xpose.msra.mxu0 0
        %1224 = vmatprep.mubr.bf16.mxu0 0
        %1225 = vmatmul.mubr.bf16.gmra.mxu0 %v1187
        %v1226 = vpop.f32.mrf.mxu0
        %v1227 = vadd.f32 0.0, %v1226
        %v1228 = vpop.f32.mrf.mxu0
        %v1229 = vpop.f32.mrf.mxu0
        %v1230 = vpop.f32.mrf.mxu0
        %1231 = vdwg.mxu0
        %v1233 = vsel %vm1185, %v1182, 0
        %v1236 = vsel %vm1185, %v1184, 0
        %1238 = vmatprep.subr.bf16.mxu0 0
        %1239 = vmatpush1.bf16.xpose.msra.mxu0 0
        %1240 = vmatprep.subr.bf16.mxu0 0
        %1241 = vmatpush1.bf16.xpose.msra.mxu0 0
        %1242 = vmatprep.subr.bf16.mxu0 0
        %1243 = vmatpush1.bf16.xpose.msra.mxu0 0
        %1244 = vmatprep.subr.bf16.mxu0 0
        %1245 = vmatpush1.bf16.xpose.msra.mxu0 0
        %1246 = vmatprep.subr.bf16.mxu0 0
        %1247 = vmatpush1.bf16.xpose.msra.mxu0 0
        %1248 = vmatprep.subr.bf16.mxu0 0
        %1249 = vmatpush1.bf16.xpose.msra.mxu0 0
        %1250 = vmatprep.subr.bf16.mxu0 0
        %1251 = vmatpush1.bf16.xpose.msra.mxu0 0
        %1252 = vmatprep.subr.bf16.mxu0 0
        %1253 = vmatpush1.bf16.xpose.msra.mxu0 %v1236
        %1254 = vmatprep.subr.bf16.mxu0 0
        %1255 = vmatpush2.bf16.xpose.msra.mxu0 0
        %1256 = vmatprep.subr.bf16.mxu0 0
        %1257 = vmatpush2.bf16.xpose.msra.mxu0 0
        %1258 = vmatprep.subr.bf16.mxu0 0
        %1259 = vmatpush2.bf16.xpose.msra.mxu0 0
        %1260 = vmatprep.subr.bf16.mxu0 0
        %1261 = vmatpush2.bf16.xpose.msra.mxu0 0
        %1262 = vmatprep.subr.bf16.mxu0 0
        %1263 = vmatpush2.bf16.xpose.msra.mxu0 0
        %1264 = vmatprep.subr.bf16.mxu0 0
        %1265 = vmatpush2.bf16.xpose.msra.mxu0 0
        %1266 = vmatprep.subr.bf16.mxu0 0
        %1267 = vmatpush2.bf16.xpose.msra.mxu0 0
        %1268 = vmatprep.subr.bf16.mxu0 0
        %1269 = vmatpush2.bf16.xpose.msra.mxu0 0
        %1270 = vmatprep.mubr.bf16.mxu0 0
        %1271 = vmatmul.mubr.bf16.gmra.mxu0 %v1233
        %v1272 = vpop.f32.mrf.mxu0
        %v1273 = vadd.f32 0.0, %v1272
        %v1274 = vpop.f32.mrf.mxu0
        %v1275 = vpop.f32.mrf.mxu0
        %v1276 = vpop.f32.mrf.mxu0
        %1277 = vdwg.mxu0
        %v1278 = vsel %vm1185, %v1227, -inf
        %1279 = vmax.xlane.f32.xlu0 %v1278
        %v1280 = vpop.xlane.xlu0 %1279
        %v1281 = vsel %vm1185, %v1273, -inf
        %1282 = vmax.xlane.f32.xlu0 %v1281
        %v1283 = vpop.xlane.xlu0 %1282
        %v1284 = vsub.f32 %v1227, %v1280
        %v1285 = vsub.f32 %v1273, %v1283
        %v1286 = vmul.f32 %v1284, 1.442695
        %v1287 = vpow.pop %v1286
        %v1288 = vmul.f32 %v1285, 1.442695
        %v1289 = vpow.pop %v1288
        %v1290 = vsel %vm1185, %v1287, 0.0
        %1291 = vadd.xlane.f32.xlu0 %v1290
        %v1292 = vpop.xlane.xlu0 %1291
        %v1293 = vsel %vm1185, %v1289, 0.0
        %1294 = vadd.xlane.f32.xlu0 %v1293
        %v1295 = vpop.xlane.xlu0 %1294
        %v1296 = vrcp.pop %v1292
        %v1297 = vrcp.pop %v1295
        %v1298 = vmul.f32 %v1287, %v1296
        %v1299 = vmul.f32 %v1289, %v1297
        %v1300 = vpack.c.bf16 %v1298, %v1298
        %v1301 = vpack.c.bf16 %v1299, %v1299
        %v1302 = vpack.c.bf16 %v1130, %v1130
        %v1303 = vpack.c.bf16 %v1176, %v1176
        %v1305 = vsel %vm1185, %v1300, 0
        %vm1307 = vcmask 1043456
        %v1309 = vsel %vm1307, %v1302, 0
        %1311 = vmatprep.subr.bf16.mxu0 0
        %1312 = vmatpush1.bf16.msra.mxu0 0
        %1313 = vmatprep.subr.bf16.mxu0 0
        %1314 = vmatpush1.bf16.msra.mxu0 0
        %1315 = vmatprep.subr.bf16.mxu0 0
        %1316 = vmatpush1.bf16.msra.mxu0 0
        %1317 = vmatprep.subr.bf16.mxu0 0
        %1318 = vmatpush1.bf16.msra.mxu0 0
        %1319 = vmatprep.subr.bf16.mxu0 0
        %1320 = vmatpush1.bf16.msra.mxu0 0
        %1321 = vmatprep.subr.bf16.mxu0 0
        %1322 = vmatpush1.bf16.msra.mxu0 0
        %1323 = vmatprep.subr.bf16.mxu0 0
        %1324 = vmatpush1.bf16.msra.mxu0 0
        %1325 = vmatprep.subr.bf16.mxu0 0
        %1326 = vmatpush1.bf16.msra.mxu0 %v1309
        %1327 = vmatprep.subr.bf16.mxu0 0
        %1328 = vmatpush2.bf16.msra.mxu0 0
        %1329 = vmatprep.subr.bf16.mxu0 0
        %1330 = vmatpush2.bf16.msra.mxu0 0
        %1331 = vmatprep.subr.bf16.mxu0 0
        %1332 = vmatpush2.bf16.msra.mxu0 0
        %1333 = vmatprep.subr.bf16.mxu0 0
        %1334 = vmatpush2.bf16.msra.mxu0 0
        %1335 = vmatprep.subr.bf16.mxu0 0
        %1336 = vmatpush2.bf16.msra.mxu0 0
        %1337 = vmatprep.subr.bf16.mxu0 0
        %1338 = vmatpush2.bf16.msra.mxu0 0
        %1339 = vmatprep.subr.bf16.mxu0 0
        %1340 = vmatpush2.bf16.msra.mxu0 0
        %1341 = vmatprep.subr.bf16.mxu0 0
        %1342 = vmatpush2.bf16.msra.mxu0 0
        %1343 = vmatprep.mubr.bf16.mxu0 0
        %1344 = vmatmul.mubr.bf16.gmra.mxu0 %v1305
        %v1345 = vpop.f32.mrf.mxu0
        %v1346 = vadd.f32 0.0, %v1345
        %v1347 = vpop.f32.mrf.mxu0
        %v1348 = vpop.f32.mrf.mxu0
        %v1349 = vpop.f32.mrf.mxu0
        %1350 = vdwg.mxu0
        %v1352 = vsel %vm1185, %v1301, 0
        %v1355 = vsel %vm1307, %v1303, 0
        %1357 = vmatprep.subr.bf16.mxu0 0
        %1358 = vmatpush1.bf16.msra.mxu0 0
        %1359 = vmatprep.subr.bf16.mxu0 0
        %1360 = vmatpush1.bf16.msra.mxu0 0
        %1361 = vmatprep.subr.bf16.mxu0 0
        %1362 = vmatpush1.bf16.msra.mxu0 0
        %1363 = vmatprep.subr.bf16.mxu0 0
        %1364 = vmatpush1.bf16.msra.mxu0 0
        %1365 = vmatprep.subr.bf16.mxu0 0
        %1366 = vmatpush1.bf16.msra.mxu0 0
        %1367 = vmatprep.subr.bf16.mxu0 0
        %1368 = vmatpush1.bf16.msra.mxu0 0
        %1369 = vmatprep.subr.bf16.mxu0 0
        %1370 = vmatpush1.bf16.msra.mxu0 0
        %1371 = vmatprep.subr.bf16.mxu0 0
        %1372 = vmatpush1.bf16.msra.mxu0 %v1355
        %1373 = vmatprep.subr.bf16.mxu0 0
        %1374 = vmatpush2.bf16.msra.mxu0 0
        %1375 = vmatprep.subr.bf16.mxu0 0
        %1376 = vmatpush2.bf16.msra.mxu0 0
        %1377 = vmatprep.subr.bf16.mxu0 0
        %1378 = vmatpush2.bf16.msra.mxu0 0
        %1379 = vmatprep.subr.bf16.mxu0 0
        %1380 = vmatpush2.bf16.msra.mxu0 0
        %1381 = vmatprep.subr.bf16.mxu0 0
        %1382 = vmatpush2.bf16.msra.mxu0 0
        %1383 = vmatprep.subr.bf16.mxu0 0
        %1384 = vmatpush2.bf16.msra.mxu0 0
        %1385 = vmatprep.subr.bf16.mxu0 0
        %1386 = vmatpush2.bf16.msra.mxu0 0
        %1387 = vmatprep.subr.bf16.mxu0 0
        %1388 = vmatpush2.bf16.msra.mxu0 0
        %1389 = vmatprep.mubr.bf16.mxu0 0
        %1390 = vmatmul.mubr.bf16.gmra.mxu0 %v1352
        %v1391 = vpop.f32.mrf.mxu0
        %v1392 = vadd.f32 0.0, %v1391
        %v1393 = vpop.f32.mrf.mxu0
        %v1394 = vpop.f32.mrf.mxu0
        %v1395 = vpop.f32.mrf.mxu0
        %1396 = vdwg.mxu0
        %v1397 = vpack.c.bf16 %v1346, %v1346
        %v1398 = vpack.c.bf16 %v1392, %v1392
        %v1399 = vld [vmem:[#allocation11] sm:$0xf]
        %v1400 = vld [vmem:[#allocation11 + $0x4] sm:$0xf]
        %v1402 = vsel %vm1185, %v1397, 0
        %v1405 = vsel %vm1307, %v1399, 0
        %1407 = vmatprep.subr.bf16.mxu0 0
        %1408 = vmatpush1.bf16.msra.mxu0 0
        %1409 = vmatprep.subr.bf16.mxu0 0
        %1410 = vmatpush1.bf16.msra.mxu0 0
        %1411 = vmatprep.subr.bf16.mxu0 0
        %1412 = vmatpush1.bf16.msra.mxu0 0
        %1413 = vmatprep.subr.bf16.mxu0 0
        %1414 = vmatpush1.bf16.msra.mxu0 0
        %1415 = vmatprep.subr.bf16.mxu0 0
        %1416 = vmatpush1.bf16.msra.mxu0 0
        %1417 = vmatprep.subr.bf16.mxu0 0
        %1418 = vmatpush1.bf16.msra.mxu0 0
        %1419 = vmatprep.subr.bf16.mxu0 0
        %1420 = vmatpush1.bf16.msra.mxu0 0
        %1421 = vmatprep.subr.bf16.mxu0 0
        %1422 = vmatpush1.bf16.msra.mxu0 %v1405
        %1423 = vmatprep.subr.bf16.mxu0 0
        %1424 = vmatpush2.bf16.msra.mxu0 0
        %1425 = vmatprep.subr.bf16.mxu0 0
        %1426 = vmatpush2.bf16.msra.mxu0 0
        %1427 = vmatprep.subr.bf16.mxu0 0
        %1428 = vmatpush2.bf16.msra.mxu0 0
        %1429 = vmatprep.subr.bf16.mxu0 0
        %1430 = vmatpush2.bf16.msra.mxu0 0
        %1431 = vmatprep.subr.bf16.mxu0 0
        %1432 = vmatpush2.bf16.msra.mxu0 0
        %1433 = vmatprep.subr.bf16.mxu0 0
        %1434 = vmatpush2.bf16.msra.mxu0 0
        %1435 = vmatprep.subr.bf16.mxu0 0
        %1436 = vmatpush2.bf16.msra.mxu0 0
        %1437 = vmatprep.subr.bf16.mxu0 0
        %1438 = vmatpush2.bf16.msra.mxu0 0
        %1439 = vmatprep.mubr.bf16.mxu0 0
        %1440 = vmatmul.mubr.bf16.gmra.mxu0 %v1402
        %v1441 = vpop.f32.mrf.mxu0
        %v1442 = vadd.f32 0.0, %v1441
        %v1443 = vpop.f32.mrf.mxu0
        %v1444 = vpop.f32.mrf.mxu0
        %v1445 = vpop.f32.mrf.mxu0
        %1446 = vdwg.mxu0
        %v1448 = vsel %vm1185, %v1398, 0
        %v1451 = vsel %vm1307, %v1400, 0
        %1453 = vmatprep.subr.bf16.mxu0 0
        %1454 = vmatpush1.bf16.msra.mxu0 0
        %1455 = vmatprep.subr.bf16.mxu0 0
        %1456 = vmatpush1.bf16.msra.mxu0 0
        %1457 = vmatprep.subr.bf16.mxu0 0
        %1458 = vmatpush1.bf16.msra.mxu0 0
        %1459 = vmatprep.subr.bf16.mxu0 0
        %1460 = vmatpush1.bf16.msra.mxu0 0
        %1461 = vmatprep.subr.bf16.mxu0 0
        %1462 = vmatpush1.bf16.msra.mxu0 0
        %1463 = vmatprep.subr.bf16.mxu0 0
        %1464 = vmatpush1.bf16.msra.mxu0 0
        %1465 = vmatprep.subr.bf16.mxu0 0
        %1466 = vmatpush1.bf16.msra.mxu0 0
        %1467 = vmatprep.subr.bf16.mxu0 0
        %1468 = vmatpush1.bf16.msra.mxu0 %v1451
        %1469 = vmatprep.subr.bf16.mxu0 0
        %1470 = vmatpush2.bf16.msra.mxu0 0
        %1471 = vmatprep.subr.bf16.mxu0 0
        %1472 = vmatpush2.bf16.msra.mxu0 0
        %1473 = vmatprep.subr.bf16.mxu0 0
        %1474 = vmatpush2.bf16.msra.mxu0 0
        %1475 = vmatprep.subr.bf16.mxu0 0
        %1476 = vmatpush2.bf16.msra.mxu0 0
        %1477 = vmatprep.subr.bf16.mxu0 0
        %1478 = vmatpush2.bf16.msra.mxu0 0
        %1479 = vmatprep.subr.bf16.mxu0 0
        %1480 = vmatpush2.bf16.msra.mxu0 0
        %1481 = vmatprep.subr.bf16.mxu0 0
        %1482 = vmatpush2.bf16.msra.mxu0 0
        %1483 = vmatprep.subr.bf16.mxu0 0
        %1484 = vmatpush2.bf16.msra.mxu0 0
        %1485 = vmatprep.mubr.bf16.mxu0 0
        %1486 = vmatmul.mubr.bf16.gmra.mxu0 %v1448
        %v1487 = vpop.f32.mrf.mxu0
        %v1488 = vadd.f32 0.0, %v1487
        %v1489 = vpop.f32.mrf.mxu0
        %v1490 = vpop.f32.mrf.mxu0
        %v1491 = vpop.f32.mrf.mxu0
        %1492 = vdwg.mxu0
        %v1493 = vsel %vm869, %v1442, 0.0
        %v1494 = vsel %vm869, %v1488, 0.0
        %v1495 = vadd.f32 %v1493, %v1494
        %v1496 = vld [vmem:[%s10] sm:$0x1]
        %v1498 = vlaneseq
        %v1499 = vshrl.u32 %v1498, 7
        %v1500 = vsub.s32 0, %v1499
        %v1501 = vrot.slane %v1496, %v1500
        %v1503 = vadd.f32 %v1495, %v1501
        %v1504 = vadd.f32 %v1503, %v839
        %v1505 = vld [vmem:[%s11] sm:$0x1]
        %v1506 = vld [vmem:[%s12] sm:$0x1]
        %v1507 = vsel %vm869, %v1504, 0.0
        %1508 = vadd.xlane.f32.xlu0 %v1507
        %v1509 = vpop.xlane.xlu0 %1508
        %v1510 = vrcp.pop 16.0
        %v1511 = vmul.f32 %v1509, %v1510
        %v1512 = vsub.f32 %v1504, %v1511
        %v1513 = vmul.f32 %v1512, %v1512
        %v1514 = vsel %vm869, %v1513, 0.0
        %1515 = vadd.xlane.f32.xlu0 %v1514
        %v1516 = vpop.xlane.xlu0 %1515
        %v1517 = vmul.f32 %v1516, %v1510
        %v1518 = vadd.f32 %v1517, 1e-12
        %v1519 = vrsqrt.pop %v1518
        %v1520 = vmul.f32 %v1512, %v1519
        %v1522 = vlaneseq
        %v1523 = vshrl.u32 %v1522, 7
        %v1524 = vsub.s32 0, %v1523
        %v1525 = vrot.slane %v1505, %v1524
        %v1527 = vmul.f32 %v1520, %v1525
        %v1529 = vlaneseq
        %v1530 = vshrl.u32 %v1529, 7
        %v1531 = vsub.s32 0, %v1530
        %v1532 = vrot.slane %v1506, %v1531
        %v1534 = vadd.f32 %v1527, %v1532
        %v1535 = vld [vmem:[#allocation13] sm:$0xf]
        %v1536 = vld [vmem:[#allocation13 + $0x4] sm:$0xf]
        %v1537 = vpack.c.bf16 %v1534, %v1534
        %v1538 = vld [vmem:[%s14] sm:$0x1]
        %v1540 = vlaneseq
        %v1541 = vshrl.u32 %v1540, 7
        %v1542 = vsub.s32 0, %v1541
        %v1543 = vrot.slane %v1538, %v1542
        %v1547 = vunpack.c.l.b16 %v1535
        %v1548 = vunpack.c.l.b16 %v1536
        %v1549 = vpack.c.b16 %v1548, %v1547
        %v1552 = vsel %vm869, %v1537, 0
        %1554 = vmatprep.subr.bf16.mxu0 0
        %1555 = vmatpush1.bf16.msra.mxu0 0
        %1556 = vmatprep.subr.bf16.mxu0 0
        %1557 = vmatpush1.bf16.msra.mxu0 0
        %1558 = vmatprep.subr.bf16.mxu0 0
        %1559 = vmatpush1.bf16.msra.mxu0 0
        %1560 = vmatprep.subr.bf16.mxu0 0
        %1561 = vmatpush1.bf16.msra.mxu0 0
        %1562 = vmatprep.subr.bf16.mxu0 0
        %1563 = vmatpush1.bf16.msra.mxu0 0
        %1564 = vmatprep.subr.bf16.mxu0 0
        %1565 = vmatpush1.bf16.msra.mxu0 0
        %1566 = vmatprep.subr.bf16.mxu0 0
        %1567 = vmatpush1.bf16.msra.mxu0 0
        %1568 = vmatprep.subr.bf16.mxu0 0
        %1569 = vmatpush1.bf16.msra.mxu0 %v1549
        %1570 = vmatprep.subr.bf16.mxu0 0
        %1571 = vmatpush2.bf16.msra.mxu0 0
        %1572 = vmatprep.subr.bf16.mxu0 0
        %1573 = vmatpush2.bf16.msra.mxu0 0
        %1574 = vmatprep.subr.bf16.mxu0 0
        %1575 = vmatpush2.bf16.msra.mxu0 0
        %1576 = vmatprep.subr.bf16.mxu0 0
        %1577 = vmatpush2.bf16.msra.mxu0 0
        %1578 = vmatprep.subr.bf16.mxu0 0
        %1579 = vmatpush2.bf16.msra.mxu0 0
        %1580 = vmatprep.subr.bf16.mxu0 0
        %1581 = vmatpush2.bf16.msra.mxu0 0
        %1582 = vmatprep.subr.bf16.mxu0 0
        %1583 = vmatpush2.bf16.msra.mxu0 0
        %1584 = vmatprep.subr.bf16.mxu0 0
        %1585 = vmatpush2.bf16.msra.mxu0 0
        %1586 = vmatprep.mubr.bf16.mxu0 0
        %1587 = vmatmul.mubr.bf16.gmra.mxu0 %v1552
        %v1588 = vpop.f32.mrf.mxu0
        %v1589 = vadd.f32 %v1543, %v1588
        %v1590 = vpop.f32.mrf.mxu0
        %v1591 = vpop.f32.mrf.mxu0
        %v1592 = vpop.f32.mrf.mxu0
        %1593 = vdwg.mxu0
        %v1594 = vmul.f32 %v1589, %v1589
        %v1595 = vmul.f32 %v1589, %v1594
        %v1596 = vmul.f32 %v1595, 0.044715
        %v1597 = vadd.f32 %v1589, %v1596
        %v1598 = vmul.f32 %v1597, 0.7978846
        %v1599 = vtanh.pop %v1598
        %v1600 = vadd.f32 %v1599, 1.0
        %v1601 = vmul.f32 %v1600, 0.5
        %v1602 = vmul.f32 %v1589, %v1601
        %v1603 = vld [vmem:[%s15] sm:$0xf]
        %v1604 = vld [vmem:[%s15 + $0x4] sm:$0xf]
        %v1605 = vld [vmem:[%s15 + $0x8] sm:$0xf]
        %v1606 = vld [vmem:[%s15 + $0xc] sm:$0xf]
        %v1607 = vpack.c.bf16 %v1602, %v1602
        %v1608 = vld [vmem:[%s16] sm:$0x1]
        %v1610 = vlaneseq
        %v1611 = vshrl.u32 %v1610, 7
        %v1612 = vsub.s32 0, %v1611
        %v1613 = vrot.slane %v1608, %v1612
        %v1619 = vunpack.c.l.b16 %v1603
        %v1620 = vunpack.c.l.b16 %v1604
        %v1621 = vunpack.c.l.b16 %v1605
        %v1622 = vunpack.c.l.b16 %v1606
        %v1623 = vpack.c.b16 %v1620, %v1619
        %v1624 = vpack.c.b16 %v1622, %v1621
        %v1628 = vsel %vm800, %v1607, 0
        %1630 = vmatprep.subr.bf16.mxu0 0
        %1631 = vmatpush1.bf16.msra.mxu0 0
        %1632 = vmatprep.subr.bf16.mxu0 0
        %1633 = vmatpush1.bf16.msra.mxu0 0
        %1634 = vmatprep.subr.bf16.mxu0 0
        %1635 = vmatpush1.bf16.msra.mxu0 0
        %1636 = vmatprep.subr.bf16.mxu0 0
        %1637 = vmatpush1.bf16.msra.mxu0 0
        %1638 = vmatprep.subr.bf16.mxu0 0
        %1639 = vmatpush1.bf16.msra.mxu0 0
        %1640 = vmatprep.subr.bf16.mxu0 0
        %1641 = vmatpush1.bf16.msra.mxu0 0
        %1642 = vmatprep.subr.bf16.mxu0 0
        %1643 = vmatpush1.bf16.msra.mxu0 %v1624
        %1644 = vmatprep.subr.bf16.mxu0 0
        %1645 = vmatpush1.bf16.msra.mxu0 %v1623
        %1646 = vmatprep.subr.bf16.mxu0 0
        %1647 = vmatpush2.bf16.msra.mxu0 0
        %1648 = vmatprep.subr.bf16.mxu0 0
        %1649 = vmatpush2.bf16.msra.mxu0 0
        %1650 = vmatprep.subr.bf16.mxu0 0
        %1651 = vmatpush2.bf16.msra.mxu0 0
        %1652 = vmatprep.subr.bf16.mxu0 0
        %1653 = vmatpush2.bf16.msra.mxu0 0
        %1654 = vmatprep.subr.bf16.mxu0 0
        %1655 = vmatpush2.bf16.msra.mxu0 0
        %1656 = vmatprep.subr.bf16.mxu0 0
        %1657 = vmatpush2.bf16.msra.mxu0 0
        %1658 = vmatprep.subr.bf16.mxu0 0
        %1659 = vmatpush2.bf16.msra.mxu0 0
        %1660 = vmatprep.subr.bf16.mxu0 0
        %1661 = vmatpush2.bf16.msra.mxu0 0
        %1662 = vmatprep.mubr.bf16.mxu0 0
        %1663 = vmatmul.mubr.bf16.gmra.mxu0 %v1628
        %v1664 = vpop.f32.mrf.mxu0
        %v1665 = vadd.f32 %v1613, %v1664
        %v1666 = vpop.f32.mrf.mxu0
        %v1667 = vpop.f32.mrf.mxu0
        %v1668 = vpop.f32.mrf.mxu0
        %1669 = vdwg.mxu0
        %v1670 = vadd.f32 %v1665, %v1534
        %v1671 = vld [vmem:[%s17] sm:$0x1]
        %v1672 = vld [vmem:[%s18] sm:$0x1]
        %v1673 = vsel %vm869, %v1670, 0.0
        %1674 = vadd.xlane.f32.xlu0 %v1673
        %v1675 = vpop.xlane.xlu0 %1674
        %v1676 = vmul.f32 %v1675, %v1510
        %v1677 = vsub.f32 %v1670, %v1676
        %v1678 = vmul.f32 %v1677, %v1677
        %v1679 = vsel %vm869, %v1678, 0.0
        %1680 = vadd.xlane.f32.xlu0 %v1679
        %v1681 = vpop.xlane.xlu0 %1680
        %v1682 = vmul.f32 %v1681, %v1510
        %v1683 = vadd.f32 %v1682, 1e-12
        %v1684 = vrsqrt.pop %v1683
        %v1685 = vmul.f32 %v1677, %v1684
        %v1687 = vlaneseq
        %v1688 = vshrl.u32 %v1687, 7
        %v1689 = vsub.s32 0, %v1688
        %v1690 = vrot.slane %v1671, %v1689
        %v1692 = vmul.f32 %v1685, %v1690
        %v1694 = vlaneseq
        %v1695 = vshrl.u32 %v1694, 7
        %v1696 = vsub.s32 0, %v1695
        %v1697 = vrot.slane %v1672, %v1696
        %v1699 = vadd.f32 %v1692, %v1697
        %v1700 = vpack.c.bf16 %v1699, %v1699
        %s1701 = scalar_lea.vmem [#allocation7], 16
        %v1702 = vld [vmem:[%s1701] sm:$0xf]
        %v1703 = vld [vmem:[%s1701 + $0x4] sm:$0xf]
        %v1704 = vld [vmem:[%s1701 + $0x8] sm:$0xf]
        %v1705 = vld [vmem:[%s1701 + $0xc] sm:$0xf]
        %s1706 = scalar_lea.vmem %s4, 2
        %v1707 = vld [vmem:[%s1706] sm:$0x1]
        %v1708 = vld [vmem:[%s1706 + $0x1] sm:$0x1]
        %v1711 = vlaneseq
        %v1712 = vshrl.u32 %v1711, 7
        %v1713 = vsub.s32 0, %v1712
        %v1714 = vrot.slane %v1707, %v1713
        %v1715 = vlaneseq
        %v1716 = vshrl.u32 %v1715, 7
        %v1717 = vsub.s32 0, %v1716
        %v1718 = vrot.slane %v1708, %v1717
        %v1723 = vunpack.c.l.b16 %v1702
        %v1724 = vunpack.c.l.b16 %v1703
        %v1725 = vpack.c.b16 %v1724, %v1723
        %v1728 = vsel %vm869, %v1700, 0
        %1730 = vmatprep.subr.bf16.mxu0 0
        %1731 = vmatpush1.bf16.msra.mxu0 0
        %1732 = vmatprep.subr.bf16.mxu0 0
        %1733 = vmatpush1.bf16.msra.mxu0 0
        %1734 = vmatprep.subr.bf16.mxu0 0
        %1735 = vmatpush1.bf16.msra.mxu0 0
        %1736 = vmatprep.subr.bf16.mxu0 0
        %1737 = vmatpush1.bf16.msra.mxu0 0
        %1738 = vmatprep.subr.bf16.mxu0 0
        %1739 = vmatpush1.bf16.msra.mxu0 0
        %1740 = vmatprep.subr.bf16.mxu0 0
        %1741 = vmatpush1.bf16.msra.mxu0 0
        %1742 = vmatprep.subr.bf16.mxu0 0
        %1743 = vmatpush1.bf16.msra.mxu0 0
        %1744 = vmatprep.subr.bf16.mxu0 0
        %1745 = vmatpush1.bf16.msra.mxu0 %v1725
        %1746 = vmatprep.subr.bf16.mxu0 0
        %1747 = vmatpush2.bf16.msra.mxu0 0
        %1748 = vmatprep.subr.bf16.mxu0 0
        %1749 = vmatpush2.bf16.msra.mxu0 0
        %1750 = vmatprep.subr.bf16.mxu0 0
        %1751 = vmatpush2.bf16.msra.mxu0 0
        %1752 = vmatprep.subr.bf16.mxu0 0
        %1753 = vmatpush2.bf16.msra.mxu0 0
        %1754 = vmatprep.subr.bf16.mxu0 0
        %1755 = vmatpush2.bf16.msra.mxu0 0
        %1756 = vmatprep.subr.bf16.mxu0 0
        %1757 = vmatpush2.bf16.msra.mxu0 0
        %1758 = vmatprep.subr.bf16.mxu0 0
        %1759 = vmatpush2.bf16.msra.mxu0 0
        %1760 = vmatprep.subr.bf16.mxu0 0
        %1761 = vmatpush2.bf16.msra.mxu0 0
        %1762 = vmatprep.mubr.bf16.mxu0 0
        %1763 = vmatmul.mubr.bf16.gmra.mxu0 %v1728
        %v1764 = vpop.f32.mrf.mxu0
        %v1765 = vadd.f32 %v1714, %v1764
        %v1766 = vpop.f32.mrf.mxu0
        %v1767 = vpop.f32.mrf.mxu0
        %v1768 = vpop.f32.mrf.mxu0
        %1769 = vdwg.mxu0
        %v1772 = vunpack.c.l.b16 %v1704
        %v1773 = vunpack.c.l.b16 %v1705
        %v1774 = vpack.c.b16 %v1773, %v1772
        %1776 = vmatprep.subr.bf16.mxu0 0
        %1777 = vmatpush1.bf16.msra.mxu0 0
        %1778 = vmatprep.subr.bf16.mxu0 0
        %1779 = vmatpush1.bf16.msra.mxu0 0
        %1780 = vmatprep.subr.bf16.mxu0 0
        %1781 = vmatpush1.bf16.msra.mxu0 0
        %1782 = vmatprep.subr.bf16.mxu0 0
        %1783 = vmatpush1.bf16.msra.mxu0 0
        %1784 = vmatprep.subr.bf16.mxu0 0
        %1785 = vmatpush1.bf16.msra.mxu0 0
        %1786 = vmatprep.subr.bf16.mxu0 0
        %1787 = vmatpush1.bf16.msra.mxu0 0
        %1788 = vmatprep.subr.bf16.mxu0 0
        %1789 = vmatpush1.bf16.msra.mxu0 0
        %1790 = vmatprep.subr.bf16.mxu0 0
        %1791 = vmatpush1.bf16.msra.mxu0 %v1774
        %1792 = vmatprep.subr.bf16.mxu0 0
        %1793 = vmatpush2.bf16.msra.mxu0 0
        %1794 = vmatprep.subr.bf16.mxu0 0
        %1795 = vmatpush2.bf16.msra.mxu0 0
        %1796 = vmatprep.subr.bf16.mxu0 0
        %1797 = vmatpush2.bf16.msra.mxu0 0
        %1798 = vmatprep.subr.bf16.mxu0 0
        %1799 = vmatpush2.bf16.msra.mxu0 0
        %1800 = vmatprep.subr.bf16.mxu0 0
        %1801 = vmatpush2.bf16.msra.mxu0 0
        %1802 = vmatprep.subr.bf16.mxu0 0
        %1803 = vmatpush2.bf16.msra.mxu0 0
        %1804 = vmatprep.subr.bf16.mxu0 0
        %1805 = vmatpush2.bf16.msra.mxu0 0
        %1806 = vmatprep.subr.bf16.mxu0 0
        %1807 = vmatpush2.bf16.msra.mxu0 0
        %1808 = vmatprep.mubr.bf16.mxu0 0
        %1809 = vmatmul.mubr.bf16.gmra.mxu0 %v1728
        %v1810 = vpop.f32.mrf.mxu0
        %v1811 = vadd.f32 %v1718, %v1810
        %v1812 = vpop.f32.mrf.mxu0
        %v1813 = vpop.f32.mrf.mxu0
        %v1814 = vpop.f32.mrf.mxu0
        %1815 = vdwg.mxu0
        %v1816 = vmul.f32 %v1765, 0.35355338
        %v1817 = vmul.f32 %v1811, 0.35355338
        %s1818 = scalar_lea.vmem [#allocation8], 16
        %v1819 = vld [vmem:[%s1818] sm:$0xf]
        %v1820 = vld [vmem:[%s1818 + $0x4] sm:$0xf]
        %v1821 = vld [vmem:[%s1818 + $0x8] sm:$0xf]
        %v1822 = vld [vmem:[%s1818 + $0xc] sm:$0xf]
        %s1823 = scalar_lea.vmem %s6, 2
        %v1824 = vld [vmem:[%s1823] sm:$0x1]
        %v1825 = vld [vmem:[%s1823 + $0x1] sm:$0x1]
        %v1828 = vlaneseq
        %v1829 = vshrl.u32 %v1828, 7
        %v1830 = vsub.s32 0, %v1829
        %v1831 = vrot.slane %v1824, %v1830
        %v1832 = vlaneseq
        %v1833 = vshrl.u32 %v1832, 7
        %v1834 = vsub.s32 0, %v1833
        %v1835 = vrot.slane %v1825, %v1834
        %v1840 = vunpack.c.l.b16 %v1819
        %v1841 = vunpack.c.l.b16 %v1820
        %v1842 = vpack.c.b16 %v1841, %v1840
        %1844 = vmatprep.subr.bf16.mxu0 0
        %1845 = vmatpush1.bf16.msra.mxu0 0
        %1846 = vmatprep.subr.bf16.mxu0 0
        %1847 = vmatpush1.bf16.msra.mxu0 0
        %1848 = vmatprep.subr.bf16.mxu0 0
        %1849 = vmatpush1.bf16.msra.mxu0 0
        %1850 = vmatprep.subr.bf16.mxu0 0
        %1851 = vmatpush1.bf16.msra.mxu0 0
        %1852 = vmatprep.subr.bf16.mxu0 0
        %1853 = vmatpush1.bf16.msra.mxu0 0
        %1854 = vmatprep.subr.bf16.mxu0 0
        %1855 = vmatpush1.bf16.msra.mxu0 0
        %1856 = vmatprep.subr.bf16.mxu0 0
        %1857 = vmatpush1.bf16.msra.mxu0 0
        %1858 = vmatprep.subr.bf16.mxu0 0
        %1859 = vmatpush1.bf16.msra.mxu0 %v1842
        %1860 = vmatprep.subr.bf16.mxu0 0
        %1861 = vmatpush2.bf16.msra.mxu0 0
        %1862 = vmatprep.subr.bf16.mxu0 0
        %1863 = vmatpush2.bf16.msra.mxu0 0
        %1864 = vmatprep.subr.bf16.mxu0 0
        %1865 = vmatpush2.bf16.msra.mxu0 0
        %1866 = vmatprep.subr.bf16.mxu0 0
        %1867 = vmatpush2.bf16.msra.mxu0 0
        %1868 = vmatprep.subr.bf16.mxu0 0
        %1869 = vmatpush2.bf16.msra.mxu0 0
        %1870 = vmatprep.subr.bf16.mxu0 0
        %1871 = vmatpush2.bf16.msra.mxu0 0
        %1872 = vmatprep.subr.bf16.mxu0 0
        %1873 = vmatpush2.bf16.msra.mxu0 0
        %1874 = vmatprep.subr.bf16.mxu0 0
        %1875 = vmatpush2.bf16.msra.mxu0 0
        %1876 = vmatprep.mubr.bf16.mxu0 0
        %1877 = vmatmul.mubr.bf16.gmra.mxu0 %v1728
        %v1878 = vpop.f32.mrf.mxu0
        %v1879 = vadd.f32 %v1831, %v1878
        %v1880 = vpop.f32.mrf.mxu0
        %v1881 = vpop.f32.mrf.mxu0
        %v1882 = vpop.f32.mrf.mxu0
        %1883 = vdwg.mxu0
        %v1886 = vunpack.c.l.b16 %v1821
        %v1887 = vunpack.c.l.b16 %v1822
        %v1888 = vpack.c.b16 %v1887, %v1886
        %1890 = vmatprep.subr.bf16.mxu0 0
        %1891 = vmatpush1.bf16.msra.mxu0 0
        %1892 = vmatprep.subr.bf16.mxu0 0
        %1893 = vmatpush1.bf16.msra.mxu0 0
        %1894 = vmatprep.subr.bf16.mxu0 0
        %1895 = vmatpush1.bf16.msra.mxu0 0
        %1896 = vmatprep.subr.bf16.mxu0 0
        %1897 = vmatpush1.bf16.msra.mxu0 0
        %1898 = vmatprep.subr.bf16.mxu0 0
        %1899 = vmatpush1.bf16.msra.mxu0 0
        %1900 = vmatprep.subr.bf16.mxu0 0
        %1901 = vmatpush1.bf16.msra.mxu0 0
        %1902 = vmatprep.subr.bf16.mxu0 0
        %1903 = vmatpush1.bf16.msra.mxu0 0
        %1904 = vmatprep.subr.bf16.mxu0 0
        %1905 = vmatpush1.bf16.msra.mxu0 %v1888
        %1906 = vmatprep.subr.bf16.mxu0 0
        %1907 = vmatpush2.bf16.msra.mxu0 0
        %1908 = vmatprep.subr.bf16.mxu0 0
        %1909 = vmatpush2.bf16.msra.mxu0 0
        %1910 = vmatprep.subr.bf16.mxu0 0
        %1911 = vmatpush2.bf16.msra.mxu0 0
        %1912 = vmatprep.subr.bf16.mxu0 0
        %1913 = vmatpush2.bf16.msra.mxu0 0
        %1914 = vmatprep.subr.bf16.mxu0 0
        %1915 = vmatpush2.bf16.msra.mxu0 0
        %1916 = vmatprep.subr.bf16.mxu0 0
        %1917 = vmatpush2.bf16.msra.mxu0 0
        %1918 = vmatprep.subr.bf16.mxu0 0
        %1919 = vmatpush2.bf16.msra.mxu0 0
        %1920 = vmatprep.subr.bf16.mxu0 0
        %1921 = vmatpush2.bf16.msra.mxu0 0
        %1922 = vmatprep.mubr.bf16.mxu0 0
        %1923 = vmatmul.mubr.bf16.gmra.mxu0 %v1728
        %v1924 = vpop.f32.mrf.mxu0
        %v1925 = vadd.f32 %v1835, %v1924
        %v1926 = vpop.f32.mrf.mxu0
        %v1927 = vpop.f32.mrf.mxu0
        %v1928 = vpop.f32.mrf.mxu0
        %1929 = vdwg.mxu0
        %s1930 = scalar_lea.vmem [#allocation10], 16
        %v1931 = vld [vmem:[%s1930] sm:$0xf]
        %v1932 = vld [vmem:[%s1930 + $0x4] sm:$0xf]
        %v1933 = vld [vmem:[%s1930 + $0x8] sm:$0xf]
        %v1934 = vld [vmem:[%s1930 + $0xc] sm:$0xf]
        %s1935 = scalar_lea.vmem %s8, 2
        %v1936 = vld [vmem:[%s1935] sm:$0x1]
        %v1937 = vld [vmem:[%s1935 + $0x1] sm:$0x1]
        %v1940 = vlaneseq
        %v1941 = vshrl.u32 %v1940, 7
        %v1942 = vsub.s32 0, %v1941
        %v1943 = vrot.slane %v1936, %v1942
        %v1944 = vlaneseq
        %v1945 = vshrl.u32 %v1944, 7
        %v1946 = vsub.s32 0, %v1945
        %v1947 = vrot.slane %v1937, %v1946
        %v1952 = vunpack.c.l.b16 %v1931
        %v1953 = vunpack.c.l.b16 %v1932
        %v1954 = vpack.c.b16 %v1953, %v1952
        %1956 = vmatprep.subr.bf16.mxu0 0
        %1957 = vmatpush1.bf16.msra.mxu0 0
        %1958 = vmatprep.subr.bf16.mxu0 0
        %1959 = vmatpush1.bf16.msra.mxu0 0
        %1960 = vmatprep.subr.bf16.mxu0 0
        %1961 = vmatpush1.bf16.msra.mxu0 0
        %1962 = vmatprep.subr.bf16.mxu0 0
        %1963 = vmatpush1.bf16.msra.mxu0 0
        %1964 = vmatprep.subr.bf16.mxu0 0
        %1965 = vmatpush1.bf16.msra.mxu0 0
        %1966 = vmatprep.subr.bf16.mxu0 0
        %1967 = vmatpush1.bf16.msra.mxu0 0
        %1968 = vmatprep.subr.bf16.mxu0 0
        %1969 = vmatpush1.bf16.msra.mxu0 0
        %1970 = vmatprep.subr.bf16.mxu0 0
        %1971 = vmatpush1.bf16.msra.mxu0 %v1954
        %1972 = vmatprep.subr.bf16.mxu0 0
        %1973 = vmatpush2.bf16.msra.mxu0 0
        %1974 = vmatprep.subr.bf16.mxu0 0
        %1975 = vmatpush2.bf16.msra.mxu0 0
        %1976 = vmatprep.subr.bf16.mxu0 0
        %1977 = vmatpush2.bf16.msra.mxu0 0
        %1978 = vmatprep.subr.bf16.mxu0 0
        %1979 = vmatpush2.bf16.msra.mxu0 0
        %1980 = vmatprep.subr.bf16.mxu0 0
        %1981 = vmatpush2.bf16.msra.mxu0 0
        %1982 = vmatprep.subr.bf16.mxu0 0
        %1983 = vmatpush2.bf16.msra.mxu0 0
        %1984 = vmatprep.subr.bf16.mxu0 0
        %1985 = vmatpush2.bf16.msra.mxu0 0
        %1986 = vmatprep.subr.bf16.mxu0 0
        %1987 = vmatpush2.bf16.msra.mxu0 0
        %1988 = vmatprep.mubr.bf16.mxu0 0
        %1989 = vmatmul.mubr.bf16.gmra.mxu0 %v1728
        %v1990 = vpop.f32.mrf.mxu0
        %v1991 = vadd.f32 %v1943, %v1990
        %v1992 = vpop.f32.mrf.mxu0
        %v1993 = vpop.f32.mrf.mxu0
        %v1994 = vpop.f32.mrf.mxu0
        %1995 = vdwg.mxu0
        %v1998 = vunpack.c.l.b16 %v1933
        %v1999 = vunpack.c.l.b16 %v1934
        %v2000 = vpack.c.b16 %v1999, %v1998
        %2002 = vmatprep.subr.bf16.mxu0 0
        %2003 = vmatpush1.bf16.msra.mxu0 0
        %2004 = vmatprep.subr.bf16.mxu0 0
        %2005 = vmatpush1.bf16.msra.mxu0 0
        %2006 = vmatprep.subr.bf16.mxu0 0
        %2007 = vmatpush1.bf16.msra.mxu0 0
        %2008 = vmatprep.subr.bf16.mxu0 0
        %2009 = vmatpush1.bf16.msra.mxu0 0
        %2010 = vmatprep.subr.bf16.mxu0 0
        %2011 = vmatpush1.bf16.msra.mxu0 0
        %2012 = vmatprep.subr.bf16.mxu0 0
        %2013 = vmatpush1.bf16.msra.mxu0 0
        %2014 = vmatprep.subr.bf16.mxu0 0
        %2015 = vmatpush1.bf16.msra.mxu0 0
        %2016 = vmatprep.subr.bf16.mxu0 0
        %2017 = vmatpush1.bf16.msra.mxu0 %v2000
        %2018 = vmatprep.subr.bf16.mxu0 0
        %2019 = vmatpush2.bf16.msra.mxu0 0
        %2020 = vmatprep.subr.bf16.mxu0 0
        %2021 = vmatpush2.bf16.msra.mxu0 0
        %2022 = vmatprep.subr.bf16.mxu0 0
        %2023 = vmatpush2.bf16.msra.mxu0 0
        %2024 = vmatprep.subr.bf16.mxu0 0
        %2025 = vmatpush2.bf16.msra.mxu0 0
        %2026 = vmatprep.subr.bf16.mxu0 0
        %2027 = vmatpush2.bf16.msra.mxu0 0
        %2028 = vmatprep.subr.bf16.mxu0 0
        %2029 = vmatpush2.bf16.msra.mxu0 0
        %2030 = vmatprep.subr.bf16.mxu0 0
        %2031 = vmatpush2.bf16.msra.mxu0 0
        %2032 = vmatprep.subr.bf16.mxu0 0
        %2033 = vmatpush2.bf16.msra.mxu0 0
        %2034 = vmatprep.mubr.bf16.mxu0 0
        %2035 = vmatmul.mubr.bf16.gmra.mxu0 %v1728
        %v2036 = vpop.f32.mrf.mxu0
        %v2037 = vadd.f32 %v1947, %v2036
        %v2038 = vpop.f32.mrf.mxu0
        %v2039 = vpop.f32.mrf.mxu0
        %v2040 = vpop.f32.mrf.mxu0
        %2041 = vdwg.mxu0
        %v2042 = vpack.c.bf16 %v1816, %v1816
        %v2043 = vpack.c.bf16 %v1817, %v1817
        %v2044 = vpack.c.bf16 %v1879, %v1879
        %v2045 = vpack.c.bf16 %v1925, %v1925
        %v2047 = vsel %vm1185, %v2042, 0
        %v2050 = vsel %vm1185, %v2044, 0
        %2052 = vmatprep.subr.bf16.mxu0 0
        %2053 = vmatpush1.bf16.xpose.msra.mxu0 0
        %2054 = vmatprep.subr.bf16.mxu0 0
        %2055 = vmatpush1.bf16.xpose.msra.mxu0 0
        %2056 = vmatprep.subr.bf16.mxu0 0
        %2057 = vmatpush1.bf16.xpose.msra.mxu0 0
        %2058 = vmatprep.subr.bf16.mxu0 0
        %2059 = vmatpush1.bf16.xpose.msra.mxu0 0
        %2060 = vmatprep.subr.bf16.mxu0 0
        %2061 = vmatpush1.bf16.xpose.msra.mxu0 0
        %2062 = vmatprep.subr.bf16.mxu0 0
        %2063 = vmatpush1.bf16.xpose.msra.mxu0 0
        %2064 = vmatprep.subr.bf16.mxu0 0
        %2065 = vmatpush1.bf16.xpose.msra.mxu0 0
        %2066 = vmatprep.subr.bf16.mxu0 0
        %2067 = vmatpush1.bf16.xpose.msra.mxu0 %v2050
        %2068 = vmatprep.subr.bf16.mxu0 0
        %2069 = vmatpush2.bf16.xpose.msra.mxu0 0
        %2070 = vmatprep.subr.bf16.mxu0 0
        %2071 = vmatpush2.bf16.xpose.msra.mxu0 0
        %2072 = vmatprep.subr.bf16.mxu0 0
        %2073 = vmatpush2.bf16.xpose.msra.mxu0 0
        %2074 = vmatprep.subr.bf16.mxu0 0
        %2075 = vmatpush2.bf16.xpose.msra.mxu0 0
        %2076 = vmatprep.subr.bf16.mxu0 0
        %2077 = vmatpush2.bf16.xpose.msra.mxu0 0
        %2078 = vmatprep.subr.bf16.mxu0 0
        %2079 = vmatpush2.bf16.xpose.msra.mxu0 0
        %2080 = vmatprep.subr.bf16.mxu0 0
        %2081 = vmatpush2.bf16.xpose.msra.mxu0 0
        %2082 = vmatprep.subr.bf16.mxu0 0
        %2083 = vmatpush2.bf16.xpose.msra.mxu0 0
        %2084 = vmatprep.mubr.bf16.mxu0 0
        %2085 = vmatmul.mubr.bf16.gmra.mxu0 %v2047
        %v2086 = vpop.f32.mrf.mxu0
        %v2087 = vadd.f32 0.0, %v2086
        %v2088 = vpop.f32.mrf.mxu0
        %v2089 = vpop.f32.mrf.mxu0
        %v2090 = vpop.f32.mrf.mxu0
        %2091 = vdwg.mxu0
        %v2093 = vsel %vm1185, %v2043, 0
        %v2096 = vsel %vm1185, %v2045, 0
        %2098 = vmatprep.subr.bf16.mxu0 0
        %2099 = vmatpush1.bf16.xpose.msra.mxu0 0
        %2100 = vmatprep.subr.bf16.mxu0 0
        %2101 = vmatpush1.bf16.xpose.msra.mxu0 0
        %2102 = vmatprep.subr.bf16.mxu0 0
        %2103 = vmatpush1.bf16.xpose.msra.mxu0 0
        %2104 = vmatprep.subr.bf16.mxu0 0
        %2105 = vmatpush1.bf16.xpose.msra.mxu0 0
        %2106 = vmatprep.subr.bf16.mxu0 0
        %2107 = vmatpush1.bf16.xpose.msra.mxu0 0
        %2108 = vmatprep.subr.bf16.mxu0 0
        %2109 = vmatpush1.bf16.xpose.msra.mxu0 0
        %2110 = vmatprep.subr.bf16.mxu0 0
        %2111 = vmatpush1.bf16.xpose.msra.mxu0 0
        %2112 = vmatprep.subr.bf16.mxu0 0
        %2113 = vmatpush1.bf16.xpose.msra.mxu0 %v2096
        %2114 = vmatprep.subr.bf16.mxu0 0
        %2115 = vmatpush2.bf16.xpose.msra.mxu0 0
        %2116 = vmatprep.subr.bf16.mxu0 0
        %2117 = vmatpush2.bf16.xpose.msra.mxu0 0
        %2118 = vmatprep.subr.bf16.mxu0 0
        %2119 = vmatpush2.bf16.xpose.msra.mxu0 0
        %2120 = vmatprep.subr.bf16.mxu0 0
        %2121 = vmatpush2.bf16.xpose.msra.mxu0 0
        %2122 = vmatprep.subr.bf16.mxu0 0
        %2123 = vmatpush2.bf16.xpose.msra.mxu0 0
        %2124 = vmatprep.subr.bf16.mxu0 0
        %2125 = vmatpush2.bf16.xpose.msra.mxu0 0
        %2126 = vmatprep.subr.bf16.mxu0 0
        %2127 = vmatpush2.bf16.xpose.msra.mxu0 0
        %2128 = vmatprep.subr.bf16.mxu0 0
        %2129 = vmatpush2.bf16.xpose.msra.mxu0 0
        %2130 = vmatprep.mubr.bf16.mxu0 0
        %2131 = vmatmul.mubr.bf16.gmra.mxu0 %v2093
        %v2132 = vpop.f32.mrf.mxu0
        %v2133 = vadd.f32 0.0, %v2132
        %v2134 = vpop.f32.mrf.mxu0
        %v2135 = vpop.f32.mrf.mxu0
        %v2136 = vpop.f32.mrf.mxu0
        %2137 = vdwg.mxu0
        %v2138 = vsel %vm1185, %v2087, -inf
        %2139 = vmax.xlane.f32.xlu0 %v2138
        %v2140 = vpop.xlane.xlu0 %2139
        %v2141 = vsel %vm1185, %v2133, -inf
        %2142 = vmax.xlane.f32.xlu0 %v2141
        %v2143 = vpop.xlane.xlu0 %2142
        %v2144 = vsub.f32 %v2087, %v2140
        %v2145 = vsub.f32 %v2133, %v2143
        %v2146 = vmul.f32 %v2144, 1.442695
        %v2147 = vpow.pop %v2146
        %v2148 = vmul.f32 %v2145, 1.442695
        %v2149 = vpow.pop %v2148
        %v2150 = vsel %vm1185, %v2147, 0.0
        %2151 = vadd.xlane.f32.xlu0 %v2150
        %v2152 = vpop.xlane.xlu0 %2151
        %v2153 = vsel %vm1185, %v2149, 0.0
        %2154 = vadd.xlane.f32.xlu0 %v2153
        %v2155 = vpop.xlane.xlu0 %2154
        %v2156 = vrcp.pop %v2152
        %v2157 = vrcp.pop %v2155
        %v2158 = vmul.f32 %v2147, %v2156
        %v2159 = vmul.f32 %v2149, %v2157
        %v2160 = vpack.c.bf16 %v2158, %v2158
        %v2161 = vpack.c.bf16 %v2159, %v2159
        %v2162 = vpack.c.bf16 %v1991, %v1991
        %v2163 = vpack.c.bf16 %v2037, %v2037
        %v2165 = vsel %vm1185, %v2160, 0
        %v2168 = vsel %vm1307, %v2162, 0
        %2170 = vmatprep.subr.bf16.mxu0 0
        %2171 = vmatpush1.bf16.msra.mxu0 0
        %2172 = vmatprep.subr.bf16.mxu0 0
        %2173 = vmatpush1.bf16.msra.mxu0 0
        %2174 = vmatprep.subr.bf16.mxu0 0
        %2175 = vmatpush1.bf16.msra.mxu0 0
        %2176 = vmatprep.subr.bf16.mxu0 0
        %2177 = vmatpush1.bf16.msra.mxu0 0
        %2178 = vmatprep.subr.bf16.mxu0 0
        %2179 = vmatpush1.bf16.msra.mxu0 0
        %2180 = vmatprep.subr.bf16.mxu0 0
        %2181 = vmatpush1.bf16.msra.mxu0 0
        %2182 = vmatprep.subr.bf16.mxu0 0
        %2183 = vmatpush1.bf16.msra.mxu0 0
        %2184 = vmatprep.subr.bf16.mxu0 0
        %2185 = vmatpush1.bf16.msra.mxu0 %v2168
        %2186 = vmatprep.subr.bf16.mxu0 0
        %2187 = vmatpush2.bf16.msra.mxu0 0
        %2188 = vmatprep.subr.bf16.mxu0 0
        %2189 = vmatpush2.bf16.msra.mxu0 0
        %2190 = vmatprep.subr.bf16.mxu0 0
        %2191 = vmatpush2.bf16.msra.mxu0 0
        %2192 = vmatprep.subr.bf16.mxu0 0
        %2193 = vmatpush2.bf16.msra.mxu0 0
        %2194 = vmatprep.subr.bf16.mxu0 0
        %2195 = vmatpush2.bf16.msra.mxu0 0
        %2196 = vmatprep.subr.bf16.mxu0 0
        %2197 = vmatpush2.bf16.msra.mxu0 0
        %2198 = vmatprep.subr.bf16.mxu0 0
        %2199 = vmatpush2.bf16.msra.mxu0 0
        %2200 = vmatprep.subr.bf16.mxu0 0
        %2201 = vmatpush2.bf16.msra.mxu0 0
        %2202 = vmatprep.mubr.bf16.mxu0 0
        %2203 = vmatmul.mubr.bf16.gmra.mxu0 %v2165
        %v2204 = vpop.f32.mrf.mxu0
        %v2205 = vadd.f32 0.0, %v2204
        %v2206 = vpop.f32.mrf.mxu0
        %v2207 = vpop.f32.mrf.mxu0
        %v2208 = vpop.f32.mrf.mxu0
        %2209 = vdwg.mxu0
        %v2211 = vsel %vm1185, %v2161, 0
        %v2214 = vsel %vm1307, %v2163, 0
        %2216 = vmatprep.subr.bf16.mxu0 0
        %2217 = vmatpush1.bf16.msra.mxu0 0
        %2218 = vmatprep.subr.bf16.mxu0 0
        %2219 = vmatpush1.bf16.msra.mxu0 0
        %2220 = vmatprep.subr.bf16.mxu0 0
        %2221 = vmatpush1.bf16.msra.mxu0 0
        %2222 = vmatprep.subr.bf16.mxu0 0
        %2223 = vmatpush1.bf16.msra.mxu0 0
        %2224 = vmatprep.subr.bf16.mxu0 0
        %2225 = vmatpush1.bf16.msra.mxu0 0
        %2226 = vmatprep.subr.bf16.mxu0 0
        %2227 = vmatpush1.bf16.msra.mxu0 0
        %2228 = vmatprep.subr.bf16.mxu0 0
        %2229 = vmatpush1.bf16.msra.mxu0 0
        %2230 = vmatprep.subr.bf16.mxu0 0
        %2231 = vmatpush1.bf16.msra.mxu0 %v2214
        %2232 = vmatprep.subr.bf16.mxu0 0
        %2233 = vmatpush2.bf16.msra.mxu0 0
        %2234 = vmatprep.subr.bf16.mxu0 0
        %2235 = vmatpush2.bf16.msra.mxu0 0
        %2236 = vmatprep.subr.bf16.mxu0 0
        %2237 = vmatpush2.bf16.msra.mxu0 0
        %2238 = vmatprep.subr.bf16.mxu0 0
        %2239 = vmatpush2.bf16.msra.mxu0 0
        %2240 = vmatprep.subr.bf16.mxu0 0
        %2241 = vmatpush2.bf16.msra.mxu0 0
        %2242 = vmatprep.subr.bf16.mxu0 0
        %2243 = vmatpush2.bf16.msra.mxu0 0
        %2244 = vmatprep.subr.bf16.mxu0 0
        %2245 = vmatpush2.bf16.msra.mxu0 0
        %2246 = vmatprep.subr.bf16.mxu0 0
        %2247 = vmatpush2.bf16.msra.mxu0 0
        %2248 = vmatprep.mubr.bf16.mxu0 0
        %2249 = vmatmul.mubr.bf16.gmra.mxu0 %v2211
        %v2250 = vpop.f32.mrf.mxu0
        %v2251 = vadd.f32 0.0, %v2250
        %v2252 = vpop.f32.mrf.mxu0
        %v2253 = vpop.f32.mrf.mxu0
        %v2254 = vpop.f32.mrf.mxu0
        %2255 = vdwg.mxu0
        %v2256 = vpack.c.bf16 %v2205, %v2205
        %v2257 = vpack.c.bf16 %v2251, %v2251
        %s2258 = scalar_lea.vmem [#allocation11], 8
        %v2259 = vld [vmem:[%s2258] sm:$0xf]
        %v2260 = vld [vmem:[%s2258 + $0x4] sm:$0xf]
        %v2262 = vsel %vm1185, %v2256, 0
        %v2265 = vsel %vm1307, %v2259, 0
        %2267 = vmatprep.subr.bf16.mxu0 0
        %2268 = vmatpush1.bf16.msra.mxu0 0
        %2269 = vmatprep.subr.bf16.mxu0 0
        %2270 = vmatpush1.bf16.msra.mxu0 0
        %2271 = vmatprep.subr.bf16.mxu0 0
        %2272 = vmatpush1.bf16.msra.mxu0 0
        %2273 = vmatprep.subr.bf16.mxu0 0
        %2274 = vmatpush1.bf16.msra.mxu0 0
        %2275 = vmatprep.subr.bf16.mxu0 0
        %2276 = vmatpush1.bf16.msra.mxu0 0
        %2277 = vmatprep.subr.bf16.mxu0 0
        %2278 = vmatpush1.bf16.msra.mxu0 0
        %2279 = vmatprep.subr.bf16.mxu0 0
        %2280 = vmatpush1.bf16.msra.mxu0 0
        %2281 = vmatprep.subr.bf16.mxu0 0
        %2282 = vmatpush1.bf16.msra.mxu0 %v2265
        %2283 = vmatprep.subr.bf16.mxu0 0
        %2284 = vmatpush2.bf16.msra.mxu0 0
        %2285 = vmatprep.subr.bf16.mxu0 0
        %2286 = vmatpush2.bf16.msra.mxu0 0
        %2287 = vmatprep.subr.bf16.mxu0 0
        %2288 = vmatpush2.bf16.msra.mxu0 0
        %2289 = vmatprep.subr.bf16.mxu0 0
        %2290 = vmatpush2.bf16.msra.mxu0 0
        %2291 = vmatprep.subr.bf16.mxu0 0
        %2292 = vmatpush2.bf16.msra.mxu0 0
        %2293 = vmatprep.subr.bf16.mxu0 0
        %2294 = vmatpush2.bf16.msra.mxu0 0
        %2295 = vmatprep.subr.bf16.mxu0 0
        %2296 = vmatpush2.bf16.msra.mxu0 0
        %2297 = vmatprep.subr.bf16.mxu0 0
        %2298 = vmatpush2.bf16.msra.mxu0 0
        %2299 = vmatprep.mubr.bf16.mxu0 0
        %2300 = vmatmul.mubr.bf16.gmra.mxu0 %v2262
        %v2301 = vpop.f32.mrf.mxu0
        %v2302 = vadd.f32 0.0, %v2301
        %v2303 = vpop.f32.mrf.mxu0
        %v2304 = vpop.f32.mrf.mxu0
        %v2305 = vpop.f32.mrf.mxu0
        %2306 = vdwg.mxu0
        %v2308 = vsel %vm1185, %v2257, 0
        %v2311 = vsel %vm1307, %v2260, 0
        %2313 = vmatprep.subr.bf16.mxu0 0
        %2314 = vmatpush1.bf16.msra.mxu0 0
        %2315 = vmatprep.subr.bf16.mxu0 0
        %2316 = vmatpush1.bf16.msra.mxu0 0
        %2317 = vmatprep.subr.bf16.mxu0 0
        %2318 = vmatpush1.bf16.msra.mxu0 0
        %2319 = vmatprep.subr.bf16.mxu0 0
        %2320 = vmatpush1.bf16.msra.mxu0 0
        %2321 = vmatprep.subr.bf16.mxu0 0
        %2322 = vmatpush1.bf16.msra.mxu0 0
        %2323 = vmatprep.subr.bf16.mxu0 0
        %2324 = vmatpush1.bf16.msra.mxu0 0
        %2325 = vmatprep.subr.bf16.mxu0 0
        %2326 = vmatpush1.bf16.msra.mxu0 0
        %2327 = vmatprep.subr.bf16.mxu0 0
        %2328 = vmatpush1.bf16.msra.mxu0 %v2311
        %2329 = vmatprep.subr.bf16.mxu0 0
        %2330 = vmatpush2.bf16.msra.mxu0 0
        %2331 = vmatprep.subr.bf16.mxu0 0
        %2332 = vmatpush2.bf16.msra.mxu0 0
        %2333 = vmatprep.subr.bf16.mxu0 0
        %2334 = vmatpush2.bf16.msra.mxu0 0
        %2335 = vmatprep.subr.bf16.mxu0 0
        %2336 = vmatpush2.bf16.msra.mxu0 0
        %2337 = vmatprep.subr.bf16.mxu0 0
        %2338 = vmatpush2.bf16.msra.mxu0 0
        %2339 = vmatprep.subr.bf16.mxu0 0
        %2340 = vmatpush2.bf16.msra.mxu0 0
        %2341 = vmatprep.subr.bf16.mxu0 0
        %2342 = vmatpush2.bf16.msra.mxu0 0
        %2343 = vmatprep.subr.bf16.mxu0 0
        %2344 = vmatpush2.bf16.msra.mxu0 0
        %2345 = vmatprep.mubr.bf16.mxu0 0
        %2346 = vmatmul.mubr.bf16.gmra.mxu0 %v2308
        %v2347 = vpop.f32.mrf.mxu0
        %v2348 = vadd.f32 0.0, %v2347
        %v2349 = vpop.f32.mrf.mxu0
        %v2350 = vpop.f32.mrf.mxu0
        %v2351 = vpop.f32.mrf.mxu0
        %2352 = vdwg.mxu0
        %v2353 = vsel %vm869, %v2302, 0.0
        %v2354 = vsel %vm869, %v2348, 0.0
        %v2355 = vadd.f32 %v2353, %v2354
        %s2356 = scalar_lea.vmem %s10, 1
        %v2357 = vld [vmem:[%s2356] sm:$0x1]
        %v2359 = vlaneseq
        %v2360 = vshrl.u32 %v2359, 7
        %v2361 = vsub.s32 0, %v2360
        %v2362 = vrot.slane %v2357, %v2361
        %v2364 = vadd.f32 %v2355, %v2362
        %v2365 = vadd.f32 %v2364, %v1699
        %s2366 = scalar_lea.vmem %s11, 1
        %v2367 = vld [vmem:[%s2366] sm:$0x1]
        %s2368 = scalar_lea.vmem %s12, 1
        %v2369 = vld [vmem:[%s2368] sm:$0x1]
        %v2370 = vsel %vm869, %v2365, 0.0
        %2371 = vadd.xlane.f32.xlu0 %v2370
        %v2372 = vpop.xlane.xlu0 %2371
        %v2373 = vmul.f32 %v2372, %v1510
        %v2374 = vsub.f32 %v2365, %v2373
        %v2375 = vmul.f32 %v2374, %v2374
        %v2376 = vsel %vm869, %v2375, 0.0
        %2377 = vadd.xlane.f32.xlu0 %v2376
        %v2378 = vpop.xlane.xlu0 %2377
        %v2379 = vmul.f32 %v2378, %v1510
        %v2380 = vadd.f32 %v2379, 1e-12
        %v2381 = vrsqrt.pop %v2380
        %v2382 = vmul.f32 %v2374, %v2381
        %v2384 = vlaneseq
        %v2385 = vshrl.u32 %v2384, 7
        %v2386 = vsub.s32 0, %v2385
        %v2387 = vrot.slane %v2367, %v2386
        %v2389 = vmul.f32 %v2382, %v2387
        %v2391 = vlaneseq
        %v2392 = vshrl.u32 %v2391, 7
        %v2393 = vsub.s32 0, %v2392
        %v2394 = vrot.slane %v2369, %v2393
        %v2396 = vadd.f32 %v2389, %v2394
        %s2397 = scalar_lea.vmem [#allocation13], 8
        %v2398 = vld [vmem:[%s2397] sm:$0xf]
        %v2399 = vld [vmem:[%s2397 + $0x4] sm:$0xf]
        %v2400 = vpack.c.bf16 %v2396, %v2396
        %s2401 = scalar_lea.vmem %s14, 1
        %v2402 = vld [vmem:[%s2401] sm:$0x1]
        %v2404 = vlaneseq
        %v2405 = vshrl.u32 %v2404, 7
        %v2406 = vsub.s32 0, %v2405
        %v2407 = vrot.slane %v2402, %v2406
        %v2411 = vunpack.c.l.b16 %v2398
        %v2412 = vunpack.c.l.b16 %v2399
        %v2413 = vpack.c.b16 %v2412, %v2411
        %v2416 = vsel %vm869, %v2400, 0
        %2418 = vmatprep.subr.bf16.mxu0 0
        %2419 = vmatpush1.bf16.msra.mxu0 0
        %2420 = vmatprep.subr.bf16.mxu0 0
        %2421 = vmatpush1.bf16.msra.mxu0 0
        %2422 = vmatprep.subr.bf16.mxu0 0
        %2423 = vmatpush1.bf16.msra.mxu0 0
        %2424 = vmatprep.subr.bf16.mxu0 0
        %2425 = vmatpush1.bf16.msra.mxu0 0
        %2426 = vmatprep.subr.bf16.mxu0 0
        %2427 = vmatpush1.bf16.msra.mxu0 0
        %2428 = vmatprep.subr.bf16.mxu0 0
        %2429 = vmatpush1.bf16.msra.mxu0 0
        %2430 = vmatprep.subr.bf16.mxu0 0
        %2431 = vmatpush1.bf16.msra.mxu0 0
        %2432 = vmatprep.subr.bf16.mxu0 0
        %2433 = vmatpush1.bf16.msra.mxu0 %v2413
        %2434 = vmatprep.subr.bf16.mxu0 0
        %2435 = vmatpush2.bf16.msra.mxu0 0
        %2436 = vmatprep.subr.bf16.mxu0 0
        %2437 = vmatpush2.bf16.msra.mxu0 0
        %2438 = vmatprep.subr.bf16.mxu0 0
        %2439 = vmatpush2.bf16.msra.mxu0 0
        %2440 = vmatprep.subr.bf16.mxu0 0
        %2441 = vmatpush2.bf16.msra.mxu0 0
        %2442 = vmatprep.subr.bf16.mxu0 0
        %2443 = vmatpush2.bf16.msra.mxu0 0
        %2444 = vmatprep.subr.bf16.mxu0 0
        %2445 = vmatpush2.bf16.msra.mxu0 0
        %2446 = vmatprep.subr.bf16.mxu0 0
        %2447 = vmatpush2.bf16.msra.mxu0 0
        %2448 = vmatprep.subr.bf16.mxu0 0
        %2449 = vmatpush2.bf16.msra.mxu0 0
        %2450 = vmatprep.mubr.bf16.mxu0 0
        %2451 = vmatmul.mubr.bf16.gmra.mxu0 %v2416
        %v2452 = vpop.f32.mrf.mxu0
        %v2453 = vadd.f32 %v2407, %v2452
        %v2454 = vpop.f32.mrf.mxu0
        %v2455 = vpop.f32.mrf.mxu0
        %v2456 = vpop.f32.mrf.mxu0
        %2457 = vdwg.mxu0
        %v2458 = vmul.f32 %v2453, %v2453
        %v2459 = vmul.f32 %v2453, %v2458
        %v2460 = vmul.f32 %v2459, 0.044715
        %v2461 = vadd.f32 %v2453, %v2460
        %v2462 = vmul.f32 %v2461, 0.7978846
        %v2463 = vtanh.pop %v2462
        %v2464 = vadd.f32 %v2463, 1.0
        %v2465 = vmul.f32 %v2464, 0.5
        %v2466 = vmul.f32 %v2453, %v2465
        %s2467 = scalar_lea.vmem %s15, 16
        %v2468 = vld [vmem:[%s2467] sm:$0xf]
        %v2469 = vld [vmem:[%s2467 + $0x4] sm:$0xf]
        %v2470 = vld [vmem:[%s2467 + $0x8] sm:$0xf]
        %v2471 = vld [vmem:[%s2467 + $0xc] sm:$0xf]
        %v2472 = vpack.c.bf16 %v2466, %v2466
        %s2473 = scalar_lea.vmem %s16, 1
        %v2474 = vld [vmem:[%s2473] sm:$0x1]
        %v2476 = vlaneseq
        %v2477 = vshrl.u32 %v2476, 7
        %v2478 = vsub.s32 0, %v2477
        %v2479 = vrot.slane %v2474, %v2478
        %v2485 = vunpack.c.l.b16 %v2468
        %v2486 = vunpack.c.l.b16 %v2469
        %v2487 = vunpack.c.l.b16 %v2470
        %v2488 = vunpack.c.l.b16 %v2471
        %v2489 = vpack.c.b16 %v2486, %v2485
        %v2490 = vpack.c.b16 %v2488, %v2487
        %v2494 = vsel %vm800, %v2472, 0
        %2496 = vmatprep.subr.bf16.mxu0 0
        %2497 = vmatpush1.bf16.msra.mxu0 0
        %2498 = vmatprep.subr.bf16.mxu0 0
        %2499 = vmatpush1.bf16.msra.mxu0 0
        %2500 = vmatprep.subr.bf16.mxu0 0
        %2501 = vmatpush1.bf16.msra.mxu0 0
        %2502 = vmatprep.subr.bf16.mxu0 0
        %2503 = vmatpush1.bf16.msra.mxu0 0
        %2504 = vmatprep.subr.bf16.mxu0 0
        %2505 = vmatpush1.bf16.msra.mxu0 0
        %2506 = vmatprep.subr.bf16.mxu0 0
        %2507 = vmatpush1.bf16.msra.mxu0 0
        %2508 = vmatprep.subr.bf16.mxu0 0
        %2509 = vmatpush1.bf16.msra.mxu0 %v2490
        %2510 = vmatprep.subr.bf16.mxu0 0
        %2511 = vmatpush1.bf16.msra.mxu0 %v2489
        %2512 = vmatprep.subr.bf16.mxu0 0
        %2513 = vmatpush2.bf16.msra.mxu0 0
        %2514 = vmatprep.subr.bf16.mxu0 0
        %2515 = vmatpush2.bf16.msra.mxu0 0
        %2516 = vmatprep.subr.bf16.mxu0 0
        %2517 = vmatpush2.bf16.msra.mxu0 0
        %2518 = vmatprep.subr.bf16.mxu0 0
        %2519 = vmatpush2.bf16.msra.mxu0 0
        %2520 = vmatprep.subr.bf16.mxu0 0
        %2521 = vmatpush2.bf16.msra.mxu0 0
        %2522 = vmatprep.subr.bf16.mxu0 0
        %2523 = vmatpush2.bf16.msra.mxu0 0
        %2524 = vmatprep.subr.bf16.mxu0 0
        %2525 = vmatpush2.bf16.msra.mxu0 0
        %2526 = vmatprep.subr.bf16.mxu0 0
        %2527 = vmatpush2.bf16.msra.mxu0 0
        %2528 = vmatprep.mubr.bf16.mxu0 0
        %2529 = vmatmul.mubr.bf16.gmra.mxu0 %v2494
        %v2530 = vpop.f32.mrf.mxu0
        %v2531 = vadd.f32 %v2479, %v2530
        %v2532 = vpop.f32.mrf.mxu0
        %v2533 = vpop.f32.mrf.mxu0
        %v2534 = vpop.f32.mrf.mxu0
        %2535 = vdwg.mxu0
        %v2536 = vadd.f32 %v2531, %v2396
        %s2537 = scalar_lea.vmem %s17, 1
        %v2538 = vld [vmem:[%s2537] sm:$0x1]
        %s2539 = scalar_lea.vmem %s18, 1
        %v2540 = vld [vmem:[%s2539] sm:$0x1]
        %v2541 = vsel %vm869, %v2536, 0.0
        %2542 = vadd.xlane.f32.xlu0 %v2541
        %v2543 = vpop.xlane.xlu0 %2542
        %v2544 = vmul.f32 %v2543, %v1510
        %v2545 = vsub.f32 %v2536, %v2544
        %v2546 = vmul.f32 %v2545, %v2545
        %v2547 = vsel %vm869, %v2546, 0.0
        %2548 = vadd.xlane.f32.xlu0 %v2547
        %v2549 = vpop.xlane.xlu0 %2548
        %v2550 = vmul.f32 %v2549, %v1510
        %v2551 = vadd.f32 %v2550, 1e-12
        %v2552 = vrsqrt.pop %v2551
        %v2553 = vmul.f32 %v2545, %v2552
        %v2555 = vlaneseq
        %v2556 = vshrl.u32 %v2555, 7
        %v2557 = vsub.s32 0, %v2556
        %v2558 = vrot.slane %v2538, %v2557
        %v2560 = vmul.f32 %v2553, %v2558
        %v2562 = vlaneseq
        %v2563 = vshrl.u32 %v2562, 7
        %v2564 = vsub.s32 0, %v2563
        %v2565 = vrot.slane %v2540, %v2564
        %v2567 = vadd.f32 %v2560, %v2565
        %v2568 = vld [vmem:[#allocation14] sm:$0xf]
        %v2569 = vld [vmem:[#allocation14 + $0x4] sm:$0xf]
        %v2570 = vpack.c.bf16 %v2567, %v2567
        %v2571 = vld [vmem:[%s20] sm:$0x1]
        %v2573 = vlaneseq
        %v2574 = vshrl.u32 %v2573, 7
        %v2575 = vsub.s32 0, %v2574
        %v2576 = vrot.slane %v2571, %v2575
        %v2580 = vunpack.c.l.b16 %v2568
        %v2581 = vunpack.c.l.b16 %v2569
        %v2582 = vpack.c.b16 %v2581, %v2580
        %v2585 = vsel %vm869, %v2570, 0
        %2587 = vmatprep.subr.bf16.mxu0 0
        %2588 = vmatpush1.bf16.msra.mxu0 0
        %2589 = vmatprep.subr.bf16.mxu0 0
        %2590 = vmatpush1.bf16.msra.mxu0 0
        %2591 = vmatprep.subr.bf16.mxu0 0
        %2592 = vmatpush1.bf16.msra.mxu0 0
        %2593 = vmatprep.subr.bf16.mxu0 0
        %2594 = vmatpush1.bf16.msra.mxu0 0
        %2595 = vmatprep.subr.bf16.mxu0 0
        %2596 = vmatpush1.bf16.msra.mxu0 0
        %2597 = vmatprep.subr.bf16.mxu0 0
        %2598 = vmatpush1.bf16.msra.mxu0 0
        %2599 = vmatprep.subr.bf16.mxu0 0
        %2600 = vmatpush1.bf16.msra.mxu0 0
        %2601 = vmatprep.subr.bf16.mxu0 0
        %2602 = vmatpush1.bf16.msra.mxu0 %v2582
        %2603 = vmatprep.subr.bf16.mxu0 0
        %2604 = vmatpush2.bf16.msra.mxu0 0
        %2605 = vmatprep.subr.bf16.mxu0 0
        %2606 = vmatpush2.bf16.msra.mxu0 0
        %2607 = vmatprep.subr.bf16.mxu0 0
        %2608 = vmatpush2.bf16.msra.mxu0 0
        %2609 = vmatprep.subr.bf16.mxu0 0
        %2610 = vmatpush2.bf16.msra.mxu0 0
        %2611 = vmatprep.subr.bf16.mxu0 0
        %2612 = vmatpush2.bf16.msra.mxu0 0
        %2613 = vmatprep.subr.bf16.mxu0 0
        %2614 = vmatpush2.bf16.msra.mxu0 0
        %2615 = vmatprep.subr.bf16.mxu0 0
        %2616 = vmatpush2.bf16.msra.mxu0 0
        %2617 = vmatprep.subr.bf16.mxu0 0
        %2618 = vmatpush2.bf16.msra.mxu0 0
        %2619 = vmatprep.mubr.bf16.mxu0 0
        %2620 = vmatmul.mubr.bf16.gmra.mxu0 %v2585
        %v2621 = vpop.f32.mrf.mxu0
        %v2622 = vadd.f32 %v2576, %v2621
        %v2623 = vpop.f32.mrf.mxu0
        %v2624 = vpop.f32.mrf.mxu0
        %v2625 = vpop.f32.mrf.mxu0
        %2626 = vdwg.mxu0
        %v2627 = vadd.f32 %v775, %v2622
        %2628 = vst.msk [vmem:[%s773] sm:$0xff] %vm800, %v2627
        %s2629 = sand.u32 %s496, 1
        %s2630 = scalar_lea.sflag [#allocation4], %s2629
        %s2631 = sand.u32 %s496, 1
        %s2632 = smul.addr %s2631, 8
        %s2633 = scalar_lea.vmem [#allocation16], %s2632
        // Predicated region
        $region137: #{adapter_forward.1} parent=103 // pred_check
          %p2634 = pneg %p506
        $region138: #{adapter_forward.1} parent=103 // pred_check_branch
          %2636 = sbr.rel (%p2634) target = $region140
        $region139: #{adapter_forward.1} parent=103 // pred_region
          %s2638 = ssub.s32 128, 128
          %2639 = vsyncadd %s2630, %s2638
          %s2640 = smul.addr %s42, 128
          %s2641 = scalar_lea.hbm %s21, %s2640
          %s2643 = sshll.u32 %s2633, 4
          %s2644 = int_to_ptr.vmem [resolvable:$true] %s2643
          %2646 = dma.vmem_to_hbm [thread:$0]  %s2644, 128, %s2641, %s2630
        $region140: #{adapter_forward.1} parent=103 // pred_fallthru
          _
      $region104: #{adapter_forward.1} parent=5 // pred_fallthru
        _
      %p2647 = scmp.le.s32.totalorder 2, %s37
      // Predicated region
      $region141: #{adapter_forward.1} parent=5 // pred_check
        %p2648 = pneg %p2647
      $region142: #{adapter_forward.1} parent=5 // pred_check_branch
        %2650 = sbr.rel (%p2648) target = $region144
      $region143: #{adapter_forward.1} parent=5 // pred_region
        %s2651 = ssub.s32 %s37, 2
        // Predicated region
        $region145: #{adapter_forward.1} parent=143 // pred_check
          %p2652 = pneg %p512
        $region146: #{adapter_forward.1} parent=143 // pred_check_branch
          %2654 = sbr.rel (%p2652) target = $region148
        $region147: #{adapter_forward.1} parent=143 // pred_region
          %s2655 = sand.u32 %s497, 1
          %s2656 = scalar_lea.sflag [#allocation4], %s2655
          %s2657 = sand.u32 %s497, 1
          %s2658 = smul.addr %s2657, 8
          %s2659 = scalar_lea.vmem [#allocation16], %s2658
          %2660 = dma.done %s2656, 128
        $region148: #{adapter_forward.1} parent=143 // pred_fallthru
          _
      $region144: #{adapter_forward.1} parent=5 // pred_fallthru
        _
    $region6: #{adapter_forward.1} parent=1 // loop_footer
      %s41 = sadd.s32 1, %s37
    $region7: #{adapter_forward.1} parent=1 // loop_footer_branch
      %36 = sbr.rel target = $region3
    $region8: #{adapter_forward.1} parent=1 // loop_exit
      _
    %2661 = vsyncpa [#allocation3], 1
    %s2662 = scalar_lea.sflag [#allocation3], 1
    %2663 = vsyncpa %s2662, 1
    %2664 = vsyncpa [#allocation6], 1
    %2665 = vsyncpa [#allocation9], 1
    %2666 = vsyncpa [#allocation12], 1
    %2667 = vsyncpa [#allocation15], 1
    %2668 = vsyncpa [#allocation4], 1
    %s2669 = scalar_lea.sflag [#allocation4], 1
    %2670 = vsyncpa %s2669, 1

</llo_original>
